<compile_context>
chip_gen: v5e
topology: v5e:2x2
jax: 0.10.0
libtpu: 0.0.40
codegen_flags: <defaults>
</compile_context>

<pallas_src>
import functools
import math

import jax
import jax.numpy as jnp
import numpy as np
from jax.experimental import pallas as pl
from jax.experimental.pallas import tpu as pltpu

LN_EPS = 1e-5  # nn.LayerNorm default


def _encoder_layer_kernel(
    x_ref,                                    # (1, S, E) f32 full sequence (one batch elem)
    wq_ref, wkv_ref, wo_ref,                  # attention weights (bf16); scale folded in wq
    w1_ref, w2_ref,                           # FFN weights (bf16)
    vec_ref,                                  # (6, E) packed f32: g1,be1,g2,be2,bo,b2
    b1_ref,                                   # (1, d_ff) f32
    out_ref, attn_ref,                        # (1, TQ, E), (1, TQ, S)
    *, num_heads: int, depth: int,
):
    S = x_ref.shape[1]
    E = x_ref.shape[2]
    TQ = out_ref.shape[1]

    vec = vec_ref[...]                        # (6, E) f32
    g1, be1 = vec[0:1], vec[1:2]
    g2, be2 = vec[2:3], vec[3:4]
    bo, b2 = vec[4:5], vec[5:6]

    def layernorm(t, g, b):
        m = jnp.mean(t, axis=-1, keepdims=True)
        c = t - m
        v = jnp.mean(c * c, axis=-1, keepdims=True)
        return c * jax.lax.rsqrt(v + LN_EPS) * g + b

    # ---- LayerNorm 1 over the full sequence (needed for K/V) ----
    x_full = x_ref[0]                         # (S, E) f32
    xn_full = layernorm(x_full, g1, be1)      # (S, E) f32

    if TQ == S:
        # Single query tile: queries are the whole sequence, no duplicate work.
        xq, xnq = x_full, xn_full
    else:
        q0 = pl.multiple_of(pl.program_id(1) * TQ, TQ)
        xq = x_ref[0, pl.ds(q0, TQ), :]       # residual-branch query rows (f32)
        xnq = layernorm(xq, g1, be1)          # LN1 for the query rows only

    # ---- Projections: Q (scale pre-folded into wq) + fused K|V, bf16 MXU ----
    q = jnp.dot(xnq.astype(jnp.bfloat16), wq_ref[...],
                preferred_element_type=jnp.float32)            # (TQ, E)
    kv = jnp.dot(xn_full.astype(jnp.bfloat16), wkv_ref[...],
                 preferred_element_type=jnp.float32)           # (S, 2E)
    k = kv[:, :E]
    v = kv[:, E:]

    # ---- Head split into a leading batch axis (batched MXU ops) ----
    def split_heads(t):                        # (rows, E) -> (H, rows, D)
        return jnp.stack(
            [t[:, h * depth:(h + 1) * depth] for h in range(num_heads)],
            axis=0)

    qh = split_heads(q).astype(jnp.bfloat16)   # (H, TQ, D)
    kh = split_heads(k).astype(jnp.bfloat16)   # (H, S,  D)
    vh = split_heads(v).astype(jnp.bfloat16)   # (H, S,  D)

    # Batched per-head logits: one dot_general over all heads.
    logits = jnp.einsum("hqd,hkd->hqk", qh, kh,
                        preferred_element_type=jnp.float32)    # (H, TQ, S) f32

    # ---- Softmax over keys (f32 stats, EUP reciprocal) ----
    m = jnp.max(logits, axis=-1, keepdims=True)
    e = jnp.exp(logits - m)
    denom = jnp.sum(e, axis=-1, keepdims=True)
    w = e * pl.reciprocal(denom, approx=True)                  # (H, TQ, S)

    attn_ref[0] = w[0]                         # attention_weights[:, 0, :, :]

    # ---- Batched P @ V, merge heads, output projection ----
    ctx = jnp.einsum("hqk,hkd->hqd", w.astype(jnp.bfloat16), vh,
                     preferred_element_type=jnp.float32)       # (H, TQ, D)
    ctx = jnp.concatenate([ctx[h] for h in range(num_heads)], axis=-1)  # (TQ, E)

    attn_out = jnp.dot(ctx.astype(jnp.bfloat16), wo_ref[...],
                       preferred_element_type=jnp.float32) + bo

    # ---- Residual 1 (f32) ----
    y = xq + attn_out

    # ---- LayerNorm 2 + position-wise FFN + Residual 2 ----
    yn = layernorm(y, g2, be2)
    h1 = jnp.maximum(
        jnp.dot(yn.astype(jnp.bfloat16), w1_ref[...],
                preferred_element_type=jnp.float32) + b1_ref[...],
        0.0)
    ff = jnp.dot(h1.astype(jnp.bfloat16), w2_ref[...],
                 preferred_element_type=jnp.float32) + b2

    out_ref[0] = y + ff


def transformer_encoder_layer(src, params, num_heads, q_tile=None):
    """src: (S, B, E) float32 -> (out (S, B, E), attn_map (B, S, S))."""
    S, B, E = src.shape
    assert E % num_heads == 0
    depth = E // num_heads

    if q_tile is None:
        q_tile = S if S <= 128 else 128
    assert S % q_tile == 0, "seq_len must be divisible by the query tile"
    n_qt = S // q_tile

    x = jnp.transpose(src, (1, 0, 2)).astype(jnp.float32)      # (B, S, E)

    # --- parameter packing / casting (host side, free) ---
    inv_scale = 1.0 / math.sqrt(float(depth))
    wq = (params["wq"] * inv_scale).astype(jnp.bfloat16)       # scale folded in
    wkv = jnp.concatenate([params["wk"], params["wv"]],
                          axis=1).astype(jnp.bfloat16)         # fused K|V
    wo = params["wo"].astype(jnp.bfloat16)
    w1 = params["w1"].astype(jnp.bfloat16)
    w2 = params["w2"].astype(jnp.bfloat16)
    vec = jnp.concatenate(
        [params["g1"], params["be1"], params["g2"], params["be2"],
         params["bo"], params["b2"]], axis=0).astype(jnp.float32)   # (6, E)
    b1 = params["b1"].astype(jnp.float32)                      # (1, d_ff)
    d_ff = w1.shape[1]

    kernel = functools.partial(
        _encoder_layer_kernel, num_heads=num_heads, depth=depth)

    def const_spec(shape):
        # Whole (small) parameter block, same for every grid step (fetched once).
        return pl.BlockSpec(shape, lambda b, qi: (0,) * len(shape))

    out, attn = pl.pallas_call(
        kernel,
        out_shape=(
            jax.ShapeDtypeStruct((B, S, E), jnp.float32),
            jax.ShapeDtypeStruct((B, S, S), jnp.float32),
        ),
        grid_spec=pltpu.PrefetchScalarGridSpec(
            num_scalar_prefetch=0,
            grid=(B, n_qt),                    # batch x query-tile (both parallel)
            in_specs=[
                pl.BlockSpec((1, S, E), lambda b, qi: (b, 0, 0)),  # full seq x
                const_spec((E, E)),            # wq (scaled)
                const_spec((E, 2 * E)),        # wk | wv fused
                const_spec((E, E)),            # wo
                const_spec((E, d_ff)),         # w1
                const_spec((d_ff, E)),         # w2
                const_spec((6, E)),            # packed g1,be1,g2,be2,bo,b2
                const_spec((1, d_ff)),         # b1
            ],
            out_specs=[
                pl.BlockSpec((1, q_tile, E), lambda b, qi: (b, qi, 0)),
                pl.BlockSpec((1, q_tile, S), lambda b, qi: (b, qi, 0)),
            ],
        ),
        compiler_params=pltpu.CompilerParams(
            dimension_semantics=("parallel", "parallel"),
            vmem_limit_bytes=32 * 1024 * 1024,  # explicit cap (safe on v5e/v6e/v7x)
        ),
    )(x, wq, wkv, wo, w1, w2, vec, b1)

    return jnp.transpose(out, (1, 0, 2)), attn


def reference_forward(src, params, num_heads):
    """Pure-JAX (f32) mirror of the PyTorch forward, for correctness checking."""
    S, B, E = src.shape
    depth = E // num_heads

    def ln(x, g, b):
        m = x.mean(-1, keepdims=True)
        v = ((x - m) ** 2).mean(-1, keepdims=True)
        return (x - m) / jnp.sqrt(v + LN_EPS) * g + b

    src2 = ln(src, params["g1"], params["be1"])
    x = jnp.transpose(src2, (1, 0, 2))        # (B, S, E)

    q = x @ params["wq"]
    k = x @ params["wk"]
    v = x @ params["wv"]

    def split(t):
        return jnp.transpose(t.reshape(B, S, num_heads, depth), (0, 2, 1, 3))

    q, k, v = split(q), split(k), split(v)
    logits = jnp.einsum("bhqd,bhkd->bhqk", q, k) / math.sqrt(float(depth))
    w = jax.nn.softmax(logits, axis=-1)
    o = jnp.einsum("bhqk,bhkd->bhqd", w, v)
    o = jnp.transpose(o, (0, 2, 1, 3)).reshape(B, S, E)
    o = o @ params["wo"] + params["bo"]
    attn_map = w[:, 0]                        # first head

    src = src + jnp.transpose(o, (1, 0, 2))
    src2 = ln(src, params["g2"], params["be2"])
    ff = jax.nn.relu(src2 @ params["w1"] + params["b1"]) @ params["w2"] + params["b2"]
    return src + ff, attn_map


def make_params(key, E, d_ff):
    ks = jax.random.split(key, 10)
    return {
        # Linear weights stored as (in, out) so the kernel does x @ W.
        "wq": 0.1 * jax.random.normal(ks[0], (E, E), jnp.float32),
        "wk": 0.1 * jax.random.normal(ks[1], (E, E), jnp.float32),
        "wv": 0.1 * jax.random.normal(ks[2], (E, E), jnp.float32),
        "wo": 0.1 * jax.random.normal(ks[3], (E, E), jnp.float32),
        "bo": 0.1 * jax.random.normal(ks[4], (1, E), jnp.float32),
        "w1": 0.1 * jax.random.normal(ks[5], (E, d_ff), jnp.float32),
        "b1": 0.1 * jax.random.normal(ks[6], (1, d_ff), jnp.float32),
        "w2": 0.1 * jax.random.normal(ks[7], (d_ff, E), jnp.float32),
        "b2": 0.1 * jax.random.normal(ks[8], (1, E), jnp.float32),
        # LayerNorm affine params (perturbed from ones/zeros to exercise the
        # affine path).
        "g1": 1.0 + 0.1 * jax.random.normal(ks[9], (1, E), jnp.float32),
        "be1": jnp.zeros((1, E), jnp.float32),
        "g2": jnp.ones((1, E), jnp.float32),
        "be2": 0.05 * jnp.ones((1, E), jnp.float32),
    }


if __name__ == "__main__":
    # Lane-dense small shapes: seq, batch, embd, heads, d_ff.
    S, B, E, H, D_FF = 128, 2, 128, 4, 256

    key = jax.random.PRNGKey(0)
    k_src, k_par = jax.random.split(key)
    src = jax.random.normal(k_src, (S, B, E), jnp.float32)
    params = make_params(k_par, E, D_FF)

    out, attn_map = transformer_encoder_layer(src, params, num_heads=H)
    out = jax.block_until_ready(out)
    attn_map = jax.block_until_ready(attn_map)

    ref_out, ref_attn = reference_forward(src, params, num_heads=H)
    assert out.shape == (S, B, E) and attn_map.shape == (B, S, S)
    # bf16 MXU matmuls (f32 accumulation) -> slightly looser tolerance than f32.
    assert np.allclose(np.asarray(out), np.asarray(ref_out), rtol=2e-2, atol=2e-2)
    assert np.allclose(np.asarray(attn_map), np.asarray(ref_attn), rtol=2e-2, atol=2e-2)

    print("KERNEL_OK")
</pallas_src>

<mosaic_0001>
module attributes {stable_mosaic.version = 11 : i64} {
  func.func @_encoder_layer_kernel(%arg0: i32, %arg1: i32, %arg2: memref<1x128x128xf32, #tpu.memory_space<vmem>>, %arg3: memref<128x128xbf16, #tpu.memory_space<vmem>>, %arg4: memref<128x256xbf16, #tpu.memory_space<vmem>>, %arg5: memref<128x128xbf16, #tpu.memory_space<vmem>>, %arg6: memref<128x256xbf16, #tpu.memory_space<vmem>>, %arg7: memref<256x128xbf16, #tpu.memory_space<vmem>>, %arg8: memref<6x128xf32, #tpu.memory_space<vmem>>, %arg9: memref<1x256xf32, #tpu.memory_space<vmem>>, %arg10: memref<1x128x128xf32, #tpu.memory_space<vmem>>, %arg11: memref<1x128x128xf32, #tpu.memory_space<vmem>>) attributes {dimension_semantics = [#tpu.dimension_semantics<parallel>, #tpu.dimension_semantics<parallel>], iteration_bounds = array<i64: 2, 1>, scalar_prefetch = 0 : i64, scratch_operands = 0 : i64, tpu.core_type = #tpu.core_type<tc>, window_params = [{transform_indices = @transform_0, window_bounds = array<i64: 1, 128, 128>}, {pipeline_mode = #tpu.pipeline_mode<synchronous>, transform_indices = @transform_1, window_bounds = array<i64: 128, 128>}, {pipeline_mode = #tpu.pipeline_mode<synchronous>, transform_indices = @transform_2, window_bounds = array<i64: 128, 256>}, {pipeline_mode = #tpu.pipeline_mode<synchronous>, transform_indices = @transform_3, window_bounds = array<i64: 128, 128>}, {pipeline_mode = #tpu.pipeline_mode<synchronous>, transform_indices = @transform_4, window_bounds = array<i64: 128, 256>}, {pipeline_mode = #tpu.pipeline_mode<synchronous>, transform_indices = @transform_5, window_bounds = array<i64: 256, 128>}, {pipeline_mode = #tpu.pipeline_mode<synchronous>, transform_indices = @transform_6, window_bounds = array<i64: 6, 128>}, {pipeline_mode = #tpu.pipeline_mode<synchronous>, transform_indices = @transform_7, window_bounds = array<i64: 1, 256>}, {transform_indices = @transform_8, window_bounds = array<i64: 1, 128, 128>}, {transform_indices = @transform_9, window_bounds = array<i64: 1, 128, 128>}]} {
    %c0 = arith.constant 0 : index
    %c0_0 = arith.constant 0 : index
    %0 = vector.load %arg8[%c0, %c0_0] : memref<6x128xf32, #tpu.memory_space<vmem>>, vector<6x128xf32>
    %1 = vector.extract_strided_slice %0 {offsets = [0, 0], sizes = [1, 128], strides = [1, 1]} : vector<6x128xf32> to vector<1x128xf32>
    %2 = vector.extract_strided_slice %0 {offsets = [1, 0], sizes = [1, 128], strides = [1, 1]} : vector<6x128xf32> to vector<1x128xf32>
    %3 = vector.extract_strided_slice %0 {offsets = [2, 0], sizes = [1, 128], strides = [1, 1]} : vector<6x128xf32> to vector<1x128xf32>
    %4 = vector.extract_strided_slice %0 {offsets = [3, 0], sizes = [1, 128], strides = [1, 1]} : vector<6x128xf32> to vector<1x128xf32>
    %5 = vector.extract_strided_slice %0 {offsets = [4, 0], sizes = [1, 128], strides = [1, 1]} : vector<6x128xf32> to vector<1x128xf32>
    %6 = vector.extract_strided_slice %0 {offsets = [5, 0], sizes = [1, 128], strides = [1, 1]} : vector<6x128xf32> to vector<1x128xf32>
    %c0_1 = arith.constant 0 : index
    %c0_2 = arith.constant 0 : index
    %c0_3 = arith.constant 0 : index
    %7 = vector.load %arg2[%c0_1, %c0_2, %c0_3] : memref<1x128x128xf32, #tpu.memory_space<vmem>>, vector<1x128x128xf32>
    %8 = vector.shape_cast %7 : vector<1x128x128xf32> to vector<128x128xf32>
    %cst = arith.constant dense<0.000000e+00> : vector<128xf32>
    %9 = vector.multi_reduction <add>, %8, %cst [1] : vector<128x128xf32> to vector<128xf32>
    %10 = vector.shape_cast %9 : vector<128xf32> to vector<128x1xf32>
    %cst_4 = arith.constant 1.280000e+02 : f32
    %11 = vector.broadcast %cst_4 : f32 to vector<128x1xf32>
    %12 = arith.divf %10, %11 : vector<128x1xf32>
    %13 = vector.broadcast %12 : vector<128x1xf32> to vector<128x128xf32>
    %14 = arith.subf %8, %13 : vector<128x128xf32>
    %15 = arith.mulf %14, %14 : vector<128x128xf32>
    %cst_5 = arith.constant dense<0.000000e+00> : vector<128xf32>
    %16 = vector.multi_reduction <add>, %15, %cst_5 [1] : vector<128x128xf32> to vector<128xf32>
    %17 = vector.shape_cast %16 : vector<128xf32> to vector<128x1xf32>
    %cst_6 = arith.constant 1.280000e+02 : f32
    %18 = vector.broadcast %cst_6 : f32 to vector<128x1xf32>
    %19 = arith.divf %17, %18 : vector<128x1xf32>
    %cst_7 = arith.constant 9.99999974E-6 : f32
    %20 = vector.broadcast %cst_7 : f32 to vector<128x1xf32>
    %21 = arith.addf %19, %20 : vector<128x1xf32>
    %22 = math.rsqrt %21 : vector<128x1xf32>
    %23 = vector.broadcast %22 : vector<128x1xf32> to vector<128x128xf32>
    %24 = arith.mulf %14, %23 : vector<128x128xf32>
    %25 = vector.broadcast %1 : vector<1x128xf32> to vector<128x128xf32>
    %26 = arith.mulf %24, %25 : vector<128x128xf32>
    %27 = vector.broadcast %2 : vector<1x128xf32> to vector<128x128xf32>
    %28 = arith.addf %26, %27 : vector<128x128xf32>
    %29 = arith.truncf %28 : vector<128x128xf32> to vector<128x128xbf16>
    %c0_8 = arith.constant 0 : index
    %c0_9 = arith.constant 0 : index
    %30 = vector.load %arg3[%c0_8, %c0_9] : memref<128x128xbf16, #tpu.memory_space<vmem>>, vector<128x128xbf16>
    %cst_10 = arith.constant dense<0.000000e+00> : vector<128x128xf32>
    %31 = tpu.matmul %29, %30, %cst_10 {dimension_numbers = #tpu.dot_dimension_numbers<[1], [0], [0], [1], [0, 0, 1, 1], [], []>} : vector<128x128xbf16>, vector<128x128xbf16>, vector<128x128xf32> -> vector<128x128xf32>
    %32 = arith.truncf %28 : vector<128x128xf32> to vector<128x128xbf16>
    %c0_11 = arith.constant 0 : index
    %c0_12 = arith.constant 0 : index
    %33 = vector.load %arg4[%c0_11, %c0_12] : memref<128x256xbf16, #tpu.memory_space<vmem>>, vector<128x256xbf16>
    %cst_13 = arith.constant dense<0.000000e+00> : vector<128x256xf32>
    %34 = tpu.matmul %32, %33, %cst_13 {dimension_numbers = #tpu.dot_dimension_numbers<[1], [0], [0], [1], [0, 0, 1, 1], [], []>} : vector<128x128xbf16>, vector<128x256xbf16>, vector<128x256xf32> -> vector<128x256xf32>
    %35 = vector.extract_strided_slice %34 {offsets = [0, 0], sizes = [128, 128], strides = [1, 1]} : vector<128x256xf32> to vector<128x128xf32>
    %36 = vector.extract_strided_slice %34 {offsets = [0, 128], sizes = [128, 128], strides = [1, 1]} : vector<128x256xf32> to vector<128x128xf32>
    %37 = vector.extract_strided_slice %31 {offsets = [0, 0], sizes = [128, 32], strides = [1, 1]} : vector<128x128xf32> to vector<128x32xf32>
    %38 = vector.extract_strided_slice %31 {offsets = [0, 32], sizes = [128, 32], strides = [1, 1]} : vector<128x128xf32> to vector<128x32xf32>
    %39 = vector.extract_strided_slice %31 {offsets = [0, 64], sizes = [128, 32], strides = [1, 1]} : vector<128x128xf32> to vector<128x32xf32>
    %40 = vector.extract_strided_slice %31 {offsets = [0, 96], sizes = [128, 32], strides = [1, 1]} : vector<128x128xf32> to vector<128x32xf32>
    %41 = vector.shape_cast %37 : vector<128x32xf32> to vector<1x128x32xf32>
    %42 = vector.shape_cast %38 : vector<128x32xf32> to vector<1x128x32xf32>
    %43 = vector.shape_cast %39 : vector<128x32xf32> to vector<1x128x32xf32>
    %44 = vector.shape_cast %40 : vector<128x32xf32> to vector<1x128x32xf32>
    %45 = tpu.concatenate %41, %42, %43, %44 in 0 : vector<1x128x32xf32>, vector<1x128x32xf32>, vector<1x128x32xf32>, vector<1x128x32xf32> -> vector<4x128x32xf32>
    %46 = arith.truncf %45 : vector<4x128x32xf32> to vector<4x128x32xbf16>
    %47 = vector.extract_strided_slice %35 {offsets = [0, 0], sizes = [128, 32], strides = [1, 1]} : vector<128x128xf32> to vector<128x32xf32>
    %48 = vector.extract_strided_slice %35 {offsets = [0, 32], sizes = [128, 32], strides = [1, 1]} : vector<128x128xf32> to vector<128x32xf32>
    %49 = vector.extract_strided_slice %35 {offsets = [0, 64], sizes = [128, 32], strides = [1, 1]} : vector<128x128xf32> to vector<128x32xf32>
    %50 = vector.extract_strided_slice %35 {offsets = [0, 96], sizes = [128, 32], strides = [1, 1]} : vector<128x128xf32> to vector<128x32xf32>
    %51 = vector.shape_cast %47 : vector<128x32xf32> to vector<1x128x32xf32>
    %52 = vector.shape_cast %48 : vector<128x32xf32> to vector<1x128x32xf32>
    %53 = vector.shape_cast %49 : vector<128x32xf32> to vector<1x128x32xf32>
    %54 = vector.shape_cast %50 : vector<128x32xf32> to vector<1x128x32xf32>
    %55 = tpu.concatenate %51, %52, %53, %54 in 0 : vector<1x128x32xf32>, vector<1x128x32xf32>, vector<1x128x32xf32>, vector<1x128x32xf32> -> vector<4x128x32xf32>
    %56 = arith.truncf %55 : vector<4x128x32xf32> to vector<4x128x32xbf16>
    %57 = vector.extract_strided_slice %36 {offsets = [0, 0], sizes = [128, 32], strides = [1, 1]} : vector<128x128xf32> to vector<128x32xf32>
    %58 = vector.extract_strided_slice %36 {offsets = [0, 32], sizes = [128, 32], strides = [1, 1]} : vector<128x128xf32> to vector<128x32xf32>
    %59 = vector.extract_strided_slice %36 {offsets = [0, 64], sizes = [128, 32], strides = [1, 1]} : vector<128x128xf32> to vector<128x32xf32>
    %60 = vector.extract_strided_slice %36 {offsets = [0, 96], sizes = [128, 32], strides = [1, 1]} : vector<128x128xf32> to vector<128x32xf32>
    %61 = vector.shape_cast %57 : vector<128x32xf32> to vector<1x128x32xf32>
    %62 = vector.shape_cast %58 : vector<128x32xf32> to vector<1x128x32xf32>
    %63 = vector.shape_cast %59 : vector<128x32xf32> to vector<1x128x32xf32>
    %64 = vector.shape_cast %60 : vector<128x32xf32> to vector<1x128x32xf32>
    %65 = tpu.concatenate %61, %62, %63, %64 in 0 : vector<1x128x32xf32>, vector<1x128x32xf32>, vector<1x128x32xf32>, vector<1x128x32xf32> -> vector<4x128x32xf32>
    %66 = arith.truncf %65 : vector<4x128x32xf32> to vector<4x128x32xbf16>
    "tpu.trace_start"() <{level = 10 : i32, message = "hqd,hkd->hqk"}> : () -> ()
    %cst_14 = arith.constant dense<0.000000e+00> : vector<4x128x128xf32>
    %67 = tpu.matmul %46, %56, %cst_14 {dimension_numbers = #tpu.dot_dimension_numbers<[2], [2], [1], [1], [0, 0, 0, 1, 1, 1], [0], [0]>} : vector<4x128x32xbf16>, vector<4x128x32xbf16>, vector<4x128x128xf32> -> vector<4x128x128xf32>
    "tpu.trace_stop"() : () -> ()
    %cst_15 = arith.constant dense<0xFF800000> : vector<4x128xf32>
    %68 = vector.multi_reduction <maximumf>, %67, %cst_15 [2] : vector<4x128x128xf32> to vector<4x128xf32>
    %69 = vector.shape_cast %68 : vector<4x128xf32> to vector<4x128x1xf32>
    %70 = vector.broadcast %69 : vector<4x128x1xf32> to vector<4x128x128xf32>
    %71 = arith.subf %67, %70 : vector<4x128x128xf32>
    %72 = math.exp %71 : vector<4x128x128xf32>
    %cst_16 = arith.constant dense<0.000000e+00> : vector<4x128xf32>
    %73 = vector.multi_reduction <add>, %72, %cst_16 [2] : vector<4x128x128xf32> to vector<4x128xf32>
    %74 = vector.shape_cast %73 : vector<4x128xf32> to vector<4x128x1xf32>
    %75 = tpu.reciprocal %74 {approx = true} : vector<4x128x1xf32> -> vector<4x128x1xf32>
    %76 = vector.broadcast %75 : vector<4x128x1xf32> to vector<4x128x128xf32>
    %77 = arith.mulf %72, %76 : vector<4x128x128xf32>
    %78 = vector.extract_strided_slice %77 {offsets = [0, 0, 0], sizes = [1, 128, 128], strides = [1, 1, 1]} : vector<4x128x128xf32> to vector<1x128x128xf32>
    %79 = vector.shape_cast %78 : vector<1x128x128xf32> to vector<128x128xf32>
    %c0_17 = arith.constant 0 : index
    %c0_18 = arith.constant 0 : index
    %c0_19 = arith.constant 0 : index
    %80 = vector.load %arg11[%c0_17, %c0_18, %c0_19] : memref<1x128x128xf32, #tpu.memory_space<vmem>>, vector<1x128x128xf32>
    %81 = vector.shape_cast %80 : vector<1x128x128xf32> to vector<128x128xf32>
    %82 = vector.shape_cast %79 : vector<128x128xf32> to vector<1x128x128xf32>
    tpu.vector_store %arg11[%c0_17, %c0_18, %c0_19], %82 {strides = array<i32>} : memref<1x128x128xf32, #tpu.memory_space<vmem>>, vector<1x128x128xf32>,
    %83 = arith.truncf %77 : vector<4x128x128xf32> to vector<4x128x128xbf16>
    "tpu.trace_start"() <{level = 10 : i32, message = "hqk,hkd->hqd"}> : () -> ()
    %cst_20 = arith.constant dense<0.000000e+00> : vector<4x128x32xf32>
    %84 = tpu.matmul %83, %66, %cst_20 {dimension_numbers = #tpu.dot_dimension_numbers<[2], [1], [1], [2], [0, 0, 0, 1, 1, 2], [0], [0]>} : vector<4x128x128xbf16>, vector<4x128x32xbf16>, vector<4x128x32xf32> -> vector<4x128x32xf32>
    "tpu.trace_stop"() : () -> ()
    %85 = vector.extract_strided_slice %84 {offsets = [0, 0, 0], sizes = [1, 128, 32], strides = [1, 1, 1]} : vector<4x128x32xf32> to vector<1x128x32xf32>
    %86 = vector.shape_cast %85 : vector<1x128x32xf32> to vector<128x32xf32>
    %87 = vector.extract_strided_slice %84 {offsets = [1, 0, 0], sizes = [1, 128, 32], strides = [1, 1, 1]} : vector<4x128x32xf32> to vector<1x128x32xf32>
    %88 = vector.shape_cast %87 : vector<1x128x32xf32> to vector<128x32xf32>
    %89 = vector.extract_strided_slice %84 {offsets = [2, 0, 0], sizes = [1, 128, 32], strides = [1, 1, 1]} : vector<4x128x32xf32> to vector<1x128x32xf32>
    %90 = vector.shape_cast %89 : vector<1x128x32xf32> to vector<128x32xf32>
    %91 = vector.extract_strided_slice %84 {offsets = [3, 0, 0], sizes = [1, 128, 32], strides = [1, 1, 1]} : vector<4x128x32xf32> to vector<1x128x32xf32>
    %92 = vector.shape_cast %91 : vector<1x128x32xf32> to vector<128x32xf32>
    %93 = tpu.concatenate %86, %88, %90, %92 in 1 : vector<128x32xf32>, vector<128x32xf32>, vector<128x32xf32>, vector<128x32xf32> -> vector<128x128xf32>
    %94 = arith.truncf %93 : vector<128x128xf32> to vector<128x128xbf16>
    %c0_21 = arith.constant 0 : index
    %c0_22 = arith.constant 0 : index
    %95 = vector.load %arg5[%c0_21, %c0_22] : memref<128x128xbf16, #tpu.memory_space<vmem>>, vector<128x128xbf16>
    %cst_23 = arith.constant dense<0.000000e+00> : vector<128x128xf32>
    %96 = tpu.matmul %94, %95, %cst_23 {dimension_numbers = #tpu.dot_dimension_numbers<[1], [0], [0], [1], [0, 0, 1, 1], [], []>} : vector<128x128xbf16>, vector<128x128xbf16>, vector<128x128xf32> -> vector<128x128xf32>
    %97 = vector.broadcast %5 : vector<1x128xf32> to vector<128x128xf32>
    %98 = arith.addf %96, %97 : vector<128x128xf32>
    %99 = arith.addf %8, %98 : vector<128x128xf32>
    %cst_24 = arith.constant dense<0.000000e+00> : vector<128xf32>
    %100 = vector.multi_reduction <add>, %99, %cst_24 [1] : vector<128x128xf32> to vector<128xf32>
    %101 = vector.shape_cast %100 : vector<128xf32> to vector<128x1xf32>
    %cst_25 = arith.constant 1.280000e+02 : f32
    %102 = vector.broadcast %cst_25 : f32 to vector<128x1xf32>
    %103 = arith.divf %101, %102 : vector<128x1xf32>
    %104 = vector.broadcast %103 : vector<128x1xf32> to vector<128x128xf32>
    %105 = arith.subf %99, %104 : vector<128x128xf32>
    %106 = arith.mulf %105, %105 : vector<128x128xf32>
    %cst_26 = arith.constant dense<0.000000e+00> : vector<128xf32>
    %107 = vector.multi_reduction <add>, %106, %cst_26 [1] : vector<128x128xf32> to vector<128xf32>
    %108 = vector.shape_cast %107 : vector<128xf32> to vector<128x1xf32>
    %cst_27 = arith.constant 1.280000e+02 : f32
    %109 = vector.broadcast %cst_27 : f32 to vector<128x1xf32>
    %110 = arith.divf %108, %109 : vector<128x1xf32>
    %cst_28 = arith.constant 9.99999974E-6 : f32
    %111 = vector.broadcast %cst_28 : f32 to vector<128x1xf32>
    %112 = arith.addf %110, %111 : vector<128x1xf32>
    %113 = math.rsqrt %112 : vector<128x1xf32>
    %114 = vector.broadcast %113 : vector<128x1xf32> to vector<128x128xf32>
    %115 = arith.mulf %105, %114 : vector<128x128xf32>
    %116 = vector.broadcast %3 : vector<1x128xf32> to vector<128x128xf32>
    %117 = arith.mulf %115, %116 : vector<128x128xf32>
    %118 = vector.broadcast %4 : vector<1x128xf32> to vector<128x128xf32>
    %119 = arith.addf %117, %118 : vector<128x128xf32>
    %120 = arith.truncf %119 : vector<128x128xf32> to vector<128x128xbf16>
    %c0_29 = arith.constant 0 : index
    %c0_30 = arith.constant 0 : index
    %121 = vector.load %arg6[%c0_29, %c0_30] : memref<128x256xbf16, #tpu.memory_space<vmem>>, vector<128x256xbf16>
    %cst_31 = arith.constant dense<0.000000e+00> : vector<128x256xf32>
    %122 = tpu.matmul %120, %121, %cst_31 {dimension_numbers = #tpu.dot_dimension_numbers<[1], [0], [0], [1], [0, 0, 1, 1], [], []>} : vector<128x128xbf16>, vector<128x256xbf16>, vector<128x256xf32> -> vector<128x256xf32>
    %c0_32 = arith.constant 0 : index
    %c0_33 = arith.constant 0 : index
    %123 = vector.load %arg9[%c0_32, %c0_33] : memref<1x256xf32, #tpu.memory_space<vmem>>, vector<1x256xf32>
    %124 = vector.broadcast %123 : vector<1x256xf32> to vector<128x256xf32>
    %125 = arith.addf %122, %124 : vector<128x256xf32>
    %cst_34 = arith.constant 0.000000e+00 : f32
    %126 = vector.broadcast %cst_34 : f32 to vector<128x256xf32>
    %127 = arith.maximumf %125, %126 : vector<128x256xf32>
    %128 = arith.truncf %127 : vector<128x256xf32> to vector<128x256xbf16>
    %c0_35 = arith.constant 0 : index
    %c0_36 = arith.constant 0 : index
    %129 = vector.load %arg7[%c0_35, %c0_36] : memref<256x128xbf16, #tpu.memory_space<vmem>>, vector<256x128xbf16>
    %cst_37 = arith.constant dense<0.000000e+00> : vector<128x128xf32>
    %130 = tpu.matmul %128, %129, %cst_37 {dimension_numbers = #tpu.dot_dimension_numbers<[1], [0], [0], [1], [0, 0, 1, 1], [], []>} : vector<128x256xbf16>, vector<256x128xbf16>, vector<128x128xf32> -> vector<128x128xf32>
    %131 = vector.broadcast %6 : vector<1x128xf32> to vector<128x128xf32>
    %132 = arith.addf %130, %131 : vector<128x128xf32>
    %133 = arith.addf %99, %132 : vector<128x128xf32>
    %c0_38 = arith.constant 0 : index
    %c0_39 = arith.constant 0 : index
    %c0_40 = arith.constant 0 : index
    %134 = vector.load %arg10[%c0_38, %c0_39, %c0_40] : memref<1x128x128xf32, #tpu.memory_space<vmem>>, vector<1x128x128xf32>
    %135 = vector.shape_cast %134 : vector<1x128x128xf32> to vector<128x128xf32>
    %136 = vector.shape_cast %133 : vector<128x128xf32> to vector<1x128x128xf32>
    tpu.vector_store %arg10[%c0_38, %c0_39, %c0_40], %136 {strides = array<i32>} : memref<1x128x128xf32, #tpu.memory_space<vmem>>, vector<1x128x128xf32>,
    return
  }
  func.func @transform_0(%arg0: i32, %arg1: i32) -> (i32, i32, i32) {
    %c0_i32 = arith.constant 0 : i32
    %c0_i32_0 = arith.constant 0 : i32
    %c0_i32_1 = arith.constant 0 : i32
    return %arg0, %c0_i32, %c0_i32_0 : i32, i32, i32
  }
  func.func @transform_1(%arg0: i32, %arg1: i32) -> (i32, i32) {
    %c0_i32 = arith.constant 0 : i32
    %c0_i32_0 = arith.constant 0 : i32
    %c0_i32_1 = arith.constant 0 : i32
    return %c0_i32, %c0_i32_0 : i32, i32
  }
  func.func @transform_2(%arg0: i32, %arg1: i32) -> (i32, i32) {
    %c0_i32 = arith.constant 0 : i32
    %c0_i32_0 = arith.constant 0 : i32
    %c0_i32_1 = arith.constant 0 : i32
    return %c0_i32, %c0_i32_0 : i32, i32
  }
  func.func @transform_3(%arg0: i32, %arg1: i32) -> (i32, i32) {
    %c0_i32 = arith.constant 0 : i32
    %c0_i32_0 = arith.constant 0 : i32
    %c0_i32_1 = arith.constant 0 : i32
    return %c0_i32, %c0_i32_0 : i32, i32
  }
  func.func @transform_4(%arg0: i32, %arg1: i32) -> (i32, i32) {
    %c0_i32 = arith.constant 0 : i32
    %c0_i32_0 = arith.constant 0 : i32
    %c0_i32_1 = arith.constant 0 : i32
    return %c0_i32, %c0_i32_0 : i32, i32
  }
  func.func @transform_5(%arg0: i32, %arg1: i32) -> (i32, i32) {
    %c0_i32 = arith.constant 0 : i32
    %c0_i32_0 = arith.constant 0 : i32
    %c0_i32_1 = arith.constant 0 : i32
    return %c0_i32, %c0_i32_0 : i32, i32
  }
  func.func @transform_6(%arg0: i32, %arg1: i32) -> (i32, i32) {
    %c0_i32 = arith.constant 0 : i32
    %c0_i32_0 = arith.constant 0 : i32
    %c0_i32_1 = arith.constant 0 : i32
    return %c0_i32, %c0_i32_0 : i32, i32
  }
  func.func @transform_7(%arg0: i32, %arg1: i32) -> (i32, i32) {
    %c0_i32 = arith.constant 0 : i32
    %c0_i32_0 = arith.constant 0 : i32
    %c0_i32_1 = arith.constant 0 : i32
    return %c0_i32, %c0_i32_0 : i32, i32
  }
  func.func @transform_8(%arg0: i32, %arg1: i32) -> (i32, i32, i32) {
    %c0_i32 = arith.constant 0 : i32
    %c0_i32_0 = arith.constant 0 : i32
    return %arg0, %arg1, %c0_i32 : i32, i32, i32
  }
  func.func @transform_9(%arg0: i32, %arg1: i32) -> (i32, i32, i32) {
    %c0_i32 = arith.constant 0 : i32
    %c0_i32_0 = arith.constant 0 : i32
    return %arg0, %arg1, %c0_i32 : i32, i32, i32
  }
}

</mosaic_0001>

<llo_original>
// kernel: tpu_custom_call.1
$region0: #{tpu_custom_call.1}
  #allocation0 [shape = 'u32[]', space=smem, size = 0x4, offset = 0x4, fixed_abs, tag = 'smem constant byte address 0x4 - core index']
  #allocation1 [shape = 'u32[72,128]{1,0:T(1,128)}', space=vmem, size = 0x9000, scoped, tag = 'internal scratch']
  %s0 = inlined_call_operand.hbm [shape: f32[2,128,128], index: 0, kind: input, shape index: {}]
  %s1 = inlined_call_operand.hbm [shape: bf16[128,128], index: 1, kind: input, shape index: {}]
  %s2 = inlined_call_operand.hbm [shape: bf16[128,256], index: 2, kind: input, shape index: {}]
  %s3 = inlined_call_operand.hbm [shape: bf16[128,128], index: 3, kind: input, shape index: {}]
  %s4 = inlined_call_operand.hbm [shape: bf16[128,256], index: 4, kind: input, shape index: {}]
  %s5 = inlined_call_operand.hbm [shape: bf16[256,128], index: 5, kind: input, shape index: {}]
  %s6 = inlined_call_operand.hbm [shape: f32[6,128], index: 6, kind: input, shape index: {}]
  %s7 = inlined_call_operand.vmem [shape: f32[1,256], index: 7, kind: input, shape index: {}]
  %s8 = inlined_call_operand.hbm [shape: f32[2,128,128], index: 8, kind: output, shape index: {0}]
  %s9 = inlined_call_operand.hbm [shape: f32[2,128,128], index: 9, kind: output, shape index: {1}]
  %10 = xla_tuple %s8, %s9
  %s11 = sld [smem:[#allocation0]]
  $region101: #{tpu_custom_call.1} parent=0
    _
  %s13 = ssub.s32 1, %s11
  %s14 = scalar_select 0, %s13, %s11
  $region1: #{tpu_custom_call.1} parent=0
    #allocation2 [shape = 'u8[131072]{0}', space=vmem, size = 0x20000, scoped, tag = 'input window, operand 0']
    #allocation3 [shape = 's32[2]{0}', space=sflag, size = 0x8, scoped, tag = 'scoped memory for tpu_custom_call.1']
    #allocation4 [shape = 's32[2]{0}', space=sflag, size = 0x8, scoped, tag = 'scoped memory for tpu_custom_call.1']
    #allocation5 [shape = 'u8[32768]{0}', space=vmem, size = 0x8000, scoped, tag = 'input window, operand 1, single buffered']
    #allocation6 [shape = 's32[1]{0}', space=sflag, size = 0x4, scoped, tag = 'scoped memory for tpu_custom_call.1']
    #allocation7 [shape = 'u8[65536]{0}', space=vmem, size = 0x10000, scoped, tag = 'input window, operand 2, single buffered']
    #allocation8 [shape = 'u8[32768]{0}', space=vmem, size = 0x8000, scoped, tag = 'input window, operand 3, single buffered']
    #allocation9 [shape = 's32[1]{0}', space=sflag, size = 0x4, scoped, tag = 'scoped memory for tpu_custom_call.1']
    #allocation10 [shape = 'u8[65536]{0}', space=vmem, size = 0x10000, scoped, tag = 'input window, operand 4, single buffered']
    #allocation11 [shape = 'u8[65536]{0}', space=vmem, size = 0x10000, scoped, tag = 'input window, operand 5, single buffered']
    #allocation12 [shape = 's32[1]{0}', space=sflag, size = 0x4, scoped, tag = 'scoped memory for tpu_custom_call.1']
    #allocation13 [shape = 'u8[4096]{0}', space=vmem, size = 0x1000, scoped, tag = 'input window, operand 6, single buffered']
    #allocation14 [shape = 'u8[131072]{0}', space=vmem, size = 0x20000, scoped, tag = 'output window, operand 0']
    #allocation15 [shape = 'u8[131072]{0}', space=vmem, size = 0x20000, scoped, tag = 'output window, operand 1']
    #allocation16 [shape = 's32[2]{0}', space=sflag, size = 0x8, scoped, tag = 'scoped memory for tpu_custom_call.1']
    %15 = vsyncpa [#allocation3], 0
    %s16 = scalar_lea.sflag [#allocation3], 1
    %17 = vsyncpa %s16, 0
    %18 = vsyncpa [#allocation6], 0
    %19 = vsyncpa [#allocation9], 0
    %20 = vsyncpa [#allocation12], 0
    %21 = vsyncpa [#allocation4], 0
    %s22 = scalar_lea.sflag [#allocation4], 1
    %23 = vsyncpa %s22, 0
    %24 = vsyncpa [#allocation16], 0
    %s25 = scalar_lea.sflag [#allocation16], 1
    %26 = vsyncpa %s25, 0
    loop: start=0, step=1, limit=4
    $region2: #{tpu_custom_call.1} parent=1 // loop_pre_header
      _
    $region3: #{tpu_custom_call.1} parent=1 // loop_header
      %s28 = sphi 0, %s32
      %p29 = scmp.ge.s32.totalorder %s28, 4
      %s35 = sphi 0, %s47
      %s36 = sphi 0, %s43
      %s37 = sphi 0, %s35
      %s38 = sphi 0, %s36
      %s39 = sphi 0, %s37
      %s40 = sphi 0, %s38
      %s50 = sphi 0, %s52
      %s53 = sphi 0, %s50
      %s54 = sphi 0, %s53
      %s70 = sphi 0, %s54
      %s74 = sphi 0, %s74
      %s76 = sphi 0, %s74
      %s77 = sphi 0, %s76
      %s91 = sphi 0, %s77
      %s95 = sphi 0, %s95
      %s97 = sphi 0, %s95
      %s98 = sphi 0, %s97
      %s112 = sphi 0, %s98
      %s116 = sphi 0, %s116
      %s118 = sphi 0, %s116
      %s119 = sphi 0, %s118
      %s133 = sphi 0, %s119
      %s137 = sphi 0, %s137
      %s139 = sphi 0, %s137
      %s140 = sphi 0, %s139
      %s154 = sphi 0, %s140
      %s158 = sphi 0, %s158
      %s160 = sphi 0, %s158
      %s161 = sphi 0, %s160
      %s175 = sphi 0, %s161
      %s179 = sphi 0, %s179
      %s181 = sphi 0, %s179
      %s182 = sphi 0, %s181
      %s196 = sphi 0, %s182
      %s200 = sphi 0, %s200
      %s202 = sphi 0, %s200
      %s203 = sphi 0, %s202
      %s217 = sphi 0, %s203
      %s225 = sphi 0, %s227
      %s228 = sphi 0, %s225
      %s229 = sphi 0, %s228
      %s245 = sphi 0, %s229
      %s253 = sphi 0, %s255
      %s256 = sphi 0, %s253
      %s257 = sphi 0, %s256
      %s273 = sphi 0, %s257
    $region4: #{tpu_custom_call.1} parent=1 // loop_header_branch
      %31 = sbr.rel (%p29) target = $region8
    $region5: #{tpu_custom_call.1} parent=1 // loop_body
      %s33 = ssub.s32 %s28, 1
      %s34 = ssub.s32 %s28, 2
      %s41 = sadd.s32 1, %s36
      %p42 = scmp.ge.s32.totalorder %s41, 1
      %s43 = scalar_select %p42, 0, %s41
      %s44 = sadd.s32 1, %s35
      %s45 = scalar_select %p42, %s44, %s35
      %p46 = scmp.ge.s32.totalorder %s45, 2
      %s47 = scalar_select %p46, 0, %s45
      %s48 = ssub.s32 %s35, %s47
      %p49 = scmp.eq.s32.totalorder %s48, 0
      %s51 = sadd.s32 %s50, 1
      %s52 = scalar_select %p49, %s50, %s51
      %p55 = pneg %p49
      %p56 = scmp.eq.s32.totalorder %s28, 1
      %p57 = por %p55, %p56
      %p58 = scmp.ne.s32.totalorder %s50, %s53
      %p59 = scmp.eq.s32.totalorder %s28, 0
      %p60 = por %p58, %p59
      %p61 = scmp.ne.s32.totalorder %s50, %s53
      %p62 = scmp.eq.s32.totalorder %s33, 1
      %p63 = por %p61, %p62
      %p64 = scmp.ne.s32.totalorder %s53, %s54
      %p65 = scmp.eq.s32.totalorder %s33, 0
      %p66 = por %p64, %p65
      %p67 = scmp.ne.s32.totalorder %s53, %s54
      %p68 = scmp.eq.s32.totalorder %s34, 1
      %p69 = por %p67, %p68
      %p71 = scmp.ne.s32.totalorder %s54, %s70
      %p72 = scmp.eq.s32.totalorder %s34, 0
      %p73 = por %p71, %p72
      %s75 = sadd.s32 %s74, 1
      %p78 = scmp.eq.s32.totalorder %s28, 1
      %p79 = scmp.ne.s32.totalorder %s74, %s76
      %p80 = scmp.eq.s32.totalorder %s28, 0
      %p81 = por %p79, %p80
      %p82 = scmp.ne.s32.totalorder %s74, %s76
      %p83 = scmp.eq.s32.totalorder %s33, 1
      %p84 = por %p82, %p83
      %p85 = scmp.ne.s32.totalorder %s76, %s77
      %p86 = scmp.eq.s32.totalorder %s33, 0
      %p87 = por %p85, %p86
      %p88 = scmp.ne.s32.totalorder %s76, %s77
      %p89 = scmp.eq.s32.totalorder %s34, 1
      %p90 = por %p88, %p89
      %p92 = scmp.ne.s32.totalorder %s77, %s91
      %p93 = scmp.eq.s32.totalorder %s34, 0
      %p94 = por %p92, %p93
      %s96 = sadd.s32 %s95, 1
      %p99 = scmp.eq.s32.totalorder %s28, 1
      %p100 = scmp.ne.s32.totalorder %s95, %s97
      %p101 = scmp.eq.s32.totalorder %s28, 0
      %p102 = por %p100, %p101
      %p103 = scmp.ne.s32.totalorder %s95, %s97
      %p104 = scmp.eq.s32.totalorder %s33, 1
      %p105 = por %p103, %p104
      %p106 = scmp.ne.s32.totalorder %s97, %s98
      %p107 = scmp.eq.s32.totalorder %s33, 0
      %p108 = por %p106, %p107
      %p109 = scmp.ne.s32.totalorder %s97, %s98
      %p110 = scmp.eq.s32.totalorder %s34, 1
      %p111 = por %p109, %p110
      %p113 = scmp.ne.s32.totalorder %s98, %s112
      %p114 = scmp.eq.s32.totalorder %s34, 0
      %p115 = por %p113, %p114
      %s117 = sadd.s32 %s116, 1
      %p120 = scmp.eq.s32.totalorder %s28, 1
      %p121 = scmp.ne.s32.totalorder %s116, %s118
      %p122 = scmp.eq.s32.totalorder %s28, 0
      %p123 = por %p121, %p122
      %p124 = scmp.ne.s32.totalorder %s116, %s118
      %p125 = scmp.eq.s32.totalorder %s33, 1
      %p126 = por %p124, %p125
      %p127 = scmp.ne.s32.totalorder %s118, %s119
      %p128 = scmp.eq.s32.totalorder %s33, 0
      %p129 = por %p127, %p128
      %p130 = scmp.ne.s32.totalorder %s118, %s119
      %p131 = scmp.eq.s32.totalorder %s34, 1
      %p132 = por %p130, %p131
      %p134 = scmp.ne.s32.totalorder %s119, %s133
      %p135 = scmp.eq.s32.totalorder %s34, 0
      %p136 = por %p134, %p135
      %s138 = sadd.s32 %s137, 1
      %p141 = scmp.eq.s32.totalorder %s28, 1
      %p142 = scmp.ne.s32.totalorder %s137, %s139
      %p143 = scmp.eq.s32.totalorder %s28, 0
      %p144 = por %p142, %p143
      %p145 = scmp.ne.s32.totalorder %s137, %s139
      %p146 = scmp.eq.s32.totalorder %s33, 1
      %p147 = por %p145, %p146
      %p148 = scmp.ne.s32.totalorder %s139, %s140
      %p149 = scmp.eq.s32.totalorder %s33, 0
      %p150 = por %p148, %p149
      %p151 = scmp.ne.s32.totalorder %s139, %s140
      %p152 = scmp.eq.s32.totalorder %s34, 1
      %p153 = por %p151, %p152
      %p155 = scmp.ne.s32.totalorder %s140, %s154
      %p156 = scmp.eq.s32.totalorder %s34, 0
      %p157 = por %p155, %p156
      %s159 = sadd.s32 %s158, 1
      %p162 = scmp.eq.s32.totalorder %s28, 1
      %p163 = scmp.ne.s32.totalorder %s158, %s160
      %p164 = scmp.eq.s32.totalorder %s28, 0
      %p165 = por %p163, %p164
      %p166 = scmp.ne.s32.totalorder %s158, %s160
      %p167 = scmp.eq.s32.totalorder %s33, 1
      %p168 = por %p166, %p167
      %p169 = scmp.ne.s32.totalorder %s160, %s161
      %p170 = scmp.eq.s32.totalorder %s33, 0
      %p171 = por %p169, %p170
      %p172 = scmp.ne.s32.totalorder %s160, %s161
      %p173 = scmp.eq.s32.totalorder %s34, 1
      %p174 = por %p172, %p173
      %p176 = scmp.ne.s32.totalorder %s161, %s175
      %p177 = scmp.eq.s32.totalorder %s34, 0
      %p178 = por %p176, %p177
      %s180 = sadd.s32 %s179, 1
      %p183 = scmp.eq.s32.totalorder %s28, 1
      %p184 = scmp.ne.s32.totalorder %s179, %s181
      %p185 = scmp.eq.s32.totalorder %s28, 0
      %p186 = por %p184, %p185
      %p187 = scmp.ne.s32.totalorder %s179, %s181
      %p188 = scmp.eq.s32.totalorder %s33, 1
      %p189 = por %p187, %p188
      %p190 = scmp.ne.s32.totalorder %s181, %s182
      %p191 = scmp.eq.s32.totalorder %s33, 0
      %p192 = por %p190, %p191
      %p193 = scmp.ne.s32.totalorder %s181, %s182
      %p194 = scmp.eq.s32.totalorder %s34, 1
      %p195 = por %p193, %p194
      %p197 = scmp.ne.s32.totalorder %s182, %s196
      %p198 = scmp.eq.s32.totalorder %s34, 0
      %p199 = por %p197, %p198
      %s201 = sadd.s32 %s200, 1
      %p204 = scmp.eq.s32.totalorder %s28, 1
      %p205 = scmp.ne.s32.totalorder %s200, %s202
      %p206 = scmp.eq.s32.totalorder %s28, 0
      %p207 = por %p205, %p206
      %p208 = scmp.ne.s32.totalorder %s200, %s202
      %p209 = scmp.eq.s32.totalorder %s33, 1
      %p210 = por %p208, %p209
      %p211 = scmp.ne.s32.totalorder %s202, %s203
      %p212 = scmp.eq.s32.totalorder %s33, 0
      %p213 = por %p211, %p212
      %p214 = scmp.ne.s32.totalorder %s202, %s203
      %p215 = scmp.eq.s32.totalorder %s34, 1
      %p216 = por %p214, %p215
      %p218 = scmp.ne.s32.totalorder %s203, %s217
      %p219 = scmp.eq.s32.totalorder %s34, 0
      %p220 = por %p218, %p219
      %s221 = ssub.s32 %s35, %s47
      %s222 = ssub.s32 %s36, %s43
      %s223 = sor.u32 %s221, %s222
      %p224 = scmp.eq.s32.totalorder %s223, 0
      %s226 = sadd.s32 %s225, 1
      %s227 = scalar_select %p224, %s225, %s226
      %p230 = pneg %p224
      %p231 = scmp.eq.s32.totalorder %s28, 1
      %p232 = por %p230, %p231
      %p233 = scmp.ne.s32.totalorder %s225, %s228
      %p234 = scmp.eq.s32.totalorder %s28, 0
      %p235 = por %p233, %p234
      %p236 = scmp.ne.s32.totalorder %s225, %s228
      %p237 = scmp.eq.s32.totalorder %s33, 1
      %p238 = por %p236, %p237
      %p239 = scmp.ne.s32.totalorder %s228, %s229
      %p240 = scmp.eq.s32.totalorder %s33, 0
      %p241 = por %p239, %p240
      %p242 = scmp.ne.s32.totalorder %s228, %s229
      %p243 = scmp.eq.s32.totalorder %s34, 1
      %p244 = por %p242, %p243
      %p246 = scmp.ne.s32.totalorder %s229, %s245
      %p247 = scmp.eq.s32.totalorder %s34, 0
      %p248 = por %p246, %p247
      %s249 = ssub.s32 %s35, %s47
      %s250 = ssub.s32 %s36, %s43
      %s251 = sor.u32 %s249, %s250
      %p252 = scmp.eq.s32.totalorder %s251, 0
      %s254 = sadd.s32 %s253, 1
      %s255 = scalar_select %p252, %s253, %s254
      %p258 = pneg %p252
      %p259 = scmp.eq.s32.totalorder %s28, 1
      %p260 = por %p258, %p259
      %p261 = scmp.ne.s32.totalorder %s253, %s256
      %p262 = scmp.eq.s32.totalorder %s28, 0
      %p263 = por %p261, %p262
      %p264 = scmp.ne.s32.totalorder %s253, %s256
      %p265 = scmp.eq.s32.totalorder %s33, 1
      %p266 = por %p264, %p265
      %p267 = scmp.ne.s32.totalorder %s256, %s257
      %p268 = scmp.eq.s32.totalorder %s33, 0
      %p269 = por %p267, %p268
      %p270 = scmp.ne.s32.totalorder %s256, %s257
      %p271 = scmp.eq.s32.totalorder %s34, 1
      %p272 = por %p270, %p271
      %p274 = scmp.ne.s32.totalorder %s257, %s273
      %p275 = scmp.eq.s32.totalorder %s34, 0
      %p276 = por %p274, %p275
      %p277 = scmp.le.s32.totalorder 1, %s28
      %p278 = scmp.lt.s32.totalorder %s28, 3
      %p279 = pnand %p277, %p278
      %p280 = pneg %p279
      // Predicated region
      $region9: #{tpu_custom_call.1} parent=5 // pred_check
        _
      $region10: #{tpu_custom_call.1} parent=5 // pred_check_branch
        %282 = sbr.rel (%p279) target = $region12
      $region11: #{tpu_custom_call.1} parent=5 // pred_region
        %s283 = ssub.s32 %s28, 1
        // Predicated region
        $region13: #{tpu_custom_call.1} parent=11 // pred_check
          %p284 = pneg %p87
        $region14: #{tpu_custom_call.1} parent=11 // pred_check_branch
          %286 = sbr.rel (%p284) target = $region16
        $region15: #{tpu_custom_call.1} parent=11 // pred_region
          %288 = vsyncadd [#allocation6], 0
          %s289 = sshll.u32 %s1, 4
          %s290 = int_to_ptr.hbm [resolvable:$true] %s289
          %s291 = sshll.u32 [#allocation5], 4
          %s292 = int_to_ptr.vmem [resolvable:$true] %s291
          %297 = dma.hbm_to_vmem [thread:$0]  %s290, 1024, %s292, [#allocation6], 64, 64, 4
        $region16: #{tpu_custom_call.1} parent=11 // pred_fallthru
          _
        // Predicated region
        $region17: #{tpu_custom_call.1} parent=11 // pred_check
          %p298 = pneg %p108
        $region18: #{tpu_custom_call.1} parent=11 // pred_check_branch
          %300 = sbr.rel (%p298) target = $region20
        $region19: #{tpu_custom_call.1} parent=11 // pred_region
          %302 = vsyncadd [#allocation6], 0
          %s303 = sshll.u32 %s2, 4
          %s304 = int_to_ptr.hbm [resolvable:$true] %s303
          %s305 = sshll.u32 [#allocation7], 4
          %s306 = int_to_ptr.vmem [resolvable:$true] %s305
          %311 = dma.hbm_to_vmem [thread:$0]  %s304, 2048, %s306, [#allocation6], 128, 128, 8
        $region20: #{tpu_custom_call.1} parent=11 // pred_fallthru
          _
        // Predicated region
        $region21: #{tpu_custom_call.1} parent=11 // pred_check
          %p312 = pneg %p129
        $region22: #{tpu_custom_call.1} parent=11 // pred_check_branch
          %314 = sbr.rel (%p312) target = $region24
        $region23: #{tpu_custom_call.1} parent=11 // pred_region
          %316 = vsyncadd [#allocation9], 0
          %s317 = sshll.u32 %s3, 4
          %s318 = int_to_ptr.hbm [resolvable:$true] %s317
          %s319 = sshll.u32 [#allocation8], 4
          %s320 = int_to_ptr.vmem [resolvable:$true] %s319
          %325 = dma.hbm_to_vmem [thread:$0]  %s318, 1024, %s320, [#allocation9], 64, 64, 4
        $region24: #{tpu_custom_call.1} parent=11 // pred_fallthru
          _
        // Predicated region
        $region25: #{tpu_custom_call.1} parent=11 // pred_check
          %p326 = pneg %p150
        $region26: #{tpu_custom_call.1} parent=11 // pred_check_branch
          %328 = sbr.rel (%p326) target = $region28
        $region27: #{tpu_custom_call.1} parent=11 // pred_region
          %330 = vsyncadd [#allocation9], 0
          %s331 = sshll.u32 %s4, 4
          %s332 = int_to_ptr.hbm [resolvable:$true] %s331
          %s333 = sshll.u32 [#allocation10], 4
          %s334 = int_to_ptr.vmem [resolvable:$true] %s333
          %339 = dma.hbm_to_vmem [thread:$0]  %s332, 2048, %s334, [#allocation9], 128, 128, 8
        $region28: #{tpu_custom_call.1} parent=11 // pred_fallthru
          _
        // Predicated region
        $region29: #{tpu_custom_call.1} parent=11 // pred_check
          %p340 = pneg %p171
        $region30: #{tpu_custom_call.1} parent=11 // pred_check_branch
          %342 = sbr.rel (%p340) target = $region32
        $region31: #{tpu_custom_call.1} parent=11 // pred_region
          %344 = vsyncadd [#allocation12], 0
          %s345 = sshll.u32 %s5, 4
          %s346 = int_to_ptr.hbm [resolvable:$true] %s345
          %s347 = sshll.u32 [#allocation11], 4
          %s348 = int_to_ptr.vmem [resolvable:$true] %s347
          %353 = dma.hbm_to_vmem [thread:$0]  %s346, 2048, %s348, [#allocation12], 64, 64, 4
        $region32: #{tpu_custom_call.1} parent=11 // pred_fallthru
          _
        // Predicated region
        $region33: #{tpu_custom_call.1} parent=11 // pred_check
          %p354 = pneg %p192
        $region34: #{tpu_custom_call.1} parent=11 // pred_check_branch
          %356 = sbr.rel (%p354) target = $region36
        $region35: #{tpu_custom_call.1} parent=11 // pred_region
          %358 = vsyncadd [#allocation12], 0
          %s360 = sshll.u32 %s6, 4
          %s361 = int_to_ptr.hbm [resolvable:$true] %s360
          %s362 = sshll.u32 [#allocation13], 4
          %s363 = int_to_ptr.vmem [resolvable:$true] %s362
          %365 = dma.hbm_to_vmem [thread:$0]  %s361, 128, %s363, [#allocation12]
        $region36: #{tpu_custom_call.1} parent=11 // pred_fallthru
          _
        // Predicated region
        $region37: #{tpu_custom_call.1} parent=11 // pred_check
          %p366 = pneg %p213
        $region38: #{tpu_custom_call.1} parent=11 // pred_check_branch
          %368 = sbr.rel (%p366) target = $region40
        $region39: #{tpu_custom_call.1} parent=11 // pred_region
          _
        $region40: #{tpu_custom_call.1} parent=11 // pred_fallthru
          _
      $region12: #{tpu_custom_call.1} parent=5 // pred_fallthru
        _
      %p369 = scmp.lt.s32.totalorder %s28, 2
      // Predicated region
      $region41: #{tpu_custom_call.1} parent=5 // pred_check
        %p370 = pneg %p369
      $region42: #{tpu_custom_call.1} parent=5 // pred_check_branch
        %372 = sbr.rel (%p370) target = $region44
      $region43: #{tpu_custom_call.1} parent=5 // pred_region
        // Predicated region
        $region45: #{tpu_custom_call.1} parent=43 // pred_check
          %p373 = pneg %p60
        $region46: #{tpu_custom_call.1} parent=43 // pred_check_branch
          %375 = sbr.rel (%p373) target = $region48
        $region47: #{tpu_custom_call.1} parent=43 // pred_region
          %s376 = sand.u32 %s50, 1
          %s377 = scalar_lea.sflag [#allocation3], %s376
          %s378 = sand.u32 %s50, 1
          %s379 = smul.addr %s378, 128
          %s380 = scalar_lea.vmem [#allocation2], %s379
          %382 = vsyncadd %s377, 0
          %s383 = smul.addr %s35, 16
          %s384 = smul.addr %s383, 8
          %s385 = scalar_lea.hbm %s0, %s384
          %s386 = sshll.u32 %s385, 4
          %s387 = int_to_ptr.hbm [resolvable:$true] %s386
          %s388 = sshll.u32 %s380, 4
          %s389 = int_to_ptr.vmem [resolvable:$true] %s388
          %394 = dma.hbm_to_vmem [thread:$0]  %s387, 2048, %s389, %s377, 128, 128, 8
        $region48: #{tpu_custom_call.1} parent=43 // pred_fallthru
          _
      $region44: #{tpu_custom_call.1} parent=5 // pred_fallthru
        _
      %p395 = scmp.le.s32.totalorder 1, %s28
      %p396 = scmp.lt.s32.totalorder %s28, 3
      %p397 = pnand %p395, %p396
      %p398 = pneg %p397
      // Predicated region
      $region49: #{tpu_custom_call.1} parent=5 // pred_check
        _
      $region50: #{tpu_custom_call.1} parent=5 // pred_check_branch
        %400 = sbr.rel (%p397) target = $region52
      $region51: #{tpu_custom_call.1} parent=5 // pred_region
        %s401 = ssub.s32 %s28, 1
        %s402 = sand.u32 %s53, 1
        %s403 = scalar_lea.sflag [#allocation3], %s402
        %s404 = sand.u32 %s53, 1
        %s405 = smul.addr %s404, 128
        %s406 = scalar_lea.vmem [#allocation2], %s405
        // Predicated region
        $region53: #{tpu_custom_call.1} parent=51 // pred_check
          %p407 = pneg %p66
        $region54: #{tpu_custom_call.1} parent=51 // pred_check_branch
          %409 = sbr.rel (%p407) target = $region56
        $region55: #{tpu_custom_call.1} parent=51 // pred_region
          %411 = dma.done %s403, 2048
        $region56: #{tpu_custom_call.1} parent=51 // pred_fallthru
          _
        // Predicated region
        $region57: #{tpu_custom_call.1} parent=51 // pred_check
          %p412 = pneg %p87
        $region58: #{tpu_custom_call.1} parent=51 // pred_check_branch
          %414 = sbr.rel (%p412) target = $region60
        $region59: #{tpu_custom_call.1} parent=51 // pred_region
          %416 = dma.done [#allocation6], 1024
        $region60: #{tpu_custom_call.1} parent=51 // pred_fallthru
          _
        // Predicated region
        $region61: #{tpu_custom_call.1} parent=51 // pred_check
          %p417 = pneg %p108
        $region62: #{tpu_custom_call.1} parent=51 // pred_check_branch
          %419 = sbr.rel (%p417) target = $region64
        $region63: #{tpu_custom_call.1} parent=51 // pred_region
          %421 = dma.done [#allocation6], 2048
        $region64: #{tpu_custom_call.1} parent=51 // pred_fallthru
          _
        // Predicated region
        $region65: #{tpu_custom_call.1} parent=51 // pred_check
          %p422 = pneg %p129
        $region66: #{tpu_custom_call.1} parent=51 // pred_check_branch
          %424 = sbr.rel (%p422) target = $region68
        $region67: #{tpu_custom_call.1} parent=51 // pred_region
          %426 = dma.done [#allocation9], 1024
        $region68: #{tpu_custom_call.1} parent=51 // pred_fallthru
          _
        // Predicated region
        $region69: #{tpu_custom_call.1} parent=51 // pred_check
          %p427 = pneg %p150
        $region70: #{tpu_custom_call.1} parent=51 // pred_check_branch
          %429 = sbr.rel (%p427) target = $region72
        $region71: #{tpu_custom_call.1} parent=51 // pred_region
          %431 = dma.done [#allocation9], 2048
        $region72: #{tpu_custom_call.1} parent=51 // pred_fallthru
          _
        // Predicated region
        $region73: #{tpu_custom_call.1} parent=51 // pred_check
          %p432 = pneg %p171
        $region74: #{tpu_custom_call.1} parent=51 // pred_check_branch
          %434 = sbr.rel (%p432) target = $region76
        $region75: #{tpu_custom_call.1} parent=51 // pred_region
          %436 = dma.done [#allocation12], 2048
        $region76: #{tpu_custom_call.1} parent=51 // pred_fallthru
          _
        // Predicated region
        $region77: #{tpu_custom_call.1} parent=51 // pred_check
          %p437 = pneg %p192
        $region78: #{tpu_custom_call.1} parent=51 // pred_check_branch
          %439 = sbr.rel (%p437) target = $region80
        $region79: #{tpu_custom_call.1} parent=51 // pred_region
          %441 = dma.done [#allocation12], 128
        $region80: #{tpu_custom_call.1} parent=51 // pred_fallthru
          _
        %s442 = sand.u32 %s53, 1
        %s443 = scalar_lea.sflag [#allocation3], %s442
        %s444 = sand.u32 %s53, 1
        %s445 = smul.addr %s444, 128
        %s446 = scalar_lea.vmem [#allocation2], %s445
        %p447 = pneg %p66
        %p448 = pneg %p63
        %p449 = pneg %p87
        %p450 = pneg %p84
        %p451 = pneg %p108
        %p452 = pneg %p105
        %p453 = pneg %p129
        %p454 = pneg %p126
        %p455 = pneg %p150
        %p456 = pneg %p147
        %p457 = pneg %p171
        %p458 = pneg %p168
        %p459 = pneg %p192
        %p460 = pneg %p189
        %p461 = pneg %p213
        %p462 = pneg %p210
        %p463 = pneg %p241
        %p464 = pneg %p238
        %s465 = sand.u32 %s228, 1
        %s466 = scalar_lea.sflag [#allocation4], %s465
        %s467 = sand.u32 %s228, 1
        %s468 = smul.addr %s467, 128
        %s469 = scalar_lea.vmem [#allocation14], %s468
        %p470 = pneg %p269
        %p471 = pneg %p266
        %s472 = sand.u32 %s256, 1
        %s473 = scalar_lea.sflag [#allocation16], %s472
        %s474 = sand.u32 %s256, 1
        %s475 = smul.addr %s474, 128
        %s476 = scalar_lea.vmem [#allocation15], %s475
        %s477 = smul.u32 16, %s38
        %s478 = smul.u32 16, %s38
        %v479 = vld [vmem:[#allocation13] sm:$0x3f]
        %v480 = vld [vmem:[%s406] sm:$0xff]
        %v481 = vld [vmem:[%s406 + $0x8] sm:$0xff]
        %v482 = vld [vmem:[%s406 + $0x10] sm:$0xff]
        %v483 = vld [vmem:[%s406 + $0x18] sm:$0xff]
        %v484 = vld [vmem:[%s406 + $0x20] sm:$0xff]
        %v485 = vld [vmem:[%s406 + $0x28] sm:$0xff]
        %v486 = vld [vmem:[%s406 + $0x30] sm:$0xff]
        %v487 = vld [vmem:[%s406 + $0x38] sm:$0xff]
        %v488 = vld [vmem:[%s406 + $0x40] sm:$0xff]
        %v489 = vld [vmem:[%s406 + $0x48] sm:$0xff]
        %v490 = vld [vmem:[%s406 + $0x50] sm:$0xff]
        %v491 = vld [vmem:[%s406 + $0x58] sm:$0xff]
        %v492 = vld [vmem:[%s406 + $0x60] sm:$0xff]
        %v493 = vld [vmem:[%s406 + $0x68] sm:$0xff]
        %v494 = vld [vmem:[%s406 + $0x70] sm:$0xff]
        %v495 = vld [vmem:[%s406 + $0x78] sm:$0xff]
        %496 = vadd.xlane.f32.xlu0 %v480
        %v497 = vpop.xlane.xlu0 %496
        %498 = vadd.xlane.f32.xlu0 %v481
        %v499 = vpop.xlane.xlu0 %498
        %500 = vadd.xlane.f32.xlu0 %v482
        %v501 = vpop.xlane.xlu0 %500
        %502 = vadd.xlane.f32.xlu0 %v483
        %v503 = vpop.xlane.xlu0 %502
        %504 = vadd.xlane.f32.xlu0 %v484
        %v505 = vpop.xlane.xlu0 %504
        %506 = vadd.xlane.f32.xlu0 %v485
        %v507 = vpop.xlane.xlu0 %506
        %508 = vadd.xlane.f32.xlu0 %v486
        %v509 = vpop.xlane.xlu0 %508
        %510 = vadd.xlane.f32.xlu0 %v487
        %v511 = vpop.xlane.xlu0 %510
        %512 = vadd.xlane.f32.xlu0 %v488
        %v513 = vpop.xlane.xlu0 %512
        %514 = vadd.xlane.f32.xlu0 %v489
        %v515 = vpop.xlane.xlu0 %514
        %516 = vadd.xlane.f32.xlu0 %v490
        %v517 = vpop.xlane.xlu0 %516
        %518 = vadd.xlane.f32.xlu0 %v491
        %v519 = vpop.xlane.xlu0 %518
        %520 = vadd.xlane.f32.xlu0 %v492
        %v521 = vpop.xlane.xlu0 %520
        %522 = vadd.xlane.f32.xlu0 %v493
        %v523 = vpop.xlane.xlu0 %522
        %524 = vadd.xlane.f32.xlu0 %v494
        %v525 = vpop.xlane.xlu0 %524
        %526 = vadd.xlane.f32.xlu0 %v495
        %v527 = vpop.xlane.xlu0 %526
        %v528 = vrcp.pop 128.0
        %v529 = vmul.f32 128.0, %v528
        %v530 = vsub.f32 1.0, %v529
        %v531 = vmul.f32 %v528, %v530
        %v532 = vadd.f32 %v528, %v531
        %vm533 = vweird.f32 %v528
        %v534 = vsel %vm533, %v528, %v532
        %v535 = vmul.f32 %v497, %v534
        %v536 = vmul.f32 %v499, %v534
        %v537 = vmul.f32 %v501, %v534
        %v538 = vmul.f32 %v503, %v534
        %v539 = vmul.f32 %v505, %v534
        %v540 = vmul.f32 %v507, %v534
        %v541 = vmul.f32 %v509, %v534
        %v542 = vmul.f32 %v511, %v534
        %v543 = vmul.f32 %v513, %v534
        %v544 = vmul.f32 %v515, %v534
        %v545 = vmul.f32 %v517, %v534
        %v546 = vmul.f32 %v519, %v534
        %v547 = vmul.f32 %v521, %v534
        %v548 = vmul.f32 %v523, %v534
        %v549 = vmul.f32 %v525, %v534
        %v550 = vmul.f32 %v527, %v534
        %v551 = vsub.f32 %v480, %v535
        %v552 = vsub.f32 %v481, %v536
        %v553 = vsub.f32 %v482, %v537
        %v554 = vsub.f32 %v483, %v538
        %v555 = vsub.f32 %v484, %v539
        %v556 = vsub.f32 %v485, %v540
        %v557 = vsub.f32 %v486, %v541
        %v558 = vsub.f32 %v487, %v542
        %v559 = vsub.f32 %v488, %v543
        %v560 = vsub.f32 %v489, %v544
        %v561 = vsub.f32 %v490, %v545
        %v562 = vsub.f32 %v491, %v546
        %v563 = vsub.f32 %v492, %v547
        %v564 = vsub.f32 %v493, %v548
        %v565 = vsub.f32 %v494, %v549
        %v566 = vsub.f32 %v495, %v550
        %v567 = vmul.f32 %v551, %v551
        %v568 = vmul.f32 %v552, %v552
        %v569 = vmul.f32 %v553, %v553
        %v570 = vmul.f32 %v554, %v554
        %v571 = vmul.f32 %v555, %v555
        %v572 = vmul.f32 %v556, %v556
        %v573 = vmul.f32 %v557, %v557
        %v574 = vmul.f32 %v558, %v558
        %v575 = vmul.f32 %v559, %v559
        %v576 = vmul.f32 %v560, %v560
        %v577 = vmul.f32 %v561, %v561
        %v578 = vmul.f32 %v562, %v562
        %v579 = vmul.f32 %v563, %v563
        %v580 = vmul.f32 %v564, %v564
        %v581 = vmul.f32 %v565, %v565
        %v582 = vmul.f32 %v566, %v566
        %583 = vadd.xlane.f32.xlu0 %v567
        %v584 = vpop.xlane.xlu0 %583
        %585 = vadd.xlane.f32.xlu0 %v568
        %v586 = vpop.xlane.xlu0 %585
        %587 = vadd.xlane.f32.xlu0 %v569
        %v588 = vpop.xlane.xlu0 %587
        %589 = vadd.xlane.f32.xlu0 %v570
        %v590 = vpop.xlane.xlu0 %589
        %591 = vadd.xlane.f32.xlu0 %v571
        %v592 = vpop.xlane.xlu0 %591
        %593 = vadd.xlane.f32.xlu0 %v572
        %v594 = vpop.xlane.xlu0 %593
        %595 = vadd.xlane.f32.xlu0 %v573
        %v596 = vpop.xlane.xlu0 %595
        %597 = vadd.xlane.f32.xlu0 %v574
        %v598 = vpop.xlane.xlu0 %597
        %599 = vadd.xlane.f32.xlu0 %v575
        %v600 = vpop.xlane.xlu0 %599
        %601 = vadd.xlane.f32.xlu0 %v576
        %v602 = vpop.xlane.xlu0 %601
        %603 = vadd.xlane.f32.xlu0 %v577
        %v604 = vpop.xlane.xlu0 %603
        %605 = vadd.xlane.f32.xlu0 %v578
        %v606 = vpop.xlane.xlu0 %605
        %607 = vadd.xlane.f32.xlu0 %v579
        %v608 = vpop.xlane.xlu0 %607
        %609 = vadd.xlane.f32.xlu0 %v580
        %v610 = vpop.xlane.xlu0 %609
        %611 = vadd.xlane.f32.xlu0 %v581
        %v612 = vpop.xlane.xlu0 %611
        %613 = vadd.xlane.f32.xlu0 %v582
        %v614 = vpop.xlane.xlu0 %613
        %v615 = vmul.f32 %v584, %v534
        %v616 = vmul.f32 %v586, %v534
        %v617 = vmul.f32 %v588, %v534
        %v618 = vmul.f32 %v590, %v534
        %v619 = vmul.f32 %v592, %v534
        %v620 = vmul.f32 %v594, %v534
        %v621 = vmul.f32 %v596, %v534
        %v622 = vmul.f32 %v598, %v534
        %v623 = vmul.f32 %v600, %v534
        %v624 = vmul.f32 %v602, %v534
        %v625 = vmul.f32 %v604, %v534
        %v626 = vmul.f32 %v606, %v534
        %v627 = vmul.f32 %v608, %v534
        %v628 = vmul.f32 %v610, %v534
        %v629 = vmul.f32 %v612, %v534
        %v630 = vmul.f32 %v614, %v534
        %v631 = vadd.f32 %v615, 1e-05
        %v632 = vadd.f32 %v616, 1e-05
        %v633 = vadd.f32 %v617, 1e-05
        %v634 = vadd.f32 %v618, 1e-05
        %v635 = vadd.f32 %v619, 1e-05
        %v636 = vadd.f32 %v620, 1e-05
        %v637 = vadd.f32 %v621, 1e-05
        %v638 = vadd.f32 %v622, 1e-05
        %v639 = vadd.f32 %v623, 1e-05
        %v640 = vadd.f32 %v624, 1e-05
        %v641 = vadd.f32 %v625, 1e-05
        %v642 = vadd.f32 %v626, 1e-05
        %v643 = vadd.f32 %v627, 1e-05
        %v644 = vadd.f32 %v628, 1e-05
        %v645 = vadd.f32 %v629, 1e-05
        %v646 = vadd.f32 %v630, 1e-05
        %v647 = vrsqrt.pop %v631
        %v648 = vmul.f32 %v647, %v631
        %v649 = vmul.f32 %v648, %v647
        %v650 = vmul.f32 0.5, %v649
        %v651 = vsub.f32 1.5, %v650
        %v652 = vmul.f32 %v647, %v651
        %vm653 = vweird.f32 %v631
        %vm654 = vweird.f32 %v647
        %vm655 = vmor %vm653, %vm654
        %v656 = vsel %vm655, %v647, %v652
        %v657 = vrsqrt.pop %v632
        %v658 = vmul.f32 %v657, %v632
        %v659 = vmul.f32 %v658, %v657
        %v660 = vmul.f32 0.5, %v659
        %v661 = vsub.f32 1.5, %v660
        %v662 = vmul.f32 %v657, %v661
        %vm663 = vweird.f32 %v632
        %vm664 = vweird.f32 %v657
        %vm665 = vmor %vm663, %vm664
        %v666 = vsel %vm665, %v657, %v662
        %v667 = vrsqrt.pop %v633
        %v668 = vmul.f32 %v667, %v633
        %v669 = vmul.f32 %v668, %v667
        %v670 = vmul.f32 0.5, %v669
        %v671 = vsub.f32 1.5, %v670
        %v672 = vmul.f32 %v667, %v671
        %vm673 = vweird.f32 %v633
        %vm674 = vweird.f32 %v667
        %vm675 = vmor %vm673, %vm674
        %v676 = vsel %vm675, %v667, %v672
        %v677 = vrsqrt.pop %v634
        %v678 = vmul.f32 %v677, %v634
        %v679 = vmul.f32 %v678, %v677
        %v680 = vmul.f32 0.5, %v679
        %v681 = vsub.f32 1.5, %v680
        %v682 = vmul.f32 %v677, %v681
        %vm683 = vweird.f32 %v634
        %vm684 = vweird.f32 %v677
        %vm685 = vmor %vm683, %vm684
        %v686 = vsel %vm685, %v677, %v682
        %v687 = vrsqrt.pop %v635
        %v688 = vmul.f32 %v687, %v635
        %v689 = vmul.f32 %v688, %v687
        %v690 = vmul.f32 0.5, %v689
        %v691 = vsub.f32 1.5, %v690
        %v692 = vmul.f32 %v687, %v691
        %vm693 = vweird.f32 %v635
        %vm694 = vweird.f32 %v687
        %vm695 = vmor %vm693, %vm694
        %v696 = vsel %vm695, %v687, %v692
        %v697 = vrsqrt.pop %v636
        %v698 = vmul.f32 %v697, %v636
        %v699 = vmul.f32 %v698, %v697
        %v700 = vmul.f32 0.5, %v699
        %v701 = vsub.f32 1.5, %v700
        %v702 = vmul.f32 %v697, %v701
        %vm703 = vweird.f32 %v636
        %vm704 = vweird.f32 %v697
        %vm705 = vmor %vm703, %vm704
        %v706 = vsel %vm705, %v697, %v702
        %v707 = vrsqrt.pop %v637
        %v708 = vmul.f32 %v707, %v637
        %v709 = vmul.f32 %v708, %v707
        %v710 = vmul.f32 0.5, %v709
        %v711 = vsub.f32 1.5, %v710
        %v712 = vmul.f32 %v707, %v711
        %vm713 = vweird.f32 %v637
        %vm714 = vweird.f32 %v707
        %vm715 = vmor %vm713, %vm714
        %v716 = vsel %vm715, %v707, %v712
        %v717 = vrsqrt.pop %v638
        %v718 = vmul.f32 %v717, %v638
        %v719 = vmul.f32 %v718, %v717
        %v720 = vmul.f32 0.5, %v719
        %v721 = vsub.f32 1.5, %v720
        %v722 = vmul.f32 %v717, %v721
        %vm723 = vweird.f32 %v638
        %vm724 = vweird.f32 %v717
        %vm725 = vmor %vm723, %vm724
        %v726 = vsel %vm725, %v717, %v722
        %v727 = vrsqrt.pop %v639
        %v728 = vmul.f32 %v727, %v639
        %v729 = vmul.f32 %v728, %v727
        %v730 = vmul.f32 0.5, %v729
        %v731 = vsub.f32 1.5, %v730
        %v732 = vmul.f32 %v727, %v731
        %vm733 = vweird.f32 %v639
        %vm734 = vweird.f32 %v727
        %vm735 = vmor %vm733, %vm734
        %v736 = vsel %vm735, %v727, %v732
        %v737 = vrsqrt.pop %v640
        %v738 = vmul.f32 %v737, %v640
        %v739 = vmul.f32 %v738, %v737
        %v740 = vmul.f32 0.5, %v739
        %v741 = vsub.f32 1.5, %v740
        %v742 = vmul.f32 %v737, %v741
        %vm743 = vweird.f32 %v640
        %vm744 = vweird.f32 %v737
        %vm745 = vmor %vm743, %vm744
        %v746 = vsel %vm745, %v737, %v742
        %v747 = vrsqrt.pop %v641
        %v748 = vmul.f32 %v747, %v641
        %v749 = vmul.f32 %v748, %v747
        %v750 = vmul.f32 0.5, %v749
        %v751 = vsub.f32 1.5, %v750
        %v752 = vmul.f32 %v747, %v751
        %vm753 = vweird.f32 %v641
        %vm754 = vweird.f32 %v747
        %vm755 = vmor %vm753, %vm754
        %v756 = vsel %vm755, %v747, %v752
        %v757 = vrsqrt.pop %v642
        %v758 = vmul.f32 %v757, %v642
        %v759 = vmul.f32 %v758, %v757
        %v760 = vmul.f32 0.5, %v759
        %v761 = vsub.f32 1.5, %v760
        %v762 = vmul.f32 %v757, %v761
        %vm763 = vweird.f32 %v642
        %vm764 = vweird.f32 %v757
        %vm765 = vmor %vm763, %vm764
        %v766 = vsel %vm765, %v757, %v762
        %v767 = vrsqrt.pop %v643
        %v768 = vmul.f32 %v767, %v643
        %v769 = vmul.f32 %v768, %v767
        %v770 = vmul.f32 0.5, %v769
        %v771 = vsub.f32 1.5, %v770
        %v772 = vmul.f32 %v767, %v771
        %vm773 = vweird.f32 %v643
        %vm774 = vweird.f32 %v767
        %vm775 = vmor %vm773, %vm774
        %v776 = vsel %vm775, %v767, %v772
        %v777 = vrsqrt.pop %v644
        %v778 = vmul.f32 %v777, %v644
        %v779 = vmul.f32 %v778, %v777
        %v780 = vmul.f32 0.5, %v779
        %v781 = vsub.f32 1.5, %v780
        %v782 = vmul.f32 %v777, %v781
        %vm783 = vweird.f32 %v644
        %vm784 = vweird.f32 %v777
        %vm785 = vmor %vm783, %vm784
        %v786 = vsel %vm785, %v777, %v782
        %v787 = vrsqrt.pop %v645
        %v788 = vmul.f32 %v787, %v645
        %v789 = vmul.f32 %v788, %v787
        %v790 = vmul.f32 0.5, %v789
        %v791 = vsub.f32 1.5, %v790
        %v792 = vmul.f32 %v787, %v791
        %vm793 = vweird.f32 %v645
        %vm794 = vweird.f32 %v787
        %vm795 = vmor %vm793, %vm794
        %v796 = vsel %vm795, %v787, %v792
        %v797 = vrsqrt.pop %v646
        %v798 = vmul.f32 %v797, %v646
        %v799 = vmul.f32 %v798, %v797
        %v800 = vmul.f32 0.5, %v799
        %v801 = vsub.f32 1.5, %v800
        %v802 = vmul.f32 %v797, %v801
        %vm803 = vweird.f32 %v646
        %vm804 = vweird.f32 %v797
        %vm805 = vmor %vm803, %vm804
        %v806 = vsel %vm805, %v797, %v802
        %v807 = vmul.f32 %v551, %v656
        %v808 = vmul.f32 %v552, %v666
        %v809 = vmul.f32 %v553, %v676
        %v810 = vmul.f32 %v554, %v686
        %v811 = vmul.f32 %v555, %v696
        %v812 = vmul.f32 %v556, %v706
        %v813 = vmul.f32 %v557, %v716
        %v814 = vmul.f32 %v558, %v726
        %v815 = vmul.f32 %v559, %v736
        %v816 = vmul.f32 %v560, %v746
        %v817 = vmul.f32 %v561, %v756
        %v818 = vmul.f32 %v562, %v766
        %v819 = vmul.f32 %v563, %v776
        %v820 = vmul.f32 %v564, %v786
        %v821 = vmul.f32 %v565, %v796
        %v822 = vmul.f32 %v566, %v806
        %v823 = vperm.slane %v479, 0
        %v824 = vmul.f32 %v807, %v823
        %v825 = vmul.f32 %v808, %v823
        %v826 = vmul.f32 %v809, %v823
        %v827 = vmul.f32 %v810, %v823
        %v828 = vmul.f32 %v811, %v823
        %v829 = vmul.f32 %v812, %v823
        %v830 = vmul.f32 %v813, %v823
        %v831 = vmul.f32 %v814, %v823
        %v832 = vmul.f32 %v815, %v823
        %v833 = vmul.f32 %v816, %v823
        %v834 = vmul.f32 %v817, %v823
        %v835 = vmul.f32 %v818, %v823
        %v836 = vmul.f32 %v819, %v823
        %v837 = vmul.f32 %v820, %v823
        %v838 = vmul.f32 %v821, %v823
        %v839 = vmul.f32 %v822, %v823
        %v840 = vperm.slane %v479, 1
        %v841 = vadd.f32 %v824, %v840
        %v842 = vadd.f32 %v825, %v840
        %v843 = vadd.f32 %v826, %v840
        %v844 = vadd.f32 %v827, %v840
        %v845 = vadd.f32 %v828, %v840
        %v846 = vadd.f32 %v829, %v840
        %v847 = vadd.f32 %v830, %v840
        %v848 = vadd.f32 %v831, %v840
        %v849 = vadd.f32 %v832, %v840
        %v850 = vadd.f32 %v833, %v840
        %v851 = vadd.f32 %v834, %v840
        %v852 = vadd.f32 %v835, %v840
        %v853 = vadd.f32 %v836, %v840
        %v854 = vadd.f32 %v837, %v840
        %v855 = vadd.f32 %v838, %v840
        %v856 = vadd.f32 %v839, %v840
        %v857 = vpack.c.bf16 %v842, %v841
        %v858 = vpack.c.bf16 %v844, %v843
        %v859 = vpack.c.bf16 %v846, %v845
        %v860 = vpack.c.bf16 %v848, %v847
        %v861 = vpack.c.bf16 %v850, %v849
        %v862 = vpack.c.bf16 %v852, %v851
        %v863 = vpack.c.bf16 %v854, %v853
        %v864 = vpack.c.bf16 %v856, %v855
        %v865 = vld [vmem:[#allocation5] sm:$0xf]
        %v866 = vld [vmem:[#allocation5 + $0x4] sm:$0xf]
        %v867 = vld [vmem:[#allocation5 + $0x8] sm:$0xf]
        %v868 = vld [vmem:[#allocation5 + $0xc] sm:$0xf]
        %v869 = vld [vmem:[#allocation5 + $0x10] sm:$0xf]
        %v870 = vld [vmem:[#allocation5 + $0x14] sm:$0xf]
        %v871 = vld [vmem:[#allocation5 + $0x18] sm:$0xf]
        %v872 = vld [vmem:[#allocation5 + $0x1c] sm:$0xf]
        %v873 = vld [vmem:[#allocation5 + $0x20] sm:$0xf]
        %v874 = vld [vmem:[#allocation5 + $0x24] sm:$0xf]
        %v875 = vld [vmem:[#allocation5 + $0x28] sm:$0xf]
        %v876 = vld [vmem:[#allocation5 + $0x2c] sm:$0xf]
        %v877 = vld [vmem:[#allocation5 + $0x30] sm:$0xf]
        %v878 = vld [vmem:[#allocation5 + $0x34] sm:$0xf]
        %v879 = vld [vmem:[#allocation5 + $0x38] sm:$0xf]
        %v880 = vld [vmem:[#allocation5 + $0x3c] sm:$0xf]
        %v897 = vunpack.c.l.b16 %v865
        %v898 = vunpack.c.l.b16 %v866
        %v899 = vunpack.c.l.b16 %v867
        %v900 = vunpack.c.l.b16 %v868
        %v901 = vunpack.c.l.b16 %v869
        %v902 = vunpack.c.l.b16 %v870
        %v903 = vunpack.c.l.b16 %v871
        %v904 = vunpack.c.l.b16 %v872
        %v905 = vunpack.c.l.b16 %v873
        %v906 = vunpack.c.l.b16 %v874
        %v907 = vunpack.c.l.b16 %v875
        %v908 = vunpack.c.l.b16 %v876
        %v909 = vunpack.c.l.b16 %v877
        %v910 = vunpack.c.l.b16 %v878
        %v911 = vunpack.c.l.b16 %v879
        %v912 = vunpack.c.l.b16 %v880
        %v913 = vpack.c.b16 %v898, %v897
        %v914 = vpack.c.b16 %v900, %v899
        %v915 = vpack.c.b16 %v902, %v901
        %v916 = vpack.c.b16 %v904, %v903
        %v917 = vpack.c.b16 %v906, %v905
        %v918 = vpack.c.b16 %v908, %v907
        %v919 = vpack.c.b16 %v910, %v909
        %v920 = vpack.c.b16 %v912, %v911
        %929 = vmatpush.bf16.msra.mxu0 %v920
        %930 = vmatpush.bf16.msra.mxu0 %v919
        %931 = vmatpush.bf16.msra.mxu0 %v918
        %932 = vmatpush.bf16.msra.mxu0 %v917
        %933 = vmatpush.bf16.msra.mxu0 %v916
        %934 = vmatpush.bf16.msra.mxu0 %v915
        %935 = vmatpush.bf16.msra.mxu0 %v914
        %936 = vmatpush.bf16.msra.mxu0 %v913
        %937 = vmatmul.bf16.gmra.mxu0 %v857
        %v938 = vpop.f32.mrf.mxu0
        %v939 = vadd.f32 0.0, %v938
        %v940 = vpop.f32.mrf.mxu0
        %v941 = vadd.f32 0.0, %v940
        %942 = vmatmul.bf16.gmra.mxu0 %v858
        %v943 = vpop.f32.mrf.mxu0
        %v944 = vadd.f32 0.0, %v943
        %v945 = vpop.f32.mrf.mxu0
        %v946 = vadd.f32 0.0, %v945
        %947 = vmatmul.bf16.gmra.mxu0 %v859
        %v948 = vpop.f32.mrf.mxu0
        %v949 = vadd.f32 0.0, %v948
        %v950 = vpop.f32.mrf.mxu0
        %v951 = vadd.f32 0.0, %v950
        %952 = vmatmul.bf16.gmra.mxu0 %v860
        %v953 = vpop.f32.mrf.mxu0
        %v954 = vadd.f32 0.0, %v953
        %v955 = vpop.f32.mrf.mxu0
        %v956 = vadd.f32 0.0, %v955
        %957 = vmatmul.bf16.gmra.mxu0 %v861
        %v958 = vpop.f32.mrf.mxu0
        %v959 = vadd.f32 0.0, %v958
        %v960 = vpop.f32.mrf.mxu0
        %v961 = vadd.f32 0.0, %v960
        %962 = vmatmul.bf16.gmra.mxu0 %v862
        %v963 = vpop.f32.mrf.mxu0
        %v964 = vadd.f32 0.0, %v963
        %v965 = vpop.f32.mrf.mxu0
        %v966 = vadd.f32 0.0, %v965
        %967 = vmatmul.bf16.gmra.mxu0 %v863
        %v968 = vpop.f32.mrf.mxu0
        %v969 = vadd.f32 0.0, %v968
        %v970 = vpop.f32.mrf.mxu0
        %v971 = vadd.f32 0.0, %v970
        %972 = vmatmul.bf16.gmra.mxu0 %v864
        %v973 = vpop.f32.mrf.mxu0
        %v974 = vadd.f32 0.0, %v973
        %v975 = vpop.f32.mrf.mxu0
        %v976 = vadd.f32 0.0, %v975
        %977 = vdwg.mxu0
        %v978 = vld [vmem:[#allocation7] sm:$0xff]
        %v979 = vld [vmem:[#allocation7 + $0x8] sm:$0xff]
        %v980 = vld [vmem:[#allocation7 + $0x10] sm:$0xff]
        %v981 = vld [vmem:[#allocation7 + $0x18] sm:$0xff]
        %v982 = vld [vmem:[#allocation7 + $0x20] sm:$0xff]
        %v983 = vld [vmem:[#allocation7 + $0x28] sm:$0xff]
        %v984 = vld [vmem:[#allocation7 + $0x30] sm:$0xff]
        %v985 = vld [vmem:[#allocation7 + $0x38] sm:$0xff]
        %v986 = vld [vmem:[#allocation7 + $0x40] sm:$0xff]
        %v987 = vld [vmem:[#allocation7 + $0x48] sm:$0xff]
        %v988 = vld [vmem:[#allocation7 + $0x50] sm:$0xff]
        %v989 = vld [vmem:[#allocation7 + $0x58] sm:$0xff]
        %v990 = vld [vmem:[#allocation7 + $0x60] sm:$0xff]
        %v991 = vld [vmem:[#allocation7 + $0x68] sm:$0xff]
        %v992 = vld [vmem:[#allocation7 + $0x70] sm:$0xff]
        %v993 = vld [vmem:[#allocation7 + $0x78] sm:$0xff]
        %v1010 = vunpack.c.l.b16 %v978
        %v1011 = vunpack.c.h.b16 %v978
        %v1012 = vunpack.c.l.b16 %v979
        %v1013 = vunpack.c.h.b16 %v979
        %v1014 = vunpack.c.l.b16 %v980
        %v1015 = vunpack.c.h.b16 %v980
        %v1016 = vunpack.c.l.b16 %v981
        %v1017 = vunpack.c.h.b16 %v981
        %v1018 = vunpack.c.l.b16 %v982
        %v1019 = vunpack.c.h.b16 %v982
        %v1020 = vunpack.c.l.b16 %v983
        %v1021 = vunpack.c.h.b16 %v983
        %v1022 = vunpack.c.l.b16 %v984
        %v1023 = vunpack.c.h.b16 %v984
        %v1024 = vunpack.c.l.b16 %v985
        %v1025 = vunpack.c.h.b16 %v985
        %v1026 = vunpack.c.l.b16 %v986
        %v1027 = vunpack.c.h.b16 %v986
        %v1028 = vunpack.c.l.b16 %v987
        %v1029 = vunpack.c.h.b16 %v987
        %v1030 = vunpack.c.l.b16 %v988
        %v1031 = vunpack.c.h.b16 %v988
        %v1032 = vunpack.c.l.b16 %v989
        %v1033 = vunpack.c.h.b16 %v989
        %v1034 = vunpack.c.l.b16 %v990
        %v1035 = vunpack.c.h.b16 %v990
        %v1036 = vunpack.c.l.b16 %v991
        %v1037 = vunpack.c.h.b16 %v991
        %v1038 = vunpack.c.l.b16 %v992
        %v1039 = vunpack.c.h.b16 %v992
        %v1040 = vunpack.c.l.b16 %v993
        %v1041 = vunpack.c.h.b16 %v993
        %v1042 = vpack.c.b16 %v1012, %v1010
        %v1043 = vpack.c.b16 %v1013, %v1011
        %v1044 = vpack.c.b16 %v1016, %v1014
        %v1045 = vpack.c.b16 %v1017, %v1015
        %v1046 = vpack.c.b16 %v1020, %v1018
        %v1047 = vpack.c.b16 %v1021, %v1019
        %v1048 = vpack.c.b16 %v1024, %v1022
        %v1049 = vpack.c.b16 %v1025, %v1023
        %v1050 = vpack.c.b16 %v1028, %v1026
        %v1051 = vpack.c.b16 %v1029, %v1027
        %v1052 = vpack.c.b16 %v1032, %v1030
        %v1053 = vpack.c.b16 %v1033, %v1031
        %v1054 = vpack.c.b16 %v1036, %v1034
        %v1055 = vpack.c.b16 %v1037, %v1035
        %v1056 = vpack.c.b16 %v1040, %v1038
        %v1057 = vpack.c.b16 %v1041, %v1039
        %1074 = vmatpush.bf16.msra.mxu0 %v1056
        %1075 = vmatpush.bf16.msra.mxu0 %v1054
        %1076 = vmatpush.bf16.msra.mxu0 %v1052
        %1077 = vmatpush.bf16.msra.mxu0 %v1050
        %1078 = vmatpush.bf16.msra.mxu0 %v1048
        %1079 = vmatpush.bf16.msra.mxu0 %v1046
        %1080 = vmatpush.bf16.msra.mxu0 %v1044
        %1081 = vmatpush.bf16.msra.mxu0 %v1042
        %1082 = vmatmul.bf16.gmra.mxu0 %v857
        %v1083 = vpop.f32.mrf.mxu0
        %v1084 = vadd.f32 0.0, %v1083
        %v1085 = vpop.f32.mrf.mxu0
        %v1086 = vadd.f32 0.0, %v1085
        %1087 = vmatmul.bf16.gmra.mxu0 %v858
        %v1088 = vpop.f32.mrf.mxu0
        %v1089 = vadd.f32 0.0, %v1088
        %v1090 = vpop.f32.mrf.mxu0
        %v1091 = vadd.f32 0.0, %v1090
        %1092 = vmatmul.bf16.gmra.mxu0 %v859
        %v1093 = vpop.f32.mrf.mxu0
        %v1094 = vadd.f32 0.0, %v1093
        %v1095 = vpop.f32.mrf.mxu0
        %v1096 = vadd.f32 0.0, %v1095
        %1097 = vmatmul.bf16.gmra.mxu0 %v860
        %v1098 = vpop.f32.mrf.mxu0
        %v1099 = vadd.f32 0.0, %v1098
        %v1100 = vpop.f32.mrf.mxu0
        %v1101 = vadd.f32 0.0, %v1100
        %1102 = vmatmul.bf16.gmra.mxu0 %v861
        %v1103 = vpop.f32.mrf.mxu0
        %v1104 = vadd.f32 0.0, %v1103
        %v1105 = vpop.f32.mrf.mxu0
        %v1106 = vadd.f32 0.0, %v1105
        %1107 = vmatmul.bf16.gmra.mxu0 %v862
        %v1108 = vpop.f32.mrf.mxu0
        %v1109 = vadd.f32 0.0, %v1108
        %v1110 = vpop.f32.mrf.mxu0
        %v1111 = vadd.f32 0.0, %v1110
        %1112 = vmatmul.bf16.gmra.mxu0 %v863
        %v1113 = vpop.f32.mrf.mxu0
        %v1114 = vadd.f32 0.0, %v1113
        %v1115 = vpop.f32.mrf.mxu0
        %v1116 = vadd.f32 0.0, %v1115
        %1117 = vmatmul.bf16.gmra.mxu0 %v864
        %v1118 = vpop.f32.mrf.mxu0
        %v1119 = vadd.f32 0.0, %v1118
        %v1120 = vpop.f32.mrf.mxu0
        %v1121 = vadd.f32 0.0, %v1120
        %1122 = vdwg.mxu0
        %1123 = vmatpush.bf16.msra.mxu0 %v1057
        %1124 = vmatpush.bf16.msra.mxu0 %v1055
        %1125 = vmatpush.bf16.msra.mxu0 %v1053
        %1126 = vmatpush.bf16.msra.mxu0 %v1051
        %1127 = vmatpush.bf16.msra.mxu0 %v1049
        %1128 = vmatpush.bf16.msra.mxu0 %v1047
        %1129 = vmatpush.bf16.msra.mxu0 %v1045
        %1130 = vmatpush.bf16.msra.mxu0 %v1043
        %1131 = vmatmul.bf16.gmra.mxu0 %v857
        %v1132 = vpop.f32.mrf.mxu0
        %v1133 = vadd.f32 0.0, %v1132
        %v1134 = vpop.f32.mrf.mxu0
        %v1135 = vadd.f32 0.0, %v1134
        %1136 = vmatmul.bf16.gmra.mxu0 %v858
        %v1137 = vpop.f32.mrf.mxu0
        %v1138 = vadd.f32 0.0, %v1137
        %v1139 = vpop.f32.mrf.mxu0
        %v1140 = vadd.f32 0.0, %v1139
        %1141 = vmatmul.bf16.gmra.mxu0 %v859
        %v1142 = vpop.f32.mrf.mxu0
        %v1143 = vadd.f32 0.0, %v1142
        %v1144 = vpop.f32.mrf.mxu0
        %v1145 = vadd.f32 0.0, %v1144
        %1146 = vmatmul.bf16.gmra.mxu0 %v860
        %v1147 = vpop.f32.mrf.mxu0
        %v1148 = vadd.f32 0.0, %v1147
        %v1149 = vpop.f32.mrf.mxu0
        %v1150 = vadd.f32 0.0, %v1149
        %1151 = vmatmul.bf16.gmra.mxu0 %v861
        %v1152 = vpop.f32.mrf.mxu0
        %v1153 = vadd.f32 0.0, %v1152
        %v1154 = vpop.f32.mrf.mxu0
        %v1155 = vadd.f32 0.0, %v1154
        %1156 = vmatmul.bf16.gmra.mxu0 %v862
        %v1157 = vpop.f32.mrf.mxu0
        %v1158 = vadd.f32 0.0, %v1157
        %v1159 = vpop.f32.mrf.mxu0
        %v1160 = vadd.f32 0.0, %v1159
        %1161 = vmatmul.bf16.gmra.mxu0 %v863
        %v1162 = vpop.f32.mrf.mxu0
        %v1163 = vadd.f32 0.0, %v1162
        %v1164 = vpop.f32.mrf.mxu0
        %v1165 = vadd.f32 0.0, %v1164
        %1166 = vmatmul.bf16.gmra.mxu0 %v864
        %v1167 = vpop.f32.mrf.mxu0
        %v1168 = vadd.f32 0.0, %v1167
        %v1169 = vpop.f32.mrf.mxu0
        %v1170 = vadd.f32 0.0, %v1169
        %1171 = vdwg.mxu0
        %1188 = vrot.lane.b32.xlu0 %v939, 96
        %v1189 = vpop.permute.xlu0 %1188
        %1190 = vrot.lane.b32.xlu0 %v941, 96
        %v1191 = vpop.permute.xlu0 %1190
        %1192 = vrot.lane.b32.xlu0 %v944, 96
        %v1193 = vpop.permute.xlu0 %1192
        %1194 = vrot.lane.b32.xlu0 %v946, 96
        %v1195 = vpop.permute.xlu0 %1194
        %1196 = vrot.lane.b32.xlu0 %v949, 96
        %v1197 = vpop.permute.xlu0 %1196
        %1198 = vrot.lane.b32.xlu0 %v951, 96
        %v1199 = vpop.permute.xlu0 %1198
        %1200 = vrot.lane.b32.xlu0 %v954, 96
        %v1201 = vpop.permute.xlu0 %1200
        %1202 = vrot.lane.b32.xlu0 %v956, 96
        %v1203 = vpop.permute.xlu0 %1202
        %1204 = vrot.lane.b32.xlu0 %v959, 96
        %v1205 = vpop.permute.xlu0 %1204
        %1206 = vrot.lane.b32.xlu0 %v961, 96
        %v1207 = vpop.permute.xlu0 %1206
        %1208 = vrot.lane.b32.xlu0 %v964, 96
        %v1209 = vpop.permute.xlu0 %1208
        %1210 = vrot.lane.b32.xlu0 %v966, 96
        %v1211 = vpop.permute.xlu0 %1210
        %1212 = vrot.lane.b32.xlu0 %v969, 96
        %v1213 = vpop.permute.xlu0 %1212
        %1214 = vrot.lane.b32.xlu0 %v971, 96
        %v1215 = vpop.permute.xlu0 %1214
        %1216 = vrot.lane.b32.xlu0 %v974, 96
        %v1217 = vpop.permute.xlu0 %1216
        %1218 = vrot.lane.b32.xlu0 %v976, 96
        %v1219 = vpop.permute.xlu0 %1218
        %1236 = vrot.lane.b32.xlu0 %v939, 64
        %v1237 = vpop.permute.xlu0 %1236
        %1238 = vrot.lane.b32.xlu0 %v941, 64
        %v1239 = vpop.permute.xlu0 %1238
        %1240 = vrot.lane.b32.xlu0 %v944, 64
        %v1241 = vpop.permute.xlu0 %1240
        %1242 = vrot.lane.b32.xlu0 %v946, 64
        %v1243 = vpop.permute.xlu0 %1242
        %1244 = vrot.lane.b32.xlu0 %v949, 64
        %v1245 = vpop.permute.xlu0 %1244
        %1246 = vrot.lane.b32.xlu0 %v951, 64
        %v1247 = vpop.permute.xlu0 %1246
        %1248 = vrot.lane.b32.xlu0 %v954, 64
        %v1249 = vpop.permute.xlu0 %1248
        %1250 = vrot.lane.b32.xlu0 %v956, 64
        %v1251 = vpop.permute.xlu0 %1250
        %1252 = vrot.lane.b32.xlu0 %v959, 64
        %v1253 = vpop.permute.xlu0 %1252
        %1254 = vrot.lane.b32.xlu0 %v961, 64
        %v1255 = vpop.permute.xlu0 %1254
        %1256 = vrot.lane.b32.xlu0 %v964, 64
        %v1257 = vpop.permute.xlu0 %1256
        %1258 = vrot.lane.b32.xlu0 %v966, 64
        %v1259 = vpop.permute.xlu0 %1258
        %1260 = vrot.lane.b32.xlu0 %v969, 64
        %v1261 = vpop.permute.xlu0 %1260
        %1262 = vrot.lane.b32.xlu0 %v971, 64
        %v1263 = vpop.permute.xlu0 %1262
        %1264 = vrot.lane.b32.xlu0 %v974, 64
        %v1265 = vpop.permute.xlu0 %1264
        %1266 = vrot.lane.b32.xlu0 %v976, 64
        %v1267 = vpop.permute.xlu0 %1266
        %1284 = vrot.lane.b32.xlu0 %v939, 32
        %v1285 = vpop.permute.xlu0 %1284
        %1286 = vrot.lane.b32.xlu0 %v941, 32
        %v1287 = vpop.permute.xlu0 %1286
        %1288 = vrot.lane.b32.xlu0 %v944, 32
        %v1289 = vpop.permute.xlu0 %1288
        %1290 = vrot.lane.b32.xlu0 %v946, 32
        %v1291 = vpop.permute.xlu0 %1290
        %1292 = vrot.lane.b32.xlu0 %v949, 32
        %v1293 = vpop.permute.xlu0 %1292
        %1294 = vrot.lane.b32.xlu0 %v951, 32
        %v1295 = vpop.permute.xlu0 %1294
        %1296 = vrot.lane.b32.xlu0 %v954, 32
        %v1297 = vpop.permute.xlu0 %1296
        %1298 = vrot.lane.b32.xlu0 %v956, 32
        %v1299 = vpop.permute.xlu0 %1298
        %1300 = vrot.lane.b32.xlu0 %v959, 32
        %v1301 = vpop.permute.xlu0 %1300
        %1302 = vrot.lane.b32.xlu0 %v961, 32
        %v1303 = vpop.permute.xlu0 %1302
        %1304 = vrot.lane.b32.xlu0 %v964, 32
        %v1305 = vpop.permute.xlu0 %1304
        %1306 = vrot.lane.b32.xlu0 %v966, 32
        %v1307 = vpop.permute.xlu0 %1306
        %1308 = vrot.lane.b32.xlu0 %v969, 32
        %v1309 = vpop.permute.xlu0 %1308
        %1310 = vrot.lane.b32.xlu0 %v971, 32
        %v1311 = vpop.permute.xlu0 %1310
        %1312 = vrot.lane.b32.xlu0 %v974, 32
        %v1313 = vpop.permute.xlu0 %1312
        %1314 = vrot.lane.b32.xlu0 %v976, 32
        %v1315 = vpop.permute.xlu0 %1314
        %v1332 = vpack.c.bf16 %v939, %v939
        %v1333 = vpack.c.bf16 %v941, %v941
        %v1334 = vpack.c.bf16 %v944, %v944
        %v1335 = vpack.c.bf16 %v946, %v946
        %v1336 = vpack.c.bf16 %v949, %v949
        %v1337 = vpack.c.bf16 %v951, %v951
        %v1338 = vpack.c.bf16 %v954, %v954
        %v1339 = vpack.c.bf16 %v956, %v956
        %v1340 = vpack.c.bf16 %v959, %v959
        %v1341 = vpack.c.bf16 %v961, %v961
        %v1342 = vpack.c.bf16 %v964, %v964
        %v1343 = vpack.c.bf16 %v966, %v966
        %v1344 = vpack.c.bf16 %v969, %v969
        %v1345 = vpack.c.bf16 %v971, %v971
        %v1346 = vpack.c.bf16 %v974, %v974
        %v1347 = vpack.c.bf16 %v976, %v976
        %v1348 = vpack.c.bf16 %v1189, %v1189
        %v1349 = vpack.c.bf16 %v1191, %v1191
        %v1350 = vpack.c.bf16 %v1193, %v1193
        %v1351 = vpack.c.bf16 %v1195, %v1195
        %v1352 = vpack.c.bf16 %v1197, %v1197
        %v1353 = vpack.c.bf16 %v1199, %v1199
        %v1354 = vpack.c.bf16 %v1201, %v1201
        %v1355 = vpack.c.bf16 %v1203, %v1203
        %v1356 = vpack.c.bf16 %v1205, %v1205
        %v1357 = vpack.c.bf16 %v1207, %v1207
        %v1358 = vpack.c.bf16 %v1209, %v1209
        %v1359 = vpack.c.bf16 %v1211, %v1211
        %v1360 = vpack.c.bf16 %v1213, %v1213
        %v1361 = vpack.c.bf16 %v1215, %v1215
        %v1362 = vpack.c.bf16 %v1217, %v1217
        %v1363 = vpack.c.bf16 %v1219, %v1219
        %v1364 = vpack.c.bf16 %v1237, %v1237
        %v1365 = vpack.c.bf16 %v1239, %v1239
        %v1366 = vpack.c.bf16 %v1241, %v1241
        %v1367 = vpack.c.bf16 %v1243, %v1243
        %v1368 = vpack.c.bf16 %v1245, %v1245
        %v1369 = vpack.c.bf16 %v1247, %v1247
        %v1370 = vpack.c.bf16 %v1249, %v1249
        %v1371 = vpack.c.bf16 %v1251, %v1251
        %v1372 = vpack.c.bf16 %v1253, %v1253
        %v1373 = vpack.c.bf16 %v1255, %v1255
        %v1374 = vpack.c.bf16 %v1257, %v1257
        %v1375 = vpack.c.bf16 %v1259, %v1259
        %v1376 = vpack.c.bf16 %v1261, %v1261
        %v1377 = vpack.c.bf16 %v1263, %v1263
        %v1378 = vpack.c.bf16 %v1265, %v1265
        %v1379 = vpack.c.bf16 %v1267, %v1267
        %v1380 = vpack.c.bf16 %v1285, %v1285
        %v1381 = vpack.c.bf16 %v1287, %v1287
        %v1382 = vpack.c.bf16 %v1289, %v1289
        %v1383 = vpack.c.bf16 %v1291, %v1291
        %v1384 = vpack.c.bf16 %v1293, %v1293
        %v1385 = vpack.c.bf16 %v1295, %v1295
        %v1386 = vpack.c.bf16 %v1297, %v1297
        %v1387 = vpack.c.bf16 %v1299, %v1299
        %v1388 = vpack.c.bf16 %v1301, %v1301
        %v1389 = vpack.c.bf16 %v1303, %v1303
        %v1390 = vpack.c.bf16 %v1305, %v1305
        %v1391 = vpack.c.bf16 %v1307, %v1307
        %v1392 = vpack.c.bf16 %v1309, %v1309
        %v1393 = vpack.c.bf16 %v1311, %v1311
        %v1394 = vpack.c.bf16 %v1313, %v1313
        %v1395 = vpack.c.bf16 %v1315, %v1315
        %1412 = vrot.lane.b32.xlu0 %v1084, 96
        %v1413 = vpop.permute.xlu0 %1412
        %1414 = vrot.lane.b32.xlu0 %v1086, 96
        %v1415 = vpop.permute.xlu0 %1414
        %1416 = vrot.lane.b32.xlu0 %v1089, 96
        %v1417 = vpop.permute.xlu0 %1416
        %1418 = vrot.lane.b32.xlu0 %v1091, 96
        %v1419 = vpop.permute.xlu0 %1418
        %1420 = vrot.lane.b32.xlu0 %v1094, 96
        %v1421 = vpop.permute.xlu0 %1420
        %1422 = vrot.lane.b32.xlu0 %v1096, 96
        %v1423 = vpop.permute.xlu0 %1422
        %1424 = vrot.lane.b32.xlu0 %v1099, 96
        %v1425 = vpop.permute.xlu0 %1424
        %1426 = vrot.lane.b32.xlu0 %v1101, 96
        %v1427 = vpop.permute.xlu0 %1426
        %1428 = vrot.lane.b32.xlu0 %v1104, 96
        %v1429 = vpop.permute.xlu0 %1428
        %1430 = vrot.lane.b32.xlu0 %v1106, 96
        %v1431 = vpop.permute.xlu0 %1430
        %1432 = vrot.lane.b32.xlu0 %v1109, 96
        %v1433 = vpop.permute.xlu0 %1432
        %1434 = vrot.lane.b32.xlu0 %v1111, 96
        %v1435 = vpop.permute.xlu0 %1434
        %1436 = vrot.lane.b32.xlu0 %v1114, 96
        %v1437 = vpop.permute.xlu0 %1436
        %1438 = vrot.lane.b32.xlu0 %v1116, 96
        %v1439 = vpop.permute.xlu0 %1438
        %1440 = vrot.lane.b32.xlu0 %v1119, 96
        %v1441 = vpop.permute.xlu0 %1440
        %1442 = vrot.lane.b32.xlu0 %v1121, 96
        %v1443 = vpop.permute.xlu0 %1442
        %1460 = vrot.lane.b32.xlu0 %v1084, 64
        %v1461 = vpop.permute.xlu0 %1460
        %1462 = vrot.lane.b32.xlu0 %v1086, 64
        %v1463 = vpop.permute.xlu0 %1462
        %1464 = vrot.lane.b32.xlu0 %v1089, 64
        %v1465 = vpop.permute.xlu0 %1464
        %1466 = vrot.lane.b32.xlu0 %v1091, 64
        %v1467 = vpop.permute.xlu0 %1466
        %1468 = vrot.lane.b32.xlu0 %v1094, 64
        %v1469 = vpop.permute.xlu0 %1468
        %1470 = vrot.lane.b32.xlu0 %v1096, 64
        %v1471 = vpop.permute.xlu0 %1470
        %1472 = vrot.lane.b32.xlu0 %v1099, 64
        %v1473 = vpop.permute.xlu0 %1472
        %1474 = vrot.lane.b32.xlu0 %v1101, 64
        %v1475 = vpop.permute.xlu0 %1474
        %1476 = vrot.lane.b32.xlu0 %v1104, 64
        %v1477 = vpop.permute.xlu0 %1476
        %1478 = vrot.lane.b32.xlu0 %v1106, 64
        %v1479 = vpop.permute.xlu0 %1478
        %1480 = vrot.lane.b32.xlu0 %v1109, 64
        %v1481 = vpop.permute.xlu0 %1480
        %1482 = vrot.lane.b32.xlu0 %v1111, 64
        %v1483 = vpop.permute.xlu0 %1482
        %1484 = vrot.lane.b32.xlu0 %v1114, 64
        %v1485 = vpop.permute.xlu0 %1484
        %1486 = vrot.lane.b32.xlu0 %v1116, 64
        %v1487 = vpop.permute.xlu0 %1486
        %1488 = vrot.lane.b32.xlu0 %v1119, 64
        %v1489 = vpop.permute.xlu0 %1488
        %1490 = vrot.lane.b32.xlu0 %v1121, 64
        %v1491 = vpop.permute.xlu0 %1490
        %1508 = vrot.lane.b32.xlu0 %v1084, 32
        %v1509 = vpop.permute.xlu0 %1508
        %1510 = vrot.lane.b32.xlu0 %v1086, 32
        %v1511 = vpop.permute.xlu0 %1510
        %1512 = vrot.lane.b32.xlu0 %v1089, 32
        %v1513 = vpop.permute.xlu0 %1512
        %1514 = vrot.lane.b32.xlu0 %v1091, 32
        %v1515 = vpop.permute.xlu0 %1514
        %1516 = vrot.lane.b32.xlu0 %v1094, 32
        %v1517 = vpop.permute.xlu0 %1516
        %1518 = vrot.lane.b32.xlu0 %v1096, 32
        %v1519 = vpop.permute.xlu0 %1518
        %1520 = vrot.lane.b32.xlu0 %v1099, 32
        %v1521 = vpop.permute.xlu0 %1520
        %1522 = vrot.lane.b32.xlu0 %v1101, 32
        %v1523 = vpop.permute.xlu0 %1522
        %1524 = vrot.lane.b32.xlu0 %v1104, 32
        %v1525 = vpop.permute.xlu0 %1524
        %1526 = vrot.lane.b32.xlu0 %v1106, 32
        %v1527 = vpop.permute.xlu0 %1526
        %1528 = vrot.lane.b32.xlu0 %v1109, 32
        %v1529 = vpop.permute.xlu0 %1528
        %1530 = vrot.lane.b32.xlu0 %v1111, 32
        %v1531 = vpop.permute.xlu0 %1530
        %1532 = vrot.lane.b32.xlu0 %v1114, 32
        %v1533 = vpop.permute.xlu0 %1532
        %1534 = vrot.lane.b32.xlu0 %v1116, 32
        %v1535 = vpop.permute.xlu0 %1534
        %1536 = vrot.lane.b32.xlu0 %v1119, 32
        %v1537 = vpop.permute.xlu0 %1536
        %1538 = vrot.lane.b32.xlu0 %v1121, 32
        %v1539 = vpop.permute.xlu0 %1538
        %v1556 = vpack.c.bf16 %v1084, %v1084
        %v1557 = vpack.c.bf16 %v1086, %v1086
        %v1558 = vpack.c.bf16 %v1089, %v1089
        %v1559 = vpack.c.bf16 %v1091, %v1091
        %v1560 = vpack.c.bf16 %v1094, %v1094
        %v1561 = vpack.c.bf16 %v1096, %v1096
        %v1562 = vpack.c.bf16 %v1099, %v1099
        %v1563 = vpack.c.bf16 %v1101, %v1101
        %v1564 = vpack.c.bf16 %v1104, %v1104
        %v1565 = vpack.c.bf16 %v1106, %v1106
        %v1566 = vpack.c.bf16 %v1109, %v1109
        %v1567 = vpack.c.bf16 %v1111, %v1111
        %v1568 = vpack.c.bf16 %v1114, %v1114
        %v1569 = vpack.c.bf16 %v1116, %v1116
        %v1570 = vpack.c.bf16 %v1119, %v1119
        %v1571 = vpack.c.bf16 %v1121, %v1121
        %v1572 = vpack.c.bf16 %v1413, %v1413
        %v1573 = vpack.c.bf16 %v1415, %v1415
        %v1574 = vpack.c.bf16 %v1417, %v1417
        %v1575 = vpack.c.bf16 %v1419, %v1419
        %v1576 = vpack.c.bf16 %v1421, %v1421
        %v1577 = vpack.c.bf16 %v1423, %v1423
        %v1578 = vpack.c.bf16 %v1425, %v1425
        %v1579 = vpack.c.bf16 %v1427, %v1427
        %v1580 = vpack.c.bf16 %v1429, %v1429
        %v1581 = vpack.c.bf16 %v1431, %v1431
        %v1582 = vpack.c.bf16 %v1433, %v1433
        %v1583 = vpack.c.bf16 %v1435, %v1435
        %v1584 = vpack.c.bf16 %v1437, %v1437
        %v1585 = vpack.c.bf16 %v1439, %v1439
        %v1586 = vpack.c.bf16 %v1441, %v1441
        %v1587 = vpack.c.bf16 %v1443, %v1443
        %v1588 = vpack.c.bf16 %v1461, %v1461
        %v1589 = vpack.c.bf16 %v1463, %v1463
        %v1590 = vpack.c.bf16 %v1465, %v1465
        %v1591 = vpack.c.bf16 %v1467, %v1467
        %v1592 = vpack.c.bf16 %v1469, %v1469
        %v1593 = vpack.c.bf16 %v1471, %v1471
        %v1594 = vpack.c.bf16 %v1473, %v1473
        %v1595 = vpack.c.bf16 %v1475, %v1475
        %v1596 = vpack.c.bf16 %v1477, %v1477
        %v1597 = vpack.c.bf16 %v1479, %v1479
        %v1598 = vpack.c.bf16 %v1481, %v1481
        %v1599 = vpack.c.bf16 %v1483, %v1483
        %v1600 = vpack.c.bf16 %v1485, %v1485
        %v1601 = vpack.c.bf16 %v1487, %v1487
        %v1602 = vpack.c.bf16 %v1489, %v1489
        %v1603 = vpack.c.bf16 %v1491, %v1491
        %v1604 = vpack.c.bf16 %v1509, %v1509
        %v1605 = vpack.c.bf16 %v1511, %v1511
        %v1606 = vpack.c.bf16 %v1513, %v1513
        %v1607 = vpack.c.bf16 %v1515, %v1515
        %v1608 = vpack.c.bf16 %v1517, %v1517
        %v1609 = vpack.c.bf16 %v1519, %v1519
        %v1610 = vpack.c.bf16 %v1521, %v1521
        %v1611 = vpack.c.bf16 %v1523, %v1523
        %v1612 = vpack.c.bf16 %v1525, %v1525
        %v1613 = vpack.c.bf16 %v1527, %v1527
        %v1614 = vpack.c.bf16 %v1529, %v1529
        %v1615 = vpack.c.bf16 %v1531, %v1531
        %v1616 = vpack.c.bf16 %v1533, %v1533
        %v1617 = vpack.c.bf16 %v1535, %v1535
        %v1618 = vpack.c.bf16 %v1537, %v1537
        %v1619 = vpack.c.bf16 %v1539, %v1539
        %1636 = vrot.lane.b32.xlu0 %v1133, 96
        %v1637 = vpop.permute.xlu0 %1636
        %1638 = vrot.lane.b32.xlu0 %v1135, 96
        %v1639 = vpop.permute.xlu0 %1638
        %1640 = vrot.lane.b32.xlu0 %v1138, 96
        %v1641 = vpop.permute.xlu0 %1640
        %1642 = vrot.lane.b32.xlu0 %v1140, 96
        %v1643 = vpop.permute.xlu0 %1642
        %1644 = vrot.lane.b32.xlu0 %v1143, 96
        %v1645 = vpop.permute.xlu0 %1644
        %1646 = vrot.lane.b32.xlu0 %v1145, 96
        %v1647 = vpop.permute.xlu0 %1646
        %1648 = vrot.lane.b32.xlu0 %v1148, 96
        %v1649 = vpop.permute.xlu0 %1648
        %1650 = vrot.lane.b32.xlu0 %v1150, 96
        %v1651 = vpop.permute.xlu0 %1650
        %1652 = vrot.lane.b32.xlu0 %v1153, 96
        %v1653 = vpop.permute.xlu0 %1652
        %1654 = vrot.lane.b32.xlu0 %v1155, 96
        %v1655 = vpop.permute.xlu0 %1654
        %1656 = vrot.lane.b32.xlu0 %v1158, 96
        %v1657 = vpop.permute.xlu0 %1656
        %1658 = vrot.lane.b32.xlu0 %v1160, 96
        %v1659 = vpop.permute.xlu0 %1658
        %1660 = vrot.lane.b32.xlu0 %v1163, 96
        %v1661 = vpop.permute.xlu0 %1660
        %1662 = vrot.lane.b32.xlu0 %v1165, 96
        %v1663 = vpop.permute.xlu0 %1662
        %1664 = vrot.lane.b32.xlu0 %v1168, 96
        %v1665 = vpop.permute.xlu0 %1664
        %1666 = vrot.lane.b32.xlu0 %v1170, 96
        %v1667 = vpop.permute.xlu0 %1666
        %1684 = vrot.lane.b32.xlu0 %v1133, 64
        %v1685 = vpop.permute.xlu0 %1684
        %1686 = vrot.lane.b32.xlu0 %v1135, 64
        %v1687 = vpop.permute.xlu0 %1686
        %1688 = vrot.lane.b32.xlu0 %v1138, 64
        %v1689 = vpop.permute.xlu0 %1688
        %1690 = vrot.lane.b32.xlu0 %v1140, 64
        %v1691 = vpop.permute.xlu0 %1690
        %1692 = vrot.lane.b32.xlu0 %v1143, 64
        %v1693 = vpop.permute.xlu0 %1692
        %1694 = vrot.lane.b32.xlu0 %v1145, 64
        %v1695 = vpop.permute.xlu0 %1694
        %1696 = vrot.lane.b32.xlu0 %v1148, 64
        %v1697 = vpop.permute.xlu0 %1696
        %1698 = vrot.lane.b32.xlu0 %v1150, 64
        %v1699 = vpop.permute.xlu0 %1698
        %1700 = vrot.lane.b32.xlu0 %v1153, 64
        %v1701 = vpop.permute.xlu0 %1700
        %1702 = vrot.lane.b32.xlu0 %v1155, 64
        %v1703 = vpop.permute.xlu0 %1702
        %1704 = vrot.lane.b32.xlu0 %v1158, 64
        %v1705 = vpop.permute.xlu0 %1704
        %1706 = vrot.lane.b32.xlu0 %v1160, 64
        %v1707 = vpop.permute.xlu0 %1706
        %1708 = vrot.lane.b32.xlu0 %v1163, 64
        %v1709 = vpop.permute.xlu0 %1708
        %1710 = vrot.lane.b32.xlu0 %v1165, 64
        %v1711 = vpop.permute.xlu0 %1710
        %1712 = vrot.lane.b32.xlu0 %v1168, 64
        %v1713 = vpop.permute.xlu0 %1712
        %1714 = vrot.lane.b32.xlu0 %v1170, 64
        %v1715 = vpop.permute.xlu0 %1714
        %1732 = vrot.lane.b32.xlu0 %v1133, 32
        %v1733 = vpop.permute.xlu0 %1732
        %1734 = vrot.lane.b32.xlu0 %v1135, 32
        %v1735 = vpop.permute.xlu0 %1734
        %1736 = vrot.lane.b32.xlu0 %v1138, 32
        %v1737 = vpop.permute.xlu0 %1736
        %1738 = vrot.lane.b32.xlu0 %v1140, 32
        %v1739 = vpop.permute.xlu0 %1738
        %1740 = vrot.lane.b32.xlu0 %v1143, 32
        %v1741 = vpop.permute.xlu0 %1740
        %1742 = vrot.lane.b32.xlu0 %v1145, 32
        %v1743 = vpop.permute.xlu0 %1742
        %1744 = vrot.lane.b32.xlu0 %v1148, 32
        %v1745 = vpop.permute.xlu0 %1744
        %1746 = vrot.lane.b32.xlu0 %v1150, 32
        %v1747 = vpop.permute.xlu0 %1746
        %1748 = vrot.lane.b32.xlu0 %v1153, 32
        %v1749 = vpop.permute.xlu0 %1748
        %1750 = vrot.lane.b32.xlu0 %v1155, 32
        %v1751 = vpop.permute.xlu0 %1750
        %1752 = vrot.lane.b32.xlu0 %v1158, 32
        %v1753 = vpop.permute.xlu0 %1752
        %1754 = vrot.lane.b32.xlu0 %v1160, 32
        %v1755 = vpop.permute.xlu0 %1754
        %1756 = vrot.lane.b32.xlu0 %v1163, 32
        %v1757 = vpop.permute.xlu0 %1756
        %1758 = vrot.lane.b32.xlu0 %v1165, 32
        %v1759 = vpop.permute.xlu0 %1758
        %1760 = vrot.lane.b32.xlu0 %v1168, 32
        %v1761 = vpop.permute.xlu0 %1760
        %1762 = vrot.lane.b32.xlu0 %v1170, 32
        %v1763 = vpop.permute.xlu0 %1762
        %v1780 = vpack.c.bf16 %v1133, %v1133
        %v1781 = vpack.c.bf16 %v1135, %v1135
        %v1782 = vpack.c.bf16 %v1138, %v1138
        %v1783 = vpack.c.bf16 %v1140, %v1140
        %v1784 = vpack.c.bf16 %v1143, %v1143
        %v1785 = vpack.c.bf16 %v1145, %v1145
        %v1786 = vpack.c.bf16 %v1148, %v1148
        %v1787 = vpack.c.bf16 %v1150, %v1150
        %v1788 = vpack.c.bf16 %v1153, %v1153
        %v1789 = vpack.c.bf16 %v1155, %v1155
        %v1790 = vpack.c.bf16 %v1158, %v1158
        %v1791 = vpack.c.bf16 %v1160, %v1160
        %v1792 = vpack.c.bf16 %v1163, %v1163
        %v1793 = vpack.c.bf16 %v1165, %v1165
        %v1794 = vpack.c.bf16 %v1168, %v1168
        %v1795 = vpack.c.bf16 %v1170, %v1170
        %v1796 = vpack.c.bf16 %v1637, %v1637
        %v1797 = vpack.c.bf16 %v1639, %v1639
        %v1798 = vpack.c.bf16 %v1641, %v1641
        %v1799 = vpack.c.bf16 %v1643, %v1643
        %v1800 = vpack.c.bf16 %v1645, %v1645
        %v1801 = vpack.c.bf16 %v1647, %v1647
        %v1802 = vpack.c.bf16 %v1649, %v1649
        %v1803 = vpack.c.bf16 %v1651, %v1651
        %v1804 = vpack.c.bf16 %v1653, %v1653
        %v1805 = vpack.c.bf16 %v1655, %v1655
        %v1806 = vpack.c.bf16 %v1657, %v1657
        %v1807 = vpack.c.bf16 %v1659, %v1659
        %v1808 = vpack.c.bf16 %v1661, %v1661
        %v1809 = vpack.c.bf16 %v1663, %v1663
        %v1810 = vpack.c.bf16 %v1665, %v1665
        %v1811 = vpack.c.bf16 %v1667, %v1667
        %v1812 = vpack.c.bf16 %v1685, %v1685
        %v1813 = vpack.c.bf16 %v1687, %v1687
        %v1814 = vpack.c.bf16 %v1689, %v1689
        %v1815 = vpack.c.bf16 %v1691, %v1691
        %v1816 = vpack.c.bf16 %v1693, %v1693
        %v1817 = vpack.c.bf16 %v1695, %v1695
        %v1818 = vpack.c.bf16 %v1697, %v1697
        %v1819 = vpack.c.bf16 %v1699, %v1699
        %v1820 = vpack.c.bf16 %v1701, %v1701
        %v1821 = vpack.c.bf16 %v1703, %v1703
        %v1822 = vpack.c.bf16 %v1705, %v1705
        %v1823 = vpack.c.bf16 %v1707, %v1707
        %v1824 = vpack.c.bf16 %v1709, %v1709
        %v1825 = vpack.c.bf16 %v1711, %v1711
        %v1826 = vpack.c.bf16 %v1713, %v1713
        %v1827 = vpack.c.bf16 %v1715, %v1715
        %v1828 = vpack.c.bf16 %v1733, %v1733
        %v1829 = vpack.c.bf16 %v1735, %v1735
        %v1830 = vpack.c.bf16 %v1737, %v1737
        %v1831 = vpack.c.bf16 %v1739, %v1739
        %v1832 = vpack.c.bf16 %v1741, %v1741
        %v1833 = vpack.c.bf16 %v1743, %v1743
        %v1834 = vpack.c.bf16 %v1745, %v1745
        %v1835 = vpack.c.bf16 %v1747, %v1747
        %v1836 = vpack.c.bf16 %v1749, %v1749
        %v1837 = vpack.c.bf16 %v1751, %v1751
        %v1838 = vpack.c.bf16 %v1753, %v1753
        %v1839 = vpack.c.bf16 %v1755, %v1755
        %v1840 = vpack.c.bf16 %v1757, %v1757
        %v1841 = vpack.c.bf16 %v1759, %v1759
        %v1842 = vpack.c.bf16 %v1761, %v1761
        %v1843 = vpack.c.bf16 %v1763, %v1763
        %v1860 = vunpack.c.l.b16 %v1332
        %v1861 = vunpack.c.l.b16 %v1333
        %v1862 = vunpack.c.l.b16 %v1334
        %v1863 = vunpack.c.l.b16 %v1335
        %v1864 = vunpack.c.l.b16 %v1336
        %v1865 = vunpack.c.l.b16 %v1337
        %v1866 = vunpack.c.l.b16 %v1338
        %v1867 = vunpack.c.l.b16 %v1339
        %v1868 = vunpack.c.l.b16 %v1340
        %v1869 = vunpack.c.l.b16 %v1341
        %v1870 = vunpack.c.l.b16 %v1342
        %v1871 = vunpack.c.l.b16 %v1343
        %v1872 = vunpack.c.l.b16 %v1344
        %v1873 = vunpack.c.l.b16 %v1345
        %v1874 = vunpack.c.l.b16 %v1346
        %v1875 = vunpack.c.l.b16 %v1347
        %v1876 = vpack.c.b16 %v1861, %v1860
        %v1877 = vpack.c.b16 %v1863, %v1862
        %v1878 = vpack.c.b16 %v1865, %v1864
        %v1879 = vpack.c.b16 %v1867, %v1866
        %v1880 = vpack.c.b16 %v1869, %v1868
        %v1881 = vpack.c.b16 %v1871, %v1870
        %v1882 = vpack.c.b16 %v1873, %v1872
        %v1883 = vpack.c.b16 %v1875, %v1874
        %v1900 = vunpack.c.l.b16 %v1556
        %v1901 = vunpack.c.l.b16 %v1557
        %v1902 = vunpack.c.l.b16 %v1558
        %v1903 = vunpack.c.l.b16 %v1559
        %v1904 = vunpack.c.l.b16 %v1560
        %v1905 = vunpack.c.l.b16 %v1561
        %v1906 = vunpack.c.l.b16 %v1562
        %v1907 = vunpack.c.l.b16 %v1563
        %v1908 = vunpack.c.l.b16 %v1564
        %v1909 = vunpack.c.l.b16 %v1565
        %v1910 = vunpack.c.l.b16 %v1566
        %v1911 = vunpack.c.l.b16 %v1567
        %v1912 = vunpack.c.l.b16 %v1568
        %v1913 = vunpack.c.l.b16 %v1569
        %v1914 = vunpack.c.l.b16 %v1570
        %v1915 = vunpack.c.l.b16 %v1571
        %v1916 = vpack.c.b16 %v1901, %v1900
        %v1917 = vpack.c.b16 %v1903, %v1902
        %v1918 = vpack.c.b16 %v1905, %v1904
        %v1919 = vpack.c.b16 %v1907, %v1906
        %v1920 = vpack.c.b16 %v1909, %v1908
        %v1921 = vpack.c.b16 %v1911, %v1910
        %v1922 = vpack.c.b16 %v1913, %v1912
        %v1923 = vpack.c.b16 %v1915, %v1914
        %vm1924 = vcmask 261120
        %v1926 = vsel %vm1924, %v1876, 0
        %v1929 = vsel %vm1924, %v1877, 0
        %v1932 = vsel %vm1924, %v1878, 0
        %v1935 = vsel %vm1924, %v1879, 0
        %v1938 = vsel %vm1924, %v1880, 0
        %v1941 = vsel %vm1924, %v1881, 0
        %v1944 = vsel %vm1924, %v1882, 0
        %v1947 = vsel %vm1924, %v1883, 0
        %v1950 = vsel %vm1924, %v1916, 0
        %v1953 = vsel %vm1924, %v1917, 0
        %v1956 = vsel %vm1924, %v1918, 0
        %v1959 = vsel %vm1924, %v1919, 0
        %v1962 = vsel %vm1924, %v1920, 0
        %v1965 = vsel %vm1924, %v1921, 0
        %v1968 = vsel %vm1924, %v1922, 0
        %v1971 = vsel %vm1924, %v1923, 0
        %1973 = vmatpush.bf16.xpose.msra.mxu0 %v1971
        %1974 = vmatpush.bf16.xpose.msra.mxu0 %v1968
        %1975 = vmatpush.bf16.xpose.msra.mxu0 %v1965
        %1976 = vmatpush.bf16.xpose.msra.mxu0 %v1962
        %1977 = vmatpush.bf16.xpose.msra.mxu0 %v1959
        %1978 = vmatpush.bf16.xpose.msra.mxu0 %v1956
        %1979 = vmatpush.bf16.xpose.msra.mxu0 %v1953
        %1980 = vmatpush.bf16.xpose.msra.mxu0 %v1950
        %1981 = vmatmul.bf16.gmra.mxu0 %v1926
        %v1982 = vpop.f32.mrf.mxu0
        %v1983 = vadd.f32 0.0, %v1982
        %v1984 = vpop.f32.mrf.mxu0
        %v1985 = vadd.f32 0.0, %v1984
        %1986 = vmatmul.bf16.gmra.mxu0 %v1929
        %v1987 = vpop.f32.mrf.mxu0
        %v1988 = vadd.f32 0.0, %v1987
        %v1989 = vpop.f32.mrf.mxu0
        %v1990 = vadd.f32 0.0, %v1989
        %1991 = vmatmul.bf16.gmra.mxu0 %v1932
        %v1992 = vpop.f32.mrf.mxu0
        %v1993 = vadd.f32 0.0, %v1992
        %v1994 = vpop.f32.mrf.mxu0
        %v1995 = vadd.f32 0.0, %v1994
        %1996 = vmatmul.bf16.gmra.mxu0 %v1935
        %v1997 = vpop.f32.mrf.mxu0
        %v1998 = vadd.f32 0.0, %v1997
        %v1999 = vpop.f32.mrf.mxu0
        %v2000 = vadd.f32 0.0, %v1999
        %2001 = vmatmul.bf16.gmra.mxu0 %v1938
        %v2002 = vpop.f32.mrf.mxu0
        %v2003 = vadd.f32 0.0, %v2002
        %v2004 = vpop.f32.mrf.mxu0
        %v2005 = vadd.f32 0.0, %v2004
        %2006 = vmatmul.bf16.gmra.mxu0 %v1941
        %v2007 = vpop.f32.mrf.mxu0
        %v2008 = vadd.f32 0.0, %v2007
        %v2009 = vpop.f32.mrf.mxu0
        %v2010 = vadd.f32 0.0, %v2009
        %2011 = vmatmul.bf16.gmra.mxu0 %v1944
        %v2012 = vpop.f32.mrf.mxu0
        %v2013 = vadd.f32 0.0, %v2012
        %v2014 = vpop.f32.mrf.mxu0
        %v2015 = vadd.f32 0.0, %v2014
        %2016 = vmatmul.bf16.gmra.mxu0 %v1947
        %v2017 = vpop.f32.mrf.mxu0
        %v2018 = vadd.f32 0.0, %v2017
        %v2019 = vpop.f32.mrf.mxu0
        %v2020 = vadd.f32 0.0, %v2019
        %2021 = vdwg.mxu0
        %v2038 = vunpack.c.l.b16 %v1348
        %v2039 = vunpack.c.l.b16 %v1349
        %v2040 = vunpack.c.l.b16 %v1350
        %v2041 = vunpack.c.l.b16 %v1351
        %v2042 = vunpack.c.l.b16 %v1352
        %v2043 = vunpack.c.l.b16 %v1353
        %v2044 = vunpack.c.l.b16 %v1354
        %v2045 = vunpack.c.l.b16 %v1355
        %v2046 = vunpack.c.l.b16 %v1356
        %v2047 = vunpack.c.l.b16 %v1357
        %v2048 = vunpack.c.l.b16 %v1358
        %v2049 = vunpack.c.l.b16 %v1359
        %v2050 = vunpack.c.l.b16 %v1360
        %v2051 = vunpack.c.l.b16 %v1361
        %v2052 = vunpack.c.l.b16 %v1362
        %v2053 = vunpack.c.l.b16 %v1363
        %v2054 = vpack.c.b16 %v2039, %v2038
        %v2055 = vpack.c.b16 %v2041, %v2040
        %v2056 = vpack.c.b16 %v2043, %v2042
        %v2057 = vpack.c.b16 %v2045, %v2044
        %v2058 = vpack.c.b16 %v2047, %v2046
        %v2059 = vpack.c.b16 %v2049, %v2048
        %v2060 = vpack.c.b16 %v2051, %v2050
        %v2061 = vpack.c.b16 %v2053, %v2052
        %v2078 = vunpack.c.l.b16 %v1572
        %v2079 = vunpack.c.l.b16 %v1573
        %v2080 = vunpack.c.l.b16 %v1574
        %v2081 = vunpack.c.l.b16 %v1575
        %v2082 = vunpack.c.l.b16 %v1576
        %v2083 = vunpack.c.l.b16 %v1577
        %v2084 = vunpack.c.l.b16 %v1578
        %v2085 = vunpack.c.l.b16 %v1579
        %v2086 = vunpack.c.l.b16 %v1580
        %v2087 = vunpack.c.l.b16 %v1581
        %v2088 = vunpack.c.l.b16 %v1582
        %v2089 = vunpack.c.l.b16 %v1583
        %v2090 = vunpack.c.l.b16 %v1584
        %v2091 = vunpack.c.l.b16 %v1585
        %v2092 = vunpack.c.l.b16 %v1586
        %v2093 = vunpack.c.l.b16 %v1587
        %v2094 = vpack.c.b16 %v2079, %v2078
        %v2095 = vpack.c.b16 %v2081, %v2080
        %v2096 = vpack.c.b16 %v2083, %v2082
        %v2097 = vpack.c.b16 %v2085, %v2084
        %v2098 = vpack.c.b16 %v2087, %v2086
        %v2099 = vpack.c.b16 %v2089, %v2088
        %v2100 = vpack.c.b16 %v2091, %v2090
        %v2101 = vpack.c.b16 %v2093, %v2092
        %v2103 = vsel %vm1924, %v2054, 0
        %v2106 = vsel %vm1924, %v2055, 0
        %v2109 = vsel %vm1924, %v2056, 0
        %v2112 = vsel %vm1924, %v2057, 0
        %v2115 = vsel %vm1924, %v2058, 0
        %v2118 = vsel %vm1924, %v2059, 0
        %v2121 = vsel %vm1924, %v2060, 0
        %v2124 = vsel %vm1924, %v2061, 0
        %v2127 = vsel %vm1924, %v2094, 0
        %v2130 = vsel %vm1924, %v2095, 0
        %v2133 = vsel %vm1924, %v2096, 0
        %v2136 = vsel %vm1924, %v2097, 0
        %v2139 = vsel %vm1924, %v2098, 0
        %v2142 = vsel %vm1924, %v2099, 0
        %v2145 = vsel %vm1924, %v2100, 0
        %v2148 = vsel %vm1924, %v2101, 0
        %2150 = vmatpush.bf16.xpose.msra.mxu0 %v2148
        %2151 = vmatpush.bf16.xpose.msra.mxu0 %v2145
        %2152 = vmatpush.bf16.xpose.msra.mxu0 %v2142
        %2153 = vmatpush.bf16.xpose.msra.mxu0 %v2139
        %2154 = vmatpush.bf16.xpose.msra.mxu0 %v2136
        %2155 = vmatpush.bf16.xpose.msra.mxu0 %v2133
        %2156 = vmatpush.bf16.xpose.msra.mxu0 %v2130
        %2157 = vmatpush.bf16.xpose.msra.mxu0 %v2127
        %2158 = vmatmul.bf16.gmra.mxu0 %v2103
        %v2159 = vpop.f32.mrf.mxu0
        %v2160 = vadd.f32 0.0, %v2159
        %v2161 = vpop.f32.mrf.mxu0
        %v2162 = vadd.f32 0.0, %v2161
        %2163 = vmatmul.bf16.gmra.mxu0 %v2106
        %v2164 = vpop.f32.mrf.mxu0
        %v2165 = vadd.f32 0.0, %v2164
        %v2166 = vpop.f32.mrf.mxu0
        %v2167 = vadd.f32 0.0, %v2166
        %2168 = vmatmul.bf16.gmra.mxu0 %v2109
        %v2169 = vpop.f32.mrf.mxu0
        %v2170 = vadd.f32 0.0, %v2169
        %v2171 = vpop.f32.mrf.mxu0
        %v2172 = vadd.f32 0.0, %v2171
        %2173 = vmatmul.bf16.gmra.mxu0 %v2112
        %v2174 = vpop.f32.mrf.mxu0
        %v2175 = vadd.f32 0.0, %v2174
        %v2176 = vpop.f32.mrf.mxu0
        %v2177 = vadd.f32 0.0, %v2176
        %2178 = vmatmul.bf16.gmra.mxu0 %v2115
        %v2179 = vpop.f32.mrf.mxu0
        %v2180 = vadd.f32 0.0, %v2179
        %v2181 = vpop.f32.mrf.mxu0
        %v2182 = vadd.f32 0.0, %v2181
        %2183 = vmatmul.bf16.gmra.mxu0 %v2118
        %v2184 = vpop.f32.mrf.mxu0
        %v2185 = vadd.f32 0.0, %v2184
        %v2186 = vpop.f32.mrf.mxu0
        %v2187 = vadd.f32 0.0, %v2186
        %2188 = vmatmul.bf16.gmra.mxu0 %v2121
        %v2189 = vpop.f32.mrf.mxu0
        %v2190 = vadd.f32 0.0, %v2189
        %v2191 = vpop.f32.mrf.mxu0
        %v2192 = vadd.f32 0.0, %v2191
        %2193 = vmatmul.bf16.gmra.mxu0 %v2124
        %v2194 = vpop.f32.mrf.mxu0
        %v2195 = vadd.f32 0.0, %v2194
        %v2196 = vpop.f32.mrf.mxu0
        %v2197 = vadd.f32 0.0, %v2196
        %2198 = vdwg.mxu0
        %v2215 = vunpack.c.l.b16 %v1364
        %v2216 = vunpack.c.l.b16 %v1365
        %v2217 = vunpack.c.l.b16 %v1366
        %v2218 = vunpack.c.l.b16 %v1367
        %v2219 = vunpack.c.l.b16 %v1368
        %v2220 = vunpack.c.l.b16 %v1369
        %v2221 = vunpack.c.l.b16 %v1370
        %v2222 = vunpack.c.l.b16 %v1371
        %v2223 = vunpack.c.l.b16 %v1372
        %v2224 = vunpack.c.l.b16 %v1373
        %v2225 = vunpack.c.l.b16 %v1374
        %v2226 = vunpack.c.l.b16 %v1375
        %v2227 = vunpack.c.l.b16 %v1376
        %v2228 = vunpack.c.l.b16 %v1377
        %v2229 = vunpack.c.l.b16 %v1378
        %v2230 = vunpack.c.l.b16 %v1379
        %v2231 = vpack.c.b16 %v2216, %v2215
        %v2232 = vpack.c.b16 %v2218, %v2217
        %v2233 = vpack.c.b16 %v2220, %v2219
        %v2234 = vpack.c.b16 %v2222, %v2221
        %v2235 = vpack.c.b16 %v2224, %v2223
        %v2236 = vpack.c.b16 %v2226, %v2225
        %v2237 = vpack.c.b16 %v2228, %v2227
        %v2238 = vpack.c.b16 %v2230, %v2229
        %v2255 = vunpack.c.l.b16 %v1588
        %v2256 = vunpack.c.l.b16 %v1589
        %v2257 = vunpack.c.l.b16 %v1590
        %v2258 = vunpack.c.l.b16 %v1591
        %v2259 = vunpack.c.l.b16 %v1592
        %v2260 = vunpack.c.l.b16 %v1593
        %v2261 = vunpack.c.l.b16 %v1594
        %v2262 = vunpack.c.l.b16 %v1595
        %v2263 = vunpack.c.l.b16 %v1596
        %v2264 = vunpack.c.l.b16 %v1597
        %v2265 = vunpack.c.l.b16 %v1598
        %v2266 = vunpack.c.l.b16 %v1599
        %v2267 = vunpack.c.l.b16 %v1600
        %v2268 = vunpack.c.l.b16 %v1601
        %v2269 = vunpack.c.l.b16 %v1602
        %v2270 = vunpack.c.l.b16 %v1603
        %v2271 = vpack.c.b16 %v2256, %v2255
        %v2272 = vpack.c.b16 %v2258, %v2257
        %v2273 = vpack.c.b16 %v2260, %v2259
        %v2274 = vpack.c.b16 %v2262, %v2261
        %v2275 = vpack.c.b16 %v2264, %v2263
        %v2276 = vpack.c.b16 %v2266, %v2265
        %v2277 = vpack.c.b16 %v2268, %v2267
        %v2278 = vpack.c.b16 %v2270, %v2269
        %v2280 = vsel %vm1924, %v2231, 0
        %v2283 = vsel %vm1924, %v2232, 0
        %v2286 = vsel %vm1924, %v2233, 0
        %v2289 = vsel %vm1924, %v2234, 0
        %v2292 = vsel %vm1924, %v2235, 0
        %v2295 = vsel %vm1924, %v2236, 0
        %v2298 = vsel %vm1924, %v2237, 0
        %v2301 = vsel %vm1924, %v2238, 0
        %v2304 = vsel %vm1924, %v2271, 0
        %v2307 = vsel %vm1924, %v2272, 0
        %v2310 = vsel %vm1924, %v2273, 0
        %v2313 = vsel %vm1924, %v2274, 0
        %v2316 = vsel %vm1924, %v2275, 0
        %v2319 = vsel %vm1924, %v2276, 0
        %v2322 = vsel %vm1924, %v2277, 0
        %v2325 = vsel %vm1924, %v2278, 0
        %2327 = vmatpush.bf16.xpose.msra.mxu0 %v2325
        %2328 = vmatpush.bf16.xpose.msra.mxu0 %v2322
        %2329 = vmatpush.bf16.xpose.msra.mxu0 %v2319
        %2330 = vmatpush.bf16.xpose.msra.mxu0 %v2316
        %2331 = vmatpush.bf16.xpose.msra.mxu0 %v2313
        %2332 = vmatpush.bf16.xpose.msra.mxu0 %v2310
        %2333 = vmatpush.bf16.xpose.msra.mxu0 %v2307
        %2334 = vmatpush.bf16.xpose.msra.mxu0 %v2304
        %2335 = vmatmul.bf16.gmra.mxu0 %v2280
        %v2336 = vpop.f32.mrf.mxu0
        %v2337 = vadd.f32 0.0, %v2336
        %v2338 = vpop.f32.mrf.mxu0
        %v2339 = vadd.f32 0.0, %v2338
        %2340 = vmatmul.bf16.gmra.mxu0 %v2283
        %v2341 = vpop.f32.mrf.mxu0
        %v2342 = vadd.f32 0.0, %v2341
        %v2343 = vpop.f32.mrf.mxu0
        %v2344 = vadd.f32 0.0, %v2343
        %2345 = vmatmul.bf16.gmra.mxu0 %v2286
        %v2346 = vpop.f32.mrf.mxu0
        %v2347 = vadd.f32 0.0, %v2346
        %v2348 = vpop.f32.mrf.mxu0
        %v2349 = vadd.f32 0.0, %v2348
        %2350 = vmatmul.bf16.gmra.mxu0 %v2289
        %v2351 = vpop.f32.mrf.mxu0
        %v2352 = vadd.f32 0.0, %v2351
        %v2353 = vpop.f32.mrf.mxu0
        %v2354 = vadd.f32 0.0, %v2353
        %2355 = vmatmul.bf16.gmra.mxu0 %v2292
        %v2356 = vpop.f32.mrf.mxu0
        %v2357 = vadd.f32 0.0, %v2356
        %v2358 = vpop.f32.mrf.mxu0
        %v2359 = vadd.f32 0.0, %v2358
        %2360 = vmatmul.bf16.gmra.mxu0 %v2295
        %v2361 = vpop.f32.mrf.mxu0
        %v2362 = vadd.f32 0.0, %v2361
        %v2363 = vpop.f32.mrf.mxu0
        %v2364 = vadd.f32 0.0, %v2363
        %2365 = vmatmul.bf16.gmra.mxu0 %v2298
        %v2366 = vpop.f32.mrf.mxu0
        %v2367 = vadd.f32 0.0, %v2366
        %v2368 = vpop.f32.mrf.mxu0
        %v2369 = vadd.f32 0.0, %v2368
        %2370 = vmatmul.bf16.gmra.mxu0 %v2301
        %v2371 = vpop.f32.mrf.mxu0
        %v2372 = vadd.f32 0.0, %v2371
        %v2373 = vpop.f32.mrf.mxu0
        %v2374 = vadd.f32 0.0, %v2373
        %2375 = vdwg.mxu0
        %v2392 = vunpack.c.l.b16 %v1380
        %v2393 = vunpack.c.l.b16 %v1381
        %v2394 = vunpack.c.l.b16 %v1382
        %v2395 = vunpack.c.l.b16 %v1383
        %v2396 = vunpack.c.l.b16 %v1384
        %v2397 = vunpack.c.l.b16 %v1385
        %v2398 = vunpack.c.l.b16 %v1386
        %v2399 = vunpack.c.l.b16 %v1387
        %v2400 = vunpack.c.l.b16 %v1388
        %v2401 = vunpack.c.l.b16 %v1389
        %v2402 = vunpack.c.l.b16 %v1390
        %v2403 = vunpack.c.l.b16 %v1391
        %v2404 = vunpack.c.l.b16 %v1392
        %v2405 = vunpack.c.l.b16 %v1393
        %v2406 = vunpack.c.l.b16 %v1394
        %v2407 = vunpack.c.l.b16 %v1395
        %v2408 = vpack.c.b16 %v2393, %v2392
        %v2409 = vpack.c.b16 %v2395, %v2394
        %v2410 = vpack.c.b16 %v2397, %v2396
        %v2411 = vpack.c.b16 %v2399, %v2398
        %v2412 = vpack.c.b16 %v2401, %v2400
        %v2413 = vpack.c.b16 %v2403, %v2402
        %v2414 = vpack.c.b16 %v2405, %v2404
        %v2415 = vpack.c.b16 %v2407, %v2406
        %v2432 = vunpack.c.l.b16 %v1604
        %v2433 = vunpack.c.l.b16 %v1605
        %v2434 = vunpack.c.l.b16 %v1606
        %v2435 = vunpack.c.l.b16 %v1607
        %v2436 = vunpack.c.l.b16 %v1608
        %v2437 = vunpack.c.l.b16 %v1609
        %v2438 = vunpack.c.l.b16 %v1610
        %v2439 = vunpack.c.l.b16 %v1611
        %v2440 = vunpack.c.l.b16 %v1612
        %v2441 = vunpack.c.l.b16 %v1613
        %v2442 = vunpack.c.l.b16 %v1614
        %v2443 = vunpack.c.l.b16 %v1615
        %v2444 = vunpack.c.l.b16 %v1616
        %v2445 = vunpack.c.l.b16 %v1617
        %v2446 = vunpack.c.l.b16 %v1618
        %v2447 = vunpack.c.l.b16 %v1619
        %v2448 = vpack.c.b16 %v2433, %v2432
        %v2449 = vpack.c.b16 %v2435, %v2434
        %v2450 = vpack.c.b16 %v2437, %v2436
        %v2451 = vpack.c.b16 %v2439, %v2438
        %v2452 = vpack.c.b16 %v2441, %v2440
        %v2453 = vpack.c.b16 %v2443, %v2442
        %v2454 = vpack.c.b16 %v2445, %v2444
        %v2455 = vpack.c.b16 %v2447, %v2446
        %v2457 = vsel %vm1924, %v2408, 0
        %v2460 = vsel %vm1924, %v2409, 0
        %v2463 = vsel %vm1924, %v2410, 0
        %v2466 = vsel %vm1924, %v2411, 0
        %v2469 = vsel %vm1924, %v2412, 0
        %v2472 = vsel %vm1924, %v2413, 0
        %v2475 = vsel %vm1924, %v2414, 0
        %v2478 = vsel %vm1924, %v2415, 0
        %v2481 = vsel %vm1924, %v2448, 0
        %v2484 = vsel %vm1924, %v2449, 0
        %v2487 = vsel %vm1924, %v2450, 0
        %v2490 = vsel %vm1924, %v2451, 0
        %v2493 = vsel %vm1924, %v2452, 0
        %v2496 = vsel %vm1924, %v2453, 0
        %v2499 = vsel %vm1924, %v2454, 0
        %v2502 = vsel %vm1924, %v2455, 0
        %2504 = vmatpush.bf16.xpose.msra.mxu0 %v2502
        %2505 = vmatpush.bf16.xpose.msra.mxu0 %v2499
        %2506 = vmatpush.bf16.xpose.msra.mxu0 %v2496
        %2507 = vmatpush.bf16.xpose.msra.mxu0 %v2493
        %2508 = vmatpush.bf16.xpose.msra.mxu0 %v2490
        %2509 = vmatpush.bf16.xpose.msra.mxu0 %v2487
        %2510 = vmatpush.bf16.xpose.msra.mxu0 %v2484
        %2511 = vmatpush.bf16.xpose.msra.mxu0 %v2481
        %2512 = vmatmul.bf16.gmra.mxu0 %v2457
        %v2513 = vpop.f32.mrf.mxu0
        %v2514 = vadd.f32 0.0, %v2513
        %v2515 = vpop.f32.mrf.mxu0
        %v2516 = vadd.f32 0.0, %v2515
        %2517 = vmatmul.bf16.gmra.mxu0 %v2460
        %v2518 = vpop.f32.mrf.mxu0
        %v2519 = vadd.f32 0.0, %v2518
        %v2520 = vpop.f32.mrf.mxu0
        %v2521 = vadd.f32 0.0, %v2520
        %2522 = vmatmul.bf16.gmra.mxu0 %v2463
        %v2523 = vpop.f32.mrf.mxu0
        %v2524 = vadd.f32 0.0, %v2523
        %v2525 = vpop.f32.mrf.mxu0
        %v2526 = vadd.f32 0.0, %v2525
        %2527 = vmatmul.bf16.gmra.mxu0 %v2466
        %v2528 = vpop.f32.mrf.mxu0
        %v2529 = vadd.f32 0.0, %v2528
        %v2530 = vpop.f32.mrf.mxu0
        %v2531 = vadd.f32 0.0, %v2530
        %2532 = vmatmul.bf16.gmra.mxu0 %v2469
        %v2533 = vpop.f32.mrf.mxu0
        %v2534 = vadd.f32 0.0, %v2533
        %v2535 = vpop.f32.mrf.mxu0
        %v2536 = vadd.f32 0.0, %v2535
        %2537 = vmatmul.bf16.gmra.mxu0 %v2472
        %v2538 = vpop.f32.mrf.mxu0
        %v2539 = vadd.f32 0.0, %v2538
        %v2540 = vpop.f32.mrf.mxu0
        %v2541 = vadd.f32 0.0, %v2540
        %2542 = vmatmul.bf16.gmra.mxu0 %v2475
        %v2543 = vpop.f32.mrf.mxu0
        %v2544 = vadd.f32 0.0, %v2543
        %v2545 = vpop.f32.mrf.mxu0
        %v2546 = vadd.f32 0.0, %v2545
        %2547 = vmatmul.bf16.gmra.mxu0 %v2478
        %v2548 = vpop.f32.mrf.mxu0
        %v2549 = vadd.f32 0.0, %v2548
        %v2550 = vpop.f32.mrf.mxu0
        %v2551 = vadd.f32 0.0, %v2550
        %2552 = vdwg.mxu0
        %2553 = vmax.xlane.f32.xlu0 %v1983
        %v2554 = vpop.xlane.xlu0 %2553
        %2555 = vmax.xlane.f32.xlu0 %v1985
        %v2556 = vpop.xlane.xlu0 %2555
        %2557 = vmax.xlane.f32.xlu0 %v1988
        %v2558 = vpop.xlane.xlu0 %2557
        %2559 = vmax.xlane.f32.xlu0 %v1990
        %v2560 = vpop.xlane.xlu0 %2559
        %2561 = vmax.xlane.f32.xlu0 %v1993
        %v2562 = vpop.xlane.xlu0 %2561
        %2563 = vmax.xlane.f32.xlu0 %v1995
        %v2564 = vpop.xlane.xlu0 %2563
        %2565 = vmax.xlane.f32.xlu0 %v1998
        %v2566 = vpop.xlane.xlu0 %2565
        %2567 = vmax.xlane.f32.xlu0 %v2000
        %v2568 = vpop.xlane.xlu0 %2567
        %2569 = vmax.xlane.f32.xlu0 %v2003
        %v2570 = vpop.xlane.xlu0 %2569
        %2571 = vmax.xlane.f32.xlu0 %v2005
        %v2572 = vpop.xlane.xlu0 %2571
        %2573 = vmax.xlane.f32.xlu0 %v2008
        %v2574 = vpop.xlane.xlu0 %2573
        %2575 = vmax.xlane.f32.xlu0 %v2010
        %v2576 = vpop.xlane.xlu0 %2575
        %2577 = vmax.xlane.f32.xlu0 %v2013
        %v2578 = vpop.xlane.xlu0 %2577
        %2579 = vmax.xlane.f32.xlu0 %v2015
        %v2580 = vpop.xlane.xlu0 %2579
        %2581 = vmax.xlane.f32.xlu0 %v2018
        %v2582 = vpop.xlane.xlu0 %2581
        %2583 = vmax.xlane.f32.xlu0 %v2020
        %v2584 = vpop.xlane.xlu0 %2583
        %2585 = vmax.xlane.f32.xlu0 %v2160
        %v2586 = vpop.xlane.xlu0 %2585
        %2587 = vmax.xlane.f32.xlu0 %v2162
        %v2588 = vpop.xlane.xlu0 %2587
        %2589 = vmax.xlane.f32.xlu0 %v2165
        %v2590 = vpop.xlane.xlu0 %2589
        %2591 = vmax.xlane.f32.xlu0 %v2167
        %v2592 = vpop.xlane.xlu0 %2591
        %2593 = vmax.xlane.f32.xlu0 %v2170
        %v2594 = vpop.xlane.xlu0 %2593
        %2595 = vmax.xlane.f32.xlu0 %v2172
        %v2596 = vpop.xlane.xlu0 %2595
        %2597 = vmax.xlane.f32.xlu0 %v2175
        %v2598 = vpop.xlane.xlu0 %2597
        %2599 = vmax.xlane.f32.xlu0 %v2177
        %v2600 = vpop.xlane.xlu0 %2599
        %2601 = vmax.xlane.f32.xlu0 %v2180
        %v2602 = vpop.xlane.xlu0 %2601
        %2603 = vmax.xlane.f32.xlu0 %v2182
        %v2604 = vpop.xlane.xlu0 %2603
        %2605 = vmax.xlane.f32.xlu0 %v2185
        %v2606 = vpop.xlane.xlu0 %2605
        %2607 = vmax.xlane.f32.xlu0 %v2187
        %v2608 = vpop.xlane.xlu0 %2607
        %2609 = vmax.xlane.f32.xlu0 %v2190
        %v2610 = vpop.xlane.xlu0 %2609
        %2611 = vmax.xlane.f32.xlu0 %v2192
        %v2612 = vpop.xlane.xlu0 %2611
        %2613 = vmax.xlane.f32.xlu0 %v2195
        %v2614 = vpop.xlane.xlu0 %2613
        %2615 = vmax.xlane.f32.xlu0 %v2197
        %v2616 = vpop.xlane.xlu0 %2615
        %2617 = vmax.xlane.f32.xlu0 %v2337
        %v2618 = vpop.xlane.xlu0 %2617
        %2619 = vmax.xlane.f32.xlu0 %v2339
        %v2620 = vpop.xlane.xlu0 %2619
        %2621 = vmax.xlane.f32.xlu0 %v2342
        %v2622 = vpop.xlane.xlu0 %2621
        %2623 = vmax.xlane.f32.xlu0 %v2344
        %v2624 = vpop.xlane.xlu0 %2623
        %2625 = vmax.xlane.f32.xlu0 %v2347
        %v2626 = vpop.xlane.xlu0 %2625
        %2627 = vmax.xlane.f32.xlu0 %v2349
        %v2628 = vpop.xlane.xlu0 %2627
        %2629 = vmax.xlane.f32.xlu0 %v2352
        %v2630 = vpop.xlane.xlu0 %2629
        %2631 = vmax.xlane.f32.xlu0 %v2354
        %v2632 = vpop.xlane.xlu0 %2631
        %2633 = vmax.xlane.f32.xlu0 %v2357
        %v2634 = vpop.xlane.xlu0 %2633
        %2635 = vmax.xlane.f32.xlu0 %v2359
        %v2636 = vpop.xlane.xlu0 %2635
        %2637 = vmax.xlane.f32.xlu0 %v2362
        %v2638 = vpop.xlane.xlu0 %2637
        %2639 = vmax.xlane.f32.xlu0 %v2364
        %v2640 = vpop.xlane.xlu0 %2639
        %2641 = vmax.xlane.f32.xlu0 %v2367
        %v2642 = vpop.xlane.xlu0 %2641
        %2643 = vmax.xlane.f32.xlu0 %v2369
        %v2644 = vpop.xlane.xlu0 %2643
        %2645 = vmax.xlane.f32.xlu0 %v2372
        %v2646 = vpop.xlane.xlu0 %2645
        %2647 = vmax.xlane.f32.xlu0 %v2374
        %v2648 = vpop.xlane.xlu0 %2647
        %2649 = vmax.xlane.f32.xlu0 %v2514
        %v2650 = vpop.xlane.xlu0 %2649
        %2651 = vmax.xlane.f32.xlu0 %v2516
        %v2652 = vpop.xlane.xlu0 %2651
        %2653 = vmax.xlane.f32.xlu0 %v2519
        %v2654 = vpop.xlane.xlu0 %2653
        %2655 = vmax.xlane.f32.xlu0 %v2521
        %v2656 = vpop.xlane.xlu0 %2655
        %2657 = vmax.xlane.f32.xlu0 %v2524
        %v2658 = vpop.xlane.xlu0 %2657
        %2659 = vmax.xlane.f32.xlu0 %v2526
        %v2660 = vpop.xlane.xlu0 %2659
        %2661 = vmax.xlane.f32.xlu0 %v2529
        %v2662 = vpop.xlane.xlu0 %2661
        %2663 = vmax.xlane.f32.xlu0 %v2531
        %v2664 = vpop.xlane.xlu0 %2663
        %2665 = vmax.xlane.f32.xlu0 %v2534
        %v2666 = vpop.xlane.xlu0 %2665
        %2667 = vmax.xlane.f32.xlu0 %v2536
        %v2668 = vpop.xlane.xlu0 %2667
        %2669 = vmax.xlane.f32.xlu0 %v2539
        %v2670 = vpop.xlane.xlu0 %2669
        %2671 = vmax.xlane.f32.xlu0 %v2541
        %v2672 = vpop.xlane.xlu0 %2671
        %2673 = vmax.xlane.f32.xlu0 %v2544
        %v2674 = vpop.xlane.xlu0 %2673
        %2675 = vmax.xlane.f32.xlu0 %v2546
        %v2676 = vpop.xlane.xlu0 %2675
        %2677 = vmax.xlane.f32.xlu0 %v2549
        %v2678 = vpop.xlane.xlu0 %2677
        %2679 = vmax.xlane.f32.xlu0 %v2551
        %v2680 = vpop.xlane.xlu0 %2679
        %v2681 = vsub.f32 %v1983, %v2554
        %v2682 = vsub.f32 %v1985, %v2556
        %v2683 = vsub.f32 %v1988, %v2558
        %v2684 = vsub.f32 %v1990, %v2560
        %v2685 = vsub.f32 %v1993, %v2562
        %v2686 = vsub.f32 %v1995, %v2564
        %v2687 = vsub.f32 %v1998, %v2566
        %v2688 = vsub.f32 %v2000, %v2568
        %v2689 = vsub.f32 %v2003, %v2570
        %v2690 = vsub.f32 %v2005, %v2572
        %v2691 = vsub.f32 %v2008, %v2574
        %v2692 = vsub.f32 %v2010, %v2576
        %v2693 = vsub.f32 %v2013, %v2578
        %v2694 = vsub.f32 %v2015, %v2580
        %v2695 = vsub.f32 %v2018, %v2582
        %v2696 = vsub.f32 %v2020, %v2584
        %v2697 = vsub.f32 %v2160, %v2586
        %v2698 = vsub.f32 %v2162, %v2588
        %v2699 = vsub.f32 %v2165, %v2590
        %v2700 = vsub.f32 %v2167, %v2592
        %v2701 = vsub.f32 %v2170, %v2594
        %v2702 = vsub.f32 %v2172, %v2596
        %v2703 = vsub.f32 %v2175, %v2598
        %v2704 = vsub.f32 %v2177, %v2600
        %v2705 = vsub.f32 %v2180, %v2602
        %v2706 = vsub.f32 %v2182, %v2604
        %v2707 = vsub.f32 %v2185, %v2606
        %v2708 = vsub.f32 %v2187, %v2608
        %v2709 = vsub.f32 %v2190, %v2610
        %v2710 = vsub.f32 %v2192, %v2612
        %v2711 = vsub.f32 %v2195, %v2614
        %v2712 = vsub.f32 %v2197, %v2616
        %v2713 = vsub.f32 %v2337, %v2618
        %v2714 = vsub.f32 %v2339, %v2620
        %v2715 = vsub.f32 %v2342, %v2622
        %v2716 = vsub.f32 %v2344, %v2624
        %v2717 = vsub.f32 %v2347, %v2626
        %v2718 = vsub.f32 %v2349, %v2628
        %v2719 = vsub.f32 %v2352, %v2630
        %v2720 = vsub.f32 %v2354, %v2632
        %v2721 = vsub.f32 %v2357, %v2634
        %v2722 = vsub.f32 %v2359, %v2636
        %v2723 = vsub.f32 %v2362, %v2638
        %v2724 = vsub.f32 %v2364, %v2640
        %v2725 = vsub.f32 %v2367, %v2642
        %v2726 = vsub.f32 %v2369, %v2644
        %v2727 = vsub.f32 %v2372, %v2646
        %v2728 = vsub.f32 %v2374, %v2648
        %v2729 = vsub.f32 %v2514, %v2650
        %v2730 = vsub.f32 %v2516, %v2652
        %v2731 = vsub.f32 %v2519, %v2654
        %v2732 = vsub.f32 %v2521, %v2656
        %v2733 = vsub.f32 %v2524, %v2658
        %v2734 = vsub.f32 %v2526, %v2660
        %v2735 = vsub.f32 %v2529, %v2662
        %v2736 = vsub.f32 %v2531, %v2664
        %v2737 = vsub.f32 %v2534, %v2666
        %v2738 = vsub.f32 %v2536, %v2668
        %v2739 = vsub.f32 %v2539, %v2670
        %v2740 = vsub.f32 %v2541, %v2672
        %v2741 = vsub.f32 %v2544, %v2674
        %v2742 = vsub.f32 %v2546, %v2676
        %v2743 = vsub.f32 %v2549, %v2678
        %v2744 = vsub.f32 %v2551, %v2680
        %v2745 = vmul.f32 %v2681, 1.442695
        %v2746 = vpow.pop %v2745
        %v2747 = vmul.f32 %v2682, 1.442695
        %v2748 = vpow.pop %v2747
        %v2749 = vmul.f32 %v2683, 1.442695
        %v2750 = vpow.pop %v2749
        %v2751 = vmul.f32 %v2684, 1.442695
        %v2752 = vpow.pop %v2751
        %v2753 = vmul.f32 %v2685, 1.442695
        %v2754 = vpow.pop %v2753
        %v2755 = vmul.f32 %v2686, 1.442695
        %v2756 = vpow.pop %v2755
        %v2757 = vmul.f32 %v2687, 1.442695
        %v2758 = vpow.pop %v2757
        %v2759 = vmul.f32 %v2688, 1.442695
        %v2760 = vpow.pop %v2759
        %v2761 = vmul.f32 %v2689, 1.442695
        %v2762 = vpow.pop %v2761
        %v2763 = vmul.f32 %v2690, 1.442695
        %v2764 = vpow.pop %v2763
        %v2765 = vmul.f32 %v2691, 1.442695
        %v2766 = vpow.pop %v2765
        %v2767 = vmul.f32 %v2692, 1.442695
        %v2768 = vpow.pop %v2767
        %v2769 = vmul.f32 %v2693, 1.442695
        %v2770 = vpow.pop %v2769
        %v2771 = vmul.f32 %v2694, 1.442695
        %v2772 = vpow.pop %v2771
        %v2773 = vmul.f32 %v2695, 1.442695
        %v2774 = vpow.pop %v2773
        %v2775 = vmul.f32 %v2696, 1.442695
        %v2776 = vpow.pop %v2775
        %v2777 = vmul.f32 %v2697, 1.442695
        %v2778 = vpow.pop %v2777
        %v2779 = vmul.f32 %v2698, 1.442695
        %v2780 = vpow.pop %v2779
        %v2781 = vmul.f32 %v2699, 1.442695
        %v2782 = vpow.pop %v2781
        %v2783 = vmul.f32 %v2700, 1.442695
        %v2784 = vpow.pop %v2783
        %v2785 = vmul.f32 %v2701, 1.442695
        %v2786 = vpow.pop %v2785
        %v2787 = vmul.f32 %v2702, 1.442695
        %v2788 = vpow.pop %v2787
        %v2789 = vmul.f32 %v2703, 1.442695
        %v2790 = vpow.pop %v2789
        %v2791 = vmul.f32 %v2704, 1.442695
        %v2792 = vpow.pop %v2791
        %v2793 = vmul.f32 %v2705, 1.442695
        %v2794 = vpow.pop %v2793
        %v2795 = vmul.f32 %v2706, 1.442695
        %v2796 = vpow.pop %v2795
        %v2797 = vmul.f32 %v2707, 1.442695
        %v2798 = vpow.pop %v2797
        %v2799 = vmul.f32 %v2708, 1.442695
        %v2800 = vpow.pop %v2799
        %v2801 = vmul.f32 %v2709, 1.442695
        %v2802 = vpow.pop %v2801
        %v2803 = vmul.f32 %v2710, 1.442695
        %v2804 = vpow.pop %v2803
        %v2805 = vmul.f32 %v2711, 1.442695
        %v2806 = vpow.pop %v2805
        %v2807 = vmul.f32 %v2712, 1.442695
        %v2808 = vpow.pop %v2807
        %v2809 = vmul.f32 %v2713, 1.442695
        %v2810 = vpow.pop %v2809
        %v2811 = vmul.f32 %v2714, 1.442695
        %v2812 = vpow.pop %v2811
        %v2813 = vmul.f32 %v2715, 1.442695
        %v2814 = vpow.pop %v2813
        %v2815 = vmul.f32 %v2716, 1.442695
        %v2816 = vpow.pop %v2815
        %v2817 = vmul.f32 %v2717, 1.442695
        %v2818 = vpow.pop %v2817
        %v2819 = vmul.f32 %v2718, 1.442695
        %v2820 = vpow.pop %v2819
        %v2821 = vmul.f32 %v2719, 1.442695
        %v2822 = vpow.pop %v2821
        %v2823 = vmul.f32 %v2720, 1.442695
        %v2824 = vpow.pop %v2823
        %v2825 = vmul.f32 %v2721, 1.442695
        %v2826 = vpow.pop %v2825
        %v2827 = vmul.f32 %v2722, 1.442695
        %v2828 = vpow.pop %v2827
        %v2829 = vmul.f32 %v2723, 1.442695
        %v2830 = vpow.pop %v2829
        %v2831 = vmul.f32 %v2724, 1.442695
        %v2832 = vpow.pop %v2831
        %v2833 = vmul.f32 %v2725, 1.442695
        %v2834 = vpow.pop %v2833
        %v2835 = vmul.f32 %v2726, 1.442695
        %v2836 = vpow.pop %v2835
        %v2837 = vmul.f32 %v2727, 1.442695
        %v2838 = vpow.pop %v2837
        %v2839 = vmul.f32 %v2728, 1.442695
        %v2840 = vpow.pop %v2839
        %v2841 = vmul.f32 %v2729, 1.442695
        %v2842 = vpow.pop %v2841
        %v2843 = vmul.f32 %v2730, 1.442695
        %v2844 = vpow.pop %v2843
        %v2845 = vmul.f32 %v2731, 1.442695
        %v2846 = vpow.pop %v2845
        %v2847 = vmul.f32 %v2732, 1.442695
        %v2848 = vpow.pop %v2847
        %v2849 = vmul.f32 %v2733, 1.442695
        %v2850 = vpow.pop %v2849
        %v2851 = vmul.f32 %v2734, 1.442695
        %v2852 = vpow.pop %v2851
        %v2853 = vmul.f32 %v2735, 1.442695
        %v2854 = vpow.pop %v2853
        %v2855 = vmul.f32 %v2736, 1.442695
        %v2856 = vpow.pop %v2855
        %v2857 = vmul.f32 %v2737, 1.442695
        %v2858 = vpow.pop %v2857
        %v2859 = vmul.f32 %v2738, 1.442695
        %v2860 = vpow.pop %v2859
        %v2861 = vmul.f32 %v2739, 1.442695
        %v2862 = vpow.pop %v2861
        %v2863 = vmul.f32 %v2740, 1.442695
        %v2864 = vpow.pop %v2863
        %v2865 = vmul.f32 %v2741, 1.442695
        %v2866 = vpow.pop %v2865
        %v2867 = vmul.f32 %v2742, 1.442695
        %v2868 = vpow.pop %v2867
        %v2869 = vmul.f32 %v2743, 1.442695
        %v2870 = vpow.pop %v2869
        %v2871 = vmul.f32 %v2744, 1.442695
        %v2872 = vpow.pop %v2871
        %2873 = vadd.xlane.f32.xlu0 %v2746
        %v2874 = vpop.xlane.xlu0 %2873
        %2875 = vadd.xlane.f32.xlu0 %v2748
        %v2876 = vpop.xlane.xlu0 %2875
        %2877 = vadd.xlane.f32.xlu0 %v2750
        %v2878 = vpop.xlane.xlu0 %2877
        %2879 = vadd.xlane.f32.xlu0 %v2752
        %v2880 = vpop.xlane.xlu0 %2879
        %2881 = vadd.xlane.f32.xlu0 %v2754
        %v2882 = vpop.xlane.xlu0 %2881
        %2883 = vadd.xlane.f32.xlu0 %v2756
        %v2884 = vpop.xlane.xlu0 %2883
        %2885 = vadd.xlane.f32.xlu0 %v2758
        %v2886 = vpop.xlane.xlu0 %2885
        %2887 = vadd.xlane.f32.xlu0 %v2760
        %v2888 = vpop.xlane.xlu0 %2887
        %2889 = vadd.xlane.f32.xlu0 %v2762
        %v2890 = vpop.xlane.xlu0 %2889
        %2891 = vadd.xlane.f32.xlu0 %v2764
        %v2892 = vpop.xlane.xlu0 %2891
        %2893 = vadd.xlane.f32.xlu0 %v2766
        %v2894 = vpop.xlane.xlu0 %2893
        %2895 = vadd.xlane.f32.xlu0 %v2768
        %v2896 = vpop.xlane.xlu0 %2895
        %2897 = vadd.xlane.f32.xlu0 %v2770
        %v2898 = vpop.xlane.xlu0 %2897
        %2899 = vadd.xlane.f32.xlu0 %v2772
        %v2900 = vpop.xlane.xlu0 %2899
        %2901 = vadd.xlane.f32.xlu0 %v2774
        %v2902 = vpop.xlane.xlu0 %2901
        %2903 = vadd.xlane.f32.xlu0 %v2776
        %v2904 = vpop.xlane.xlu0 %2903
        %2905 = vadd.xlane.f32.xlu0 %v2778
        %v2906 = vpop.xlane.xlu0 %2905
        %2907 = vadd.xlane.f32.xlu0 %v2780
        %v2908 = vpop.xlane.xlu0 %2907
        %2909 = vadd.xlane.f32.xlu0 %v2782
        %v2910 = vpop.xlane.xlu0 %2909
        %2911 = vadd.xlane.f32.xlu0 %v2784
        %v2912 = vpop.xlane.xlu0 %2911
        %2913 = vadd.xlane.f32.xlu0 %v2786
        %v2914 = vpop.xlane.xlu0 %2913
        %2915 = vadd.xlane.f32.xlu0 %v2788
        %v2916 = vpop.xlane.xlu0 %2915
        %2917 = vadd.xlane.f32.xlu0 %v2790
        %v2918 = vpop.xlane.xlu0 %2917
        %2919 = vadd.xlane.f32.xlu0 %v2792
        %v2920 = vpop.xlane.xlu0 %2919
        %2921 = vadd.xlane.f32.xlu0 %v2794
        %v2922 = vpop.xlane.xlu0 %2921
        %2923 = vadd.xlane.f32.xlu0 %v2796
        %v2924 = vpop.xlane.xlu0 %2923
        %2925 = vadd.xlane.f32.xlu0 %v2798
        %v2926 = vpop.xlane.xlu0 %2925
        %2927 = vadd.xlane.f32.xlu0 %v2800
        %v2928 = vpop.xlane.xlu0 %2927
        %2929 = vadd.xlane.f32.xlu0 %v2802
        %v2930 = vpop.xlane.xlu0 %2929
        %2931 = vadd.xlane.f32.xlu0 %v2804
        %v2932 = vpop.xlane.xlu0 %2931
        %2933 = vadd.xlane.f32.xlu0 %v2806
        %v2934 = vpop.xlane.xlu0 %2933
        %2935 = vadd.xlane.f32.xlu0 %v2808
        %v2936 = vpop.xlane.xlu0 %2935
        %2937 = vadd.xlane.f32.xlu0 %v2810
        %v2938 = vpop.xlane.xlu0 %2937
        %2939 = vadd.xlane.f32.xlu0 %v2812
        %v2940 = vpop.xlane.xlu0 %2939
        %2941 = vadd.xlane.f32.xlu0 %v2814
        %v2942 = vpop.xlane.xlu0 %2941
        %2943 = vadd.xlane.f32.xlu0 %v2816
        %v2944 = vpop.xlane.xlu0 %2943
        %2945 = vadd.xlane.f32.xlu0 %v2818
        %v2946 = vpop.xlane.xlu0 %2945
        %2947 = vadd.xlane.f32.xlu0 %v2820
        %v2948 = vpop.xlane.xlu0 %2947
        %2949 = vadd.xlane.f32.xlu0 %v2822
        %v2950 = vpop.xlane.xlu0 %2949
        %2951 = vadd.xlane.f32.xlu0 %v2824
        %v2952 = vpop.xlane.xlu0 %2951
        %2953 = vadd.xlane.f32.xlu0 %v2826
        %v2954 = vpop.xlane.xlu0 %2953
        %2955 = vadd.xlane.f32.xlu0 %v2828
        %v2956 = vpop.xlane.xlu0 %2955
        %2957 = vadd.xlane.f32.xlu0 %v2830
        %v2958 = vpop.xlane.xlu0 %2957
        %2959 = vadd.xlane.f32.xlu0 %v2832
        %v2960 = vpop.xlane.xlu0 %2959
        %2961 = vadd.xlane.f32.xlu0 %v2834
        %v2962 = vpop.xlane.xlu0 %2961
        %2963 = vadd.xlane.f32.xlu0 %v2836
        %v2964 = vpop.xlane.xlu0 %2963
        %2965 = vadd.xlane.f32.xlu0 %v2838
        %v2966 = vpop.xlane.xlu0 %2965
        %2967 = vadd.xlane.f32.xlu0 %v2840
        %v2968 = vpop.xlane.xlu0 %2967
        %2969 = vadd.xlane.f32.xlu0 %v2842
        %v2970 = vpop.xlane.xlu0 %2969
        %2971 = vadd.xlane.f32.xlu0 %v2844
        %v2972 = vpop.xlane.xlu0 %2971
        %2973 = vadd.xlane.f32.xlu0 %v2846
        %v2974 = vpop.xlane.xlu0 %2973
        %2975 = vadd.xlane.f32.xlu0 %v2848
        %v2976 = vpop.xlane.xlu0 %2975
        %2977 = vadd.xlane.f32.xlu0 %v2850
        %v2978 = vpop.xlane.xlu0 %2977
        %2979 = vadd.xlane.f32.xlu0 %v2852
        %v2980 = vpop.xlane.xlu0 %2979
        %2981 = vadd.xlane.f32.xlu0 %v2854
        %v2982 = vpop.xlane.xlu0 %2981
        %2983 = vadd.xlane.f32.xlu0 %v2856
        %v2984 = vpop.xlane.xlu0 %2983
        %2985 = vadd.xlane.f32.xlu0 %v2858
        %v2986 = vpop.xlane.xlu0 %2985
        %2987 = vadd.xlane.f32.xlu0 %v2860
        %v2988 = vpop.xlane.xlu0 %2987
        %2989 = vadd.xlane.f32.xlu0 %v2862
        %v2990 = vpop.xlane.xlu0 %2989
        %2991 = vadd.xlane.f32.xlu0 %v2864
        %v2992 = vpop.xlane.xlu0 %2991
        %2993 = vadd.xlane.f32.xlu0 %v2866
        %v2994 = vpop.xlane.xlu0 %2993
        %2995 = vadd.xlane.f32.xlu0 %v2868
        %v2996 = vpop.xlane.xlu0 %2995
        %2997 = vadd.xlane.f32.xlu0 %v2870
        %v2998 = vpop.xlane.xlu0 %2997
        %2999 = vadd.xlane.f32.xlu0 %v2872
        %v3000 = vpop.xlane.xlu0 %2999
        %v3001 = vrcp.pop %v2874
        %v3002 = vrcp.pop %v2876
        %v3003 = vrcp.pop %v2878
        %v3004 = vrcp.pop %v2880
        %v3005 = vrcp.pop %v2882
        %v3006 = vrcp.pop %v2884
        %v3007 = vrcp.pop %v2886
        %v3008 = vrcp.pop %v2888
        %v3009 = vrcp.pop %v2890
        %v3010 = vrcp.pop %v2892
        %v3011 = vrcp.pop %v2894
        %v3012 = vrcp.pop %v2896
        %v3013 = vrcp.pop %v2898
        %v3014 = vrcp.pop %v2900
        %v3015 = vrcp.pop %v2902
        %v3016 = vrcp.pop %v2904
        %v3017 = vrcp.pop %v2906
        %v3018 = vrcp.pop %v2908
        %v3019 = vrcp.pop %v2910
        %v3020 = vrcp.pop %v2912
        %v3021 = vrcp.pop %v2914
        %v3022 = vrcp.pop %v2916
        %v3023 = vrcp.pop %v2918
        %v3024 = vrcp.pop %v2920
        %v3025 = vrcp.pop %v2922
        %v3026 = vrcp.pop %v2924
        %v3027 = vrcp.pop %v2926
        %v3028 = vrcp.pop %v2928
        %v3029 = vrcp.pop %v2930
        %v3030 = vrcp.pop %v2932
        %v3031 = vrcp.pop %v2934
        %v3032 = vrcp.pop %v2936
        %v3033 = vrcp.pop %v2938
        %v3034 = vrcp.pop %v2940
        %v3035 = vrcp.pop %v2942
        %v3036 = vrcp.pop %v2944
        %v3037 = vrcp.pop %v2946
        %v3038 = vrcp.pop %v2948
        %v3039 = vrcp.pop %v2950
        %v3040 = vrcp.pop %v2952
        %v3041 = vrcp.pop %v2954
        %v3042 = vrcp.pop %v2956
        %v3043 = vrcp.pop %v2958
        %v3044 = vrcp.pop %v2960
        %v3045 = vrcp.pop %v2962
        %v3046 = vrcp.pop %v2964
        %v3047 = vrcp.pop %v2966
        %v3048 = vrcp.pop %v2968
        %v3049 = vrcp.pop %v2970
        %v3050 = vrcp.pop %v2972
        %v3051 = vrcp.pop %v2974
        %v3052 = vrcp.pop %v2976
        %v3053 = vrcp.pop %v2978
        %v3054 = vrcp.pop %v2980
        %v3055 = vrcp.pop %v2982
        %v3056 = vrcp.pop %v2984
        %v3057 = vrcp.pop %v2986
        %v3058 = vrcp.pop %v2988
        %v3059 = vrcp.pop %v2990
        %v3060 = vrcp.pop %v2992
        %v3061 = vrcp.pop %v2994
        %v3062 = vrcp.pop %v2996
        %v3063 = vrcp.pop %v2998
        %v3064 = vrcp.pop %v3000
        %v3065 = vmul.f32 %v2746, %v3001
        %v3066 = vmul.f32 %v2748, %v3002
        %v3067 = vmul.f32 %v2750, %v3003
        %v3068 = vmul.f32 %v2752, %v3004
        %v3069 = vmul.f32 %v2754, %v3005
        %v3070 = vmul.f32 %v2756, %v3006
        %v3071 = vmul.f32 %v2758, %v3007
        %v3072 = vmul.f32 %v2760, %v3008
        %v3073 = vmul.f32 %v2762, %v3009
        %v3074 = vmul.f32 %v2764, %v3010
        %v3075 = vmul.f32 %v2766, %v3011
        %v3076 = vmul.f32 %v2768, %v3012
        %v3077 = vmul.f32 %v2770, %v3013
        %v3078 = vmul.f32 %v2772, %v3014
        %v3079 = vmul.f32 %v2774, %v3015
        %v3080 = vmul.f32 %v2776, %v3016
        %v3081 = vmul.f32 %v2778, %v3017
        %v3082 = vmul.f32 %v2780, %v3018
        %v3083 = vmul.f32 %v2782, %v3019
        %v3084 = vmul.f32 %v2784, %v3020
        %v3085 = vmul.f32 %v2786, %v3021
        %v3086 = vmul.f32 %v2788, %v3022
        %v3087 = vmul.f32 %v2790, %v3023
        %v3088 = vmul.f32 %v2792, %v3024
        %v3089 = vmul.f32 %v2794, %v3025
        %v3090 = vmul.f32 %v2796, %v3026
        %v3091 = vmul.f32 %v2798, %v3027
        %v3092 = vmul.f32 %v2800, %v3028
        %v3093 = vmul.f32 %v2802, %v3029
        %v3094 = vmul.f32 %v2804, %v3030
        %v3095 = vmul.f32 %v2806, %v3031
        %v3096 = vmul.f32 %v2808, %v3032
        %v3097 = vmul.f32 %v2810, %v3033
        %v3098 = vmul.f32 %v2812, %v3034
        %v3099 = vmul.f32 %v2814, %v3035
        %v3100 = vmul.f32 %v2816, %v3036
        %v3101 = vmul.f32 %v2818, %v3037
        %v3102 = vmul.f32 %v2820, %v3038
        %v3103 = vmul.f32 %v2822, %v3039
        %v3104 = vmul.f32 %v2824, %v3040
        %v3105 = vmul.f32 %v2826, %v3041
        %v3106 = vmul.f32 %v2828, %v3042
        %v3107 = vmul.f32 %v2830, %v3043
        %v3108 = vmul.f32 %v2832, %v3044
        %v3109 = vmul.f32 %v2834, %v3045
        %v3110 = vmul.f32 %v2836, %v3046
        %v3111 = vmul.f32 %v2838, %v3047
        %v3112 = vmul.f32 %v2840, %v3048
        %v3113 = vmul.f32 %v2842, %v3049
        %v3114 = vmul.f32 %v2844, %v3050
        %v3115 = vmul.f32 %v2846, %v3051
        %v3116 = vmul.f32 %v2848, %v3052
        %v3117 = vmul.f32 %v2850, %v3053
        %v3118 = vmul.f32 %v2852, %v3054
        %v3119 = vmul.f32 %v2854, %v3055
        %v3120 = vmul.f32 %v2856, %v3056
        %v3121 = vmul.f32 %v2858, %v3057
        %v3122 = vmul.f32 %v2860, %v3058
        %v3123 = vmul.f32 %v2862, %v3059
        %v3124 = vmul.f32 %v2864, %v3060
        %v3125 = vmul.f32 %v2866, %v3061
        %v3126 = vmul.f32 %v2868, %v3062
        %v3127 = vmul.f32 %v2870, %v3063
        %v3128 = vmul.f32 %v2872, %v3064
        %3129 = vst [vmem:[%s476] sm:$0xff] %v3065
        %3130 = vst [vmem:[%s476 + $0x8] sm:$0xff] %v3066
        %3131 = vst [vmem:[%s476 + $0x10] sm:$0xff] %v3067
        %3132 = vst [vmem:[%s476 + $0x18] sm:$0xff] %v3068
        %3133 = vst [vmem:[%s476 + $0x20] sm:$0xff] %v3069
        %3134 = vst [vmem:[%s476 + $0x28] sm:$0xff] %v3070
        %3135 = vst [vmem:[%s476 + $0x30] sm:$0xff] %v3071
        %3136 = vst [vmem:[%s476 + $0x38] sm:$0xff] %v3072
        %3137 = vst [vmem:[%s476 + $0x40] sm:$0xff] %v3073
        %3138 = vst [vmem:[%s476 + $0x48] sm:$0xff] %v3074
        %3139 = vst [vmem:[%s476 + $0x50] sm:$0xff] %v3075
        %3140 = vst [vmem:[%s476 + $0x58] sm:$0xff] %v3076
        %3141 = vst [vmem:[%s476 + $0x60] sm:$0xff] %v3077
        %3142 = vst [vmem:[%s476 + $0x68] sm:$0xff] %v3078
        %3143 = vst [vmem:[%s476 + $0x70] sm:$0xff] %v3079
        %3144 = vst [vmem:[%s476 + $0x78] sm:$0xff] %v3080
        %v3145 = vpack.c.bf16 %v3065, %v3065
        %v3146 = vpack.c.bf16 %v3066, %v3066
        %v3147 = vpack.c.bf16 %v3067, %v3067
        %v3148 = vpack.c.bf16 %v3068, %v3068
        %v3149 = vpack.c.bf16 %v3069, %v3069
        %v3150 = vpack.c.bf16 %v3070, %v3070
        %v3151 = vpack.c.bf16 %v3071, %v3071
        %v3152 = vpack.c.bf16 %v3072, %v3072
        %v3153 = vpack.c.bf16 %v3073, %v3073
        %v3154 = vpack.c.bf16 %v3074, %v3074
        %v3155 = vpack.c.bf16 %v3075, %v3075
        %v3156 = vpack.c.bf16 %v3076, %v3076
        %v3157 = vpack.c.bf16 %v3077, %v3077
        %v3158 = vpack.c.bf16 %v3078, %v3078
        %v3159 = vpack.c.bf16 %v3079, %v3079
        %v3160 = vpack.c.bf16 %v3080, %v3080
        %v3161 = vpack.c.bf16 %v3081, %v3081
        %v3162 = vpack.c.bf16 %v3082, %v3082
        %v3163 = vpack.c.bf16 %v3083, %v3083
        %v3164 = vpack.c.bf16 %v3084, %v3084
        %v3165 = vpack.c.bf16 %v3085, %v3085
        %v3166 = vpack.c.bf16 %v3086, %v3086
        %v3167 = vpack.c.bf16 %v3087, %v3087
        %v3168 = vpack.c.bf16 %v3088, %v3088
        %v3169 = vpack.c.bf16 %v3089, %v3089
        %v3170 = vpack.c.bf16 %v3090, %v3090
        %v3171 = vpack.c.bf16 %v3091, %v3091
        %v3172 = vpack.c.bf16 %v3092, %v3092
        %v3173 = vpack.c.bf16 %v3093, %v3093
        %v3174 = vpack.c.bf16 %v3094, %v3094
        %v3175 = vpack.c.bf16 %v3095, %v3095
        %v3176 = vpack.c.bf16 %v3096, %v3096
        %v3177 = vpack.c.bf16 %v3097, %v3097
        %v3178 = vpack.c.bf16 %v3098, %v3098
        %v3179 = vpack.c.bf16 %v3099, %v3099
        %v3180 = vpack.c.bf16 %v3100, %v3100
        %v3181 = vpack.c.bf16 %v3101, %v3101
        %v3182 = vpack.c.bf16 %v3102, %v3102
        %v3183 = vpack.c.bf16 %v3103, %v3103
        %v3184 = vpack.c.bf16 %v3104, %v3104
        %v3185 = vpack.c.bf16 %v3105, %v3105
        %v3186 = vpack.c.bf16 %v3106, %v3106
        %v3187 = vpack.c.bf16 %v3107, %v3107
        %v3188 = vpack.c.bf16 %v3108, %v3108
        %v3189 = vpack.c.bf16 %v3109, %v3109
        %v3190 = vpack.c.bf16 %v3110, %v3110
        %v3191 = vpack.c.bf16 %v3111, %v3111
        %v3192 = vpack.c.bf16 %v3112, %v3112
        %v3193 = vpack.c.bf16 %v3113, %v3113
        %v3194 = vpack.c.bf16 %v3114, %v3114
        %v3195 = vpack.c.bf16 %v3115, %v3115
        %v3196 = vpack.c.bf16 %v3116, %v3116
        %v3197 = vpack.c.bf16 %v3117, %v3117
        %v3198 = vpack.c.bf16 %v3118, %v3118
        %v3199 = vpack.c.bf16 %v3119, %v3119
        %v3200 = vpack.c.bf16 %v3120, %v3120
        %v3201 = vpack.c.bf16 %v3121, %v3121
        %v3202 = vpack.c.bf16 %v3122, %v3122
        %v3203 = vpack.c.bf16 %v3123, %v3123
        %v3204 = vpack.c.bf16 %v3124, %v3124
        %v3205 = vpack.c.bf16 %v3125, %v3125
        %v3206 = vpack.c.bf16 %v3126, %v3126
        %v3207 = vpack.c.bf16 %v3127, %v3127
        %v3208 = vpack.c.bf16 %v3128, %v3128
        %v3225 = vunpack.c.l.b16 %v3145
        %v3226 = vunpack.c.l.b16 %v3146
        %v3227 = vunpack.c.l.b16 %v3147
        %v3228 = vunpack.c.l.b16 %v3148
        %v3229 = vunpack.c.l.b16 %v3149
        %v3230 = vunpack.c.l.b16 %v3150
        %v3231 = vunpack.c.l.b16 %v3151
        %v3232 = vunpack.c.l.b16 %v3152
        %v3233 = vunpack.c.l.b16 %v3153
        %v3234 = vunpack.c.l.b16 %v3154
        %v3235 = vunpack.c.l.b16 %v3155
        %v3236 = vunpack.c.l.b16 %v3156
        %v3237 = vunpack.c.l.b16 %v3157
        %v3238 = vunpack.c.l.b16 %v3158
        %v3239 = vunpack.c.l.b16 %v3159
        %v3240 = vunpack.c.l.b16 %v3160
        %v3241 = vpack.c.b16 %v3226, %v3225
        %v3242 = vpack.c.b16 %v3228, %v3227
        %v3243 = vpack.c.b16 %v3230, %v3229
        %v3244 = vpack.c.b16 %v3232, %v3231
        %v3245 = vpack.c.b16 %v3234, %v3233
        %v3246 = vpack.c.b16 %v3236, %v3235
        %v3247 = vpack.c.b16 %v3238, %v3237
        %v3248 = vpack.c.b16 %v3240, %v3239
        %v3273 = vunpack.c.l.b16 %v1780
        %v3274 = vunpack.c.l.b16 %v1781
        %v3275 = vunpack.c.l.b16 %v1782
        %v3276 = vunpack.c.l.b16 %v1783
        %v3277 = vunpack.c.l.b16 %v1784
        %v3278 = vunpack.c.l.b16 %v1785
        %v3279 = vunpack.c.l.b16 %v1786
        %v3280 = vunpack.c.l.b16 %v1787
        %v3281 = vunpack.c.l.b16 %v1788
        %v3282 = vunpack.c.l.b16 %v1789
        %v3283 = vunpack.c.l.b16 %v1790
        %v3284 = vunpack.c.l.b16 %v1791
        %v3285 = vunpack.c.l.b16 %v1792
        %v3286 = vunpack.c.l.b16 %v1793
        %v3287 = vunpack.c.l.b16 %v1794
        %v3288 = vunpack.c.l.b16 %v1795
        %v3289 = vpack.c.b16 %v3274, %v3273
        %v3290 = vpack.c.b16 %v3276, %v3275
        %v3291 = vpack.c.b16 %v3278, %v3277
        %v3292 = vpack.c.b16 %v3280, %v3279
        %v3293 = vpack.c.b16 %v3282, %v3281
        %v3294 = vpack.c.b16 %v3284, %v3283
        %v3295 = vpack.c.b16 %v3286, %v3285
        %v3296 = vpack.c.b16 %v3288, %v3287
        %3305 = vmatpush.bf16.msra.mxu0 %v3296
        %3306 = vmatpush.bf16.msra.mxu0 %v3295
        %3307 = vmatpush.bf16.msra.mxu0 %v3294
        %3308 = vmatpush.bf16.msra.mxu0 %v3293
        %3309 = vmatpush.bf16.msra.mxu0 %v3292
        %3310 = vmatpush.bf16.msra.mxu0 %v3291
        %3311 = vmatpush.bf16.msra.mxu0 %v3290
        %3312 = vmatpush.bf16.msra.mxu0 %v3289
        %3313 = vmatmul.bf16.gmra.mxu0 %v3241
        %v3314 = vpop.f32.mrf.mxu0
        %v3315 = vadd.f32 0.0, %v3314
        %v3316 = vpop.f32.mrf.mxu0
        %v3317 = vadd.f32 0.0, %v3316
        %3318 = vmatmul.bf16.gmra.mxu0 %v3242
        %v3319 = vpop.f32.mrf.mxu0
        %v3320 = vadd.f32 0.0, %v3319
        %v3321 = vpop.f32.mrf.mxu0
        %v3322 = vadd.f32 0.0, %v3321
        %3323 = vmatmul.bf16.gmra.mxu0 %v3243
        %v3324 = vpop.f32.mrf.mxu0
        %v3325 = vadd.f32 0.0, %v3324
        %v3326 = vpop.f32.mrf.mxu0
        %v3327 = vadd.f32 0.0, %v3326
        %3328 = vmatmul.bf16.gmra.mxu0 %v3244
        %v3329 = vpop.f32.mrf.mxu0
        %v3330 = vadd.f32 0.0, %v3329
        %v3331 = vpop.f32.mrf.mxu0
        %v3332 = vadd.f32 0.0, %v3331
        %3333 = vmatmul.bf16.gmra.mxu0 %v3245
        %v3334 = vpop.f32.mrf.mxu0
        %v3335 = vadd.f32 0.0, %v3334
        %v3336 = vpop.f32.mrf.mxu0
        %v3337 = vadd.f32 0.0, %v3336
        %3338 = vmatmul.bf16.gmra.mxu0 %v3246
        %v3339 = vpop.f32.mrf.mxu0
        %v3340 = vadd.f32 0.0, %v3339
        %v3341 = vpop.f32.mrf.mxu0
        %v3342 = vadd.f32 0.0, %v3341
        %3343 = vmatmul.bf16.gmra.mxu0 %v3247
        %v3344 = vpop.f32.mrf.mxu0
        %v3345 = vadd.f32 0.0, %v3344
        %v3346 = vpop.f32.mrf.mxu0
        %v3347 = vadd.f32 0.0, %v3346
        %3348 = vmatmul.bf16.gmra.mxu0 %v3248
        %v3349 = vpop.f32.mrf.mxu0
        %v3350 = vadd.f32 0.0, %v3349
        %v3351 = vpop.f32.mrf.mxu0
        %v3352 = vadd.f32 0.0, %v3351
        %3353 = vdwg.mxu0
        %v3370 = vunpack.c.l.b16 %v3161
        %v3371 = vunpack.c.l.b16 %v3162
        %v3372 = vunpack.c.l.b16 %v3163
        %v3373 = vunpack.c.l.b16 %v3164
        %v3374 = vunpack.c.l.b16 %v3165
        %v3375 = vunpack.c.l.b16 %v3166
        %v3376 = vunpack.c.l.b16 %v3167
        %v3377 = vunpack.c.l.b16 %v3168
        %v3378 = vunpack.c.l.b16 %v3169
        %v3379 = vunpack.c.l.b16 %v3170
        %v3380 = vunpack.c.l.b16 %v3171
        %v3381 = vunpack.c.l.b16 %v3172
        %v3382 = vunpack.c.l.b16 %v3173
        %v3383 = vunpack.c.l.b16 %v3174
        %v3384 = vunpack.c.l.b16 %v3175
        %v3385 = vunpack.c.l.b16 %v3176
        %v3386 = vpack.c.b16 %v3371, %v3370
        %v3387 = vpack.c.b16 %v3373, %v3372
        %v3388 = vpack.c.b16 %v3375, %v3374
        %v3389 = vpack.c.b16 %v3377, %v3376
        %v3390 = vpack.c.b16 %v3379, %v3378
        %v3391 = vpack.c.b16 %v3381, %v3380
        %v3392 = vpack.c.b16 %v3383, %v3382
        %v3393 = vpack.c.b16 %v3385, %v3384
        %v3418 = vunpack.c.l.b16 %v1796
        %v3419 = vunpack.c.l.b16 %v1797
        %v3420 = vunpack.c.l.b16 %v1798
        %v3421 = vunpack.c.l.b16 %v1799
        %v3422 = vunpack.c.l.b16 %v1800
        %v3423 = vunpack.c.l.b16 %v1801
        %v3424 = vunpack.c.l.b16 %v1802
        %v3425 = vunpack.c.l.b16 %v1803
        %v3426 = vunpack.c.l.b16 %v1804
        %v3427 = vunpack.c.l.b16 %v1805
        %v3428 = vunpack.c.l.b16 %v1806
        %v3429 = vunpack.c.l.b16 %v1807
        %v3430 = vunpack.c.l.b16 %v1808
        %v3431 = vunpack.c.l.b16 %v1809
        %v3432 = vunpack.c.l.b16 %v1810
        %v3433 = vunpack.c.l.b16 %v1811
        %v3434 = vpack.c.b16 %v3419, %v3418
        %v3435 = vpack.c.b16 %v3421, %v3420
        %v3436 = vpack.c.b16 %v3423, %v3422
        %v3437 = vpack.c.b16 %v3425, %v3424
        %v3438 = vpack.c.b16 %v3427, %v3426
        %v3439 = vpack.c.b16 %v3429, %v3428
        %v3440 = vpack.c.b16 %v3431, %v3430
        %v3441 = vpack.c.b16 %v3433, %v3432
        %3450 = vmatpush.bf16.msra.mxu0 %v3441
        %3451 = vmatpush.bf16.msra.mxu0 %v3440
        %3452 = vmatpush.bf16.msra.mxu0 %v3439
        %3453 = vmatpush.bf16.msra.mxu0 %v3438
        %3454 = vmatpush.bf16.msra.mxu0 %v3437
        %3455 = vmatpush.bf16.msra.mxu0 %v3436
        %3456 = vmatpush.bf16.msra.mxu0 %v3435
        %3457 = vmatpush.bf16.msra.mxu0 %v3434
        %3458 = vmatmul.bf16.gmra.mxu0 %v3386
        %v3459 = vpop.f32.mrf.mxu0
        %v3460 = vadd.f32 0.0, %v3459
        %v3461 = vpop.f32.mrf.mxu0
        %v3462 = vadd.f32 0.0, %v3461
        %3463 = vmatmul.bf16.gmra.mxu0 %v3387
        %v3464 = vpop.f32.mrf.mxu0
        %v3465 = vadd.f32 0.0, %v3464
        %v3466 = vpop.f32.mrf.mxu0
        %v3467 = vadd.f32 0.0, %v3466
        %3468 = vmatmul.bf16.gmra.mxu0 %v3388
        %v3469 = vpop.f32.mrf.mxu0
        %v3470 = vadd.f32 0.0, %v3469
        %v3471 = vpop.f32.mrf.mxu0
        %v3472 = vadd.f32 0.0, %v3471
        %3473 = vmatmul.bf16.gmra.mxu0 %v3389
        %v3474 = vpop.f32.mrf.mxu0
        %v3475 = vadd.f32 0.0, %v3474
        %v3476 = vpop.f32.mrf.mxu0
        %v3477 = vadd.f32 0.0, %v3476
        %3478 = vmatmul.bf16.gmra.mxu0 %v3390
        %v3479 = vpop.f32.mrf.mxu0
        %v3480 = vadd.f32 0.0, %v3479
        %v3481 = vpop.f32.mrf.mxu0
        %v3482 = vadd.f32 0.0, %v3481
        %3483 = vmatmul.bf16.gmra.mxu0 %v3391
        %v3484 = vpop.f32.mrf.mxu0
        %v3485 = vadd.f32 0.0, %v3484
        %v3486 = vpop.f32.mrf.mxu0
        %v3487 = vadd.f32 0.0, %v3486
        %3488 = vmatmul.bf16.gmra.mxu0 %v3392
        %v3489 = vpop.f32.mrf.mxu0
        %v3490 = vadd.f32 0.0, %v3489
        %v3491 = vpop.f32.mrf.mxu0
        %v3492 = vadd.f32 0.0, %v3491
        %3493 = vmatmul.bf16.gmra.mxu0 %v3393
        %v3494 = vpop.f32.mrf.mxu0
        %v3495 = vadd.f32 0.0, %v3494
        %v3496 = vpop.f32.mrf.mxu0
        %v3497 = vadd.f32 0.0, %v3496
        %3498 = vdwg.mxu0
        %v3515 = vunpack.c.l.b16 %v3177
        %v3516 = vunpack.c.l.b16 %v3178
        %v3517 = vunpack.c.l.b16 %v3179
        %v3518 = vunpack.c.l.b16 %v3180
        %v3519 = vunpack.c.l.b16 %v3181
        %v3520 = vunpack.c.l.b16 %v3182
        %v3521 = vunpack.c.l.b16 %v3183
        %v3522 = vunpack.c.l.b16 %v3184
        %v3523 = vunpack.c.l.b16 %v3185
        %v3524 = vunpack.c.l.b16 %v3186
        %v3525 = vunpack.c.l.b16 %v3187
        %v3526 = vunpack.c.l.b16 %v3188
        %v3527 = vunpack.c.l.b16 %v3189
        %v3528 = vunpack.c.l.b16 %v3190
        %v3529 = vunpack.c.l.b16 %v3191
        %v3530 = vunpack.c.l.b16 %v3192
        %v3531 = vpack.c.b16 %v3516, %v3515
        %v3532 = vpack.c.b16 %v3518, %v3517
        %v3533 = vpack.c.b16 %v3520, %v3519
        %v3534 = vpack.c.b16 %v3522, %v3521
        %v3535 = vpack.c.b16 %v3524, %v3523
        %v3536 = vpack.c.b16 %v3526, %v3525
        %v3537 = vpack.c.b16 %v3528, %v3527
        %v3538 = vpack.c.b16 %v3530, %v3529
        %v3563 = vunpack.c.l.b16 %v1812
        %v3564 = vunpack.c.l.b16 %v1813
        %v3565 = vunpack.c.l.b16 %v1814
        %v3566 = vunpack.c.l.b16 %v1815
        %v3567 = vunpack.c.l.b16 %v1816
        %v3568 = vunpack.c.l.b16 %v1817
        %v3569 = vunpack.c.l.b16 %v1818
        %v3570 = vunpack.c.l.b16 %v1819
        %v3571 = vunpack.c.l.b16 %v1820
        %v3572 = vunpack.c.l.b16 %v1821
        %v3573 = vunpack.c.l.b16 %v1822
        %v3574 = vunpack.c.l.b16 %v1823
        %v3575 = vunpack.c.l.b16 %v1824
        %v3576 = vunpack.c.l.b16 %v1825
        %v3577 = vunpack.c.l.b16 %v1826
        %v3578 = vunpack.c.l.b16 %v1827
        %v3579 = vpack.c.b16 %v3564, %v3563
        %v3580 = vpack.c.b16 %v3566, %v3565
        %v3581 = vpack.c.b16 %v3568, %v3567
        %v3582 = vpack.c.b16 %v3570, %v3569
        %v3583 = vpack.c.b16 %v3572, %v3571
        %v3584 = vpack.c.b16 %v3574, %v3573
        %v3585 = vpack.c.b16 %v3576, %v3575
        %v3586 = vpack.c.b16 %v3578, %v3577
        %3595 = vmatpush.bf16.msra.mxu0 %v3586
        %3596 = vmatpush.bf16.msra.mxu0 %v3585
        %3597 = vmatpush.bf16.msra.mxu0 %v3584
        %3598 = vmatpush.bf16.msra.mxu0 %v3583
        %3599 = vmatpush.bf16.msra.mxu0 %v3582
        %3600 = vmatpush.bf16.msra.mxu0 %v3581
        %3601 = vmatpush.bf16.msra.mxu0 %v3580
        %3602 = vmatpush.bf16.msra.mxu0 %v3579
        %3603 = vmatmul.bf16.gmra.mxu0 %v3531
        %v3604 = vpop.f32.mrf.mxu0
        %v3605 = vadd.f32 0.0, %v3604
        %v3606 = vpop.f32.mrf.mxu0
        %v3607 = vadd.f32 0.0, %v3606
        %3608 = vmatmul.bf16.gmra.mxu0 %v3532
        %v3609 = vpop.f32.mrf.mxu0
        %v3610 = vadd.f32 0.0, %v3609
        %v3611 = vpop.f32.mrf.mxu0
        %v3612 = vadd.f32 0.0, %v3611
        %3613 = vmatmul.bf16.gmra.mxu0 %v3533
        %v3614 = vpop.f32.mrf.mxu0
        %v3615 = vadd.f32 0.0, %v3614
        %v3616 = vpop.f32.mrf.mxu0
        %v3617 = vadd.f32 0.0, %v3616
        %3618 = vmatmul.bf16.gmra.mxu0 %v3534
        %v3619 = vpop.f32.mrf.mxu0
        %v3620 = vadd.f32 0.0, %v3619
        %v3621 = vpop.f32.mrf.mxu0
        %v3622 = vadd.f32 0.0, %v3621
        %3623 = vmatmul.bf16.gmra.mxu0 %v3535
        %v3624 = vpop.f32.mrf.mxu0
        %v3625 = vadd.f32 0.0, %v3624
        %v3626 = vpop.f32.mrf.mxu0
        %v3627 = vadd.f32 0.0, %v3626
        %3628 = vmatmul.bf16.gmra.mxu0 %v3536
        %v3629 = vpop.f32.mrf.mxu0
        %v3630 = vadd.f32 0.0, %v3629
        %v3631 = vpop.f32.mrf.mxu0
        %v3632 = vadd.f32 0.0, %v3631
        %3633 = vmatmul.bf16.gmra.mxu0 %v3537
        %v3634 = vpop.f32.mrf.mxu0
        %v3635 = vadd.f32 0.0, %v3634
        %v3636 = vpop.f32.mrf.mxu0
        %v3637 = vadd.f32 0.0, %v3636
        %3638 = vmatmul.bf16.gmra.mxu0 %v3538
        %v3639 = vpop.f32.mrf.mxu0
        %v3640 = vadd.f32 0.0, %v3639
        %v3641 = vpop.f32.mrf.mxu0
        %v3642 = vadd.f32 0.0, %v3641
        %3643 = vdwg.mxu0
        %v3660 = vunpack.c.l.b16 %v3193
        %v3661 = vunpack.c.l.b16 %v3194
        %v3662 = vunpack.c.l.b16 %v3195
        %v3663 = vunpack.c.l.b16 %v3196
        %v3664 = vunpack.c.l.b16 %v3197
        %v3665 = vunpack.c.l.b16 %v3198
        %v3666 = vunpack.c.l.b16 %v3199
        %v3667 = vunpack.c.l.b16 %v3200
        %v3668 = vunpack.c.l.b16 %v3201
        %v3669 = vunpack.c.l.b16 %v3202
        %v3670 = vunpack.c.l.b16 %v3203
        %v3671 = vunpack.c.l.b16 %v3204
        %v3672 = vunpack.c.l.b16 %v3205
        %v3673 = vunpack.c.l.b16 %v3206
        %v3674 = vunpack.c.l.b16 %v3207
        %v3675 = vunpack.c.l.b16 %v3208
        %v3676 = vpack.c.b16 %v3661, %v3660
        %v3677 = vpack.c.b16 %v3663, %v3662
        %v3678 = vpack.c.b16 %v3665, %v3664
        %v3679 = vpack.c.b16 %v3667, %v3666
        %v3680 = vpack.c.b16 %v3669, %v3668
        %v3681 = vpack.c.b16 %v3671, %v3670
        %v3682 = vpack.c.b16 %v3673, %v3672
        %v3683 = vpack.c.b16 %v3675, %v3674
        %v3708 = vunpack.c.l.b16 %v1828
        %v3709 = vunpack.c.l.b16 %v1829
        %v3710 = vunpack.c.l.b16 %v1830
        %v3711 = vunpack.c.l.b16 %v1831
        %v3712 = vunpack.c.l.b16 %v1832
        %v3713 = vunpack.c.l.b16 %v1833
        %v3714 = vunpack.c.l.b16 %v1834
        %v3715 = vunpack.c.l.b16 %v1835
        %v3716 = vunpack.c.l.b16 %v1836
        %v3717 = vunpack.c.l.b16 %v1837
        %v3718 = vunpack.c.l.b16 %v1838
        %v3719 = vunpack.c.l.b16 %v1839
        %v3720 = vunpack.c.l.b16 %v1840
        %v3721 = vunpack.c.l.b16 %v1841
        %v3722 = vunpack.c.l.b16 %v1842
        %v3723 = vunpack.c.l.b16 %v1843
        %v3724 = vpack.c.b16 %v3709, %v3708
        %v3725 = vpack.c.b16 %v3711, %v3710
        %v3726 = vpack.c.b16 %v3713, %v3712
        %v3727 = vpack.c.b16 %v3715, %v3714
        %v3728 = vpack.c.b16 %v3717, %v3716
        %v3729 = vpack.c.b16 %v3719, %v3718
        %v3730 = vpack.c.b16 %v3721, %v3720
        %v3731 = vpack.c.b16 %v3723, %v3722
        %3740 = vmatpush.bf16.msra.mxu0 %v3731
        %3741 = vmatpush.bf16.msra.mxu0 %v3730
        %3742 = vmatpush.bf16.msra.mxu0 %v3729
        %3743 = vmatpush.bf16.msra.mxu0 %v3728
        %3744 = vmatpush.bf16.msra.mxu0 %v3727
        %3745 = vmatpush.bf16.msra.mxu0 %v3726
        %3746 = vmatpush.bf16.msra.mxu0 %v3725
        %3747 = vmatpush.bf16.msra.mxu0 %v3724
        %3748 = vmatmul.bf16.gmra.mxu0 %v3676
        %v3749 = vpop.f32.mrf.mxu0
        %v3750 = vadd.f32 0.0, %v3749
        %v3751 = vpop.f32.mrf.mxu0
        %v3752 = vadd.f32 0.0, %v3751
        %3753 = vmatmul.bf16.gmra.mxu0 %v3677
        %v3754 = vpop.f32.mrf.mxu0
        %v3755 = vadd.f32 0.0, %v3754
        %v3756 = vpop.f32.mrf.mxu0
        %v3757 = vadd.f32 0.0, %v3756
        %3758 = vmatmul.bf16.gmra.mxu0 %v3678
        %v3759 = vpop.f32.mrf.mxu0
        %v3760 = vadd.f32 0.0, %v3759
        %v3761 = vpop.f32.mrf.mxu0
        %v3762 = vadd.f32 0.0, %v3761
        %3763 = vmatmul.bf16.gmra.mxu0 %v3679
        %v3764 = vpop.f32.mrf.mxu0
        %v3765 = vadd.f32 0.0, %v3764
        %v3766 = vpop.f32.mrf.mxu0
        %v3767 = vadd.f32 0.0, %v3766
        %3768 = vmatmul.bf16.gmra.mxu0 %v3680
        %v3769 = vpop.f32.mrf.mxu0
        %v3770 = vadd.f32 0.0, %v3769
        %v3771 = vpop.f32.mrf.mxu0
        %v3772 = vadd.f32 0.0, %v3771
        %3773 = vmatmul.bf16.gmra.mxu0 %v3681
        %v3774 = vpop.f32.mrf.mxu0
        %v3775 = vadd.f32 0.0, %v3774
        %v3776 = vpop.f32.mrf.mxu0
        %v3777 = vadd.f32 0.0, %v3776
        %3778 = vmatmul.bf16.gmra.mxu0 %v3682
        %v3779 = vpop.f32.mrf.mxu0
        %v3780 = vadd.f32 0.0, %v3779
        %v3781 = vpop.f32.mrf.mxu0
        %v3782 = vadd.f32 0.0, %v3781
        %3783 = vmatmul.bf16.gmra.mxu0 %v3683
        %v3784 = vpop.f32.mrf.mxu0
        %v3785 = vadd.f32 0.0, %v3784
        %v3786 = vpop.f32.mrf.mxu0
        %v3787 = vadd.f32 0.0, %v3786
        %3788 = vdwg.mxu0
        %3805 = vrot.lane.b32.xlu0 %v3460, 32
        %v3806 = vpop.permute.xlu0 %3805
        %3807 = vrot.lane.b32.xlu0 %v3462, 32
        %v3808 = vpop.permute.xlu0 %3807
        %3809 = vrot.lane.b32.xlu0 %v3465, 32
        %v3810 = vpop.permute.xlu0 %3809
        %3811 = vrot.lane.b32.xlu0 %v3467, 32
        %v3812 = vpop.permute.xlu0 %3811
        %3813 = vrot.lane.b32.xlu0 %v3470, 32
        %v3814 = vpop.permute.xlu0 %3813
        %3815 = vrot.lane.b32.xlu0 %v3472, 32
        %v3816 = vpop.permute.xlu0 %3815
        %3817 = vrot.lane.b32.xlu0 %v3475, 32
        %v3818 = vpop.permute.xlu0 %3817
        %3819 = vrot.lane.b32.xlu0 %v3477, 32
        %v3820 = vpop.permute.xlu0 %3819
        %3821 = vrot.lane.b32.xlu0 %v3480, 32
        %v3822 = vpop.permute.xlu0 %3821
        %3823 = vrot.lane.b32.xlu0 %v3482, 32
        %v3824 = vpop.permute.xlu0 %3823
        %3825 = vrot.lane.b32.xlu0 %v3485, 32
        %v3826 = vpop.permute.xlu0 %3825
        %3827 = vrot.lane.b32.xlu0 %v3487, 32
        %v3828 = vpop.permute.xlu0 %3827
        %3829 = vrot.lane.b32.xlu0 %v3490, 32
        %v3830 = vpop.permute.xlu0 %3829
        %3831 = vrot.lane.b32.xlu0 %v3492, 32
        %v3832 = vpop.permute.xlu0 %3831
        %3833 = vrot.lane.b32.xlu0 %v3495, 32
        %v3834 = vpop.permute.xlu0 %3833
        %3835 = vrot.lane.b32.xlu0 %v3497, 32
        %v3836 = vpop.permute.xlu0 %3835
        %3869 = vrot.lane.b32.xlu0 %v3605, 64
        %v3870 = vpop.permute.xlu0 %3869
        %3871 = vrot.lane.b32.xlu0 %v3607, 64
        %v3872 = vpop.permute.xlu0 %3871
        %3873 = vrot.lane.b32.xlu0 %v3610, 64
        %v3874 = vpop.permute.xlu0 %3873
        %3875 = vrot.lane.b32.xlu0 %v3612, 64
        %v3876 = vpop.permute.xlu0 %3875
        %3877 = vrot.lane.b32.xlu0 %v3615, 64
        %v3878 = vpop.permute.xlu0 %3877
        %3879 = vrot.lane.b32.xlu0 %v3617, 64
        %v3880 = vpop.permute.xlu0 %3879
        %3881 = vrot.lane.b32.xlu0 %v3620, 64
        %v3882 = vpop.permute.xlu0 %3881
        %3883 = vrot.lane.b32.xlu0 %v3622, 64
        %v3884 = vpop.permute.xlu0 %3883
        %3885 = vrot.lane.b32.xlu0 %v3625, 64
        %v3886 = vpop.permute.xlu0 %3885
        %3887 = vrot.lane.b32.xlu0 %v3627, 64
        %v3888 = vpop.permute.xlu0 %3887
        %3889 = vrot.lane.b32.xlu0 %v3630, 64
        %v3890 = vpop.permute.xlu0 %3889
        %3891 = vrot.lane.b32.xlu0 %v3632, 64
        %v3892 = vpop.permute.xlu0 %3891
        %3893 = vrot.lane.b32.xlu0 %v3635, 64
        %v3894 = vpop.permute.xlu0 %3893
        %3895 = vrot.lane.b32.xlu0 %v3637, 64
        %v3896 = vpop.permute.xlu0 %3895
        %3897 = vrot.lane.b32.xlu0 %v3640, 64
        %v3898 = vpop.permute.xlu0 %3897
        %3899 = vrot.lane.b32.xlu0 %v3642, 64
        %v3900 = vpop.permute.xlu0 %3899
        %3933 = vrot.lane.b32.xlu0 %v3750, 96
        %v3934 = vpop.permute.xlu0 %3933
        %3935 = vrot.lane.b32.xlu0 %v3752, 96
        %v3936 = vpop.permute.xlu0 %3935
        %3937 = vrot.lane.b32.xlu0 %v3755, 96
        %v3938 = vpop.permute.xlu0 %3937
        %3939 = vrot.lane.b32.xlu0 %v3757, 96
        %v3940 = vpop.permute.xlu0 %3939
        %3941 = vrot.lane.b32.xlu0 %v3760, 96
        %v3942 = vpop.permute.xlu0 %3941
        %3943 = vrot.lane.b32.xlu0 %v3762, 96
        %v3944 = vpop.permute.xlu0 %3943
        %3945 = vrot.lane.b32.xlu0 %v3765, 96
        %v3946 = vpop.permute.xlu0 %3945
        %3947 = vrot.lane.b32.xlu0 %v3767, 96
        %v3948 = vpop.permute.xlu0 %3947
        %3949 = vrot.lane.b32.xlu0 %v3770, 96
        %v3950 = vpop.permute.xlu0 %3949
        %3951 = vrot.lane.b32.xlu0 %v3772, 96
        %v3952 = vpop.permute.xlu0 %3951
        %3953 = vrot.lane.b32.xlu0 %v3775, 96
        %v3954 = vpop.permute.xlu0 %3953
        %3955 = vrot.lane.b32.xlu0 %v3777, 96
        %v3956 = vpop.permute.xlu0 %3955
        %3957 = vrot.lane.b32.xlu0 %v3780, 96
        %v3958 = vpop.permute.xlu0 %3957
        %3959 = vrot.lane.b32.xlu0 %v3782, 96
        %v3960 = vpop.permute.xlu0 %3959
        %3961 = vrot.lane.b32.xlu0 %v3785, 96
        %v3962 = vpop.permute.xlu0 %3961
        %3963 = vrot.lane.b32.xlu0 %v3787, 96
        %v3964 = vpop.permute.xlu0 %3963
        %v3981 = vsel %vm1924, %v3315, %v3806
        %v3982 = vsel %vm1924, %v3317, %v3808
        %v3983 = vsel %vm1924, %v3320, %v3810
        %v3984 = vsel %vm1924, %v3322, %v3812
        %v3985 = vsel %vm1924, %v3325, %v3814
        %v3986 = vsel %vm1924, %v3327, %v3816
        %v3987 = vsel %vm1924, %v3330, %v3818
        %v3988 = vsel %vm1924, %v3332, %v3820
        %v3989 = vsel %vm1924, %v3335, %v3822
        %v3990 = vsel %vm1924, %v3337, %v3824
        %v3991 = vsel %vm1924, %v3340, %v3826
        %v3992 = vsel %vm1924, %v3342, %v3828
        %v3993 = vsel %vm1924, %v3345, %v3830
        %v3994 = vsel %vm1924, %v3347, %v3832
        %v3995 = vsel %vm1924, %v3350, %v3834
        %v3996 = vsel %vm1924, %v3352, %v3836
        %vm3997 = vcmask 523264
        %v3998 = vsel %vm3997, %v3981, %v3870
        %v3999 = vsel %vm3997, %v3982, %v3872
        %v4000 = vsel %vm3997, %v3983, %v3874
        %v4001 = vsel %vm3997, %v3984, %v3876
        %v4002 = vsel %vm3997, %v3985, %v3878
        %v4003 = vsel %vm3997, %v3986, %v3880
        %v4004 = vsel %vm3997, %v3987, %v3882
        %v4005 = vsel %vm3997, %v3988, %v3884
        %v4006 = vsel %vm3997, %v3989, %v3886
        %v4007 = vsel %vm3997, %v3990, %v3888
        %v4008 = vsel %vm3997, %v3991, %v3890
        %v4009 = vsel %vm3997, %v3992, %v3892
        %v4010 = vsel %vm3997, %v3993, %v3894
        %v4011 = vsel %vm3997, %v3994, %v3896
        %v4012 = vsel %vm3997, %v3995, %v3898
        %v4013 = vsel %vm3997, %v3996, %v3900
        %vm4014 = vcmask 785408
        %v4015 = vsel %vm4014, %v3998, %v3934
        %v4016 = vsel %vm4014, %v3999, %v3936
        %v4017 = vsel %vm4014, %v4000, %v3938
        %v4018 = vsel %vm4014, %v4001, %v3940
        %v4019 = vsel %vm4014, %v4002, %v3942
        %v4020 = vsel %vm4014, %v4003, %v3944
        %v4021 = vsel %vm4014, %v4004, %v3946
        %v4022 = vsel %vm4014, %v4005, %v3948
        %v4023 = vsel %vm4014, %v4006, %v3950
        %v4024 = vsel %vm4014, %v4007, %v3952
        %v4025 = vsel %vm4014, %v4008, %v3954
        %v4026 = vsel %vm4014, %v4009, %v3956
        %v4027 = vsel %vm4014, %v4010, %v3958
        %v4028 = vsel %vm4014, %v4011, %v3960
        %v4029 = vsel %vm4014, %v4012, %v3962
        %v4030 = vsel %vm4014, %v4013, %v3964
        %v4031 = vpack.c.bf16 %v4016, %v4015
        %v4032 = vpack.c.bf16 %v4018, %v4017
        %v4033 = vpack.c.bf16 %v4020, %v4019
        %v4034 = vpack.c.bf16 %v4022, %v4021
        %v4035 = vpack.c.bf16 %v4024, %v4023
        %v4036 = vpack.c.bf16 %v4026, %v4025
        %v4037 = vpack.c.bf16 %v4028, %v4027
        %v4038 = vpack.c.bf16 %v4030, %v4029
        %v4039 = vld [vmem:[#allocation8] sm:$0xf]
        %v4040 = vld [vmem:[#allocation8 + $0x4] sm:$0xf]
        %v4041 = vld [vmem:[#allocation8 + $0x8] sm:$0xf]
        %v4042 = vld [vmem:[#allocation8 + $0xc] sm:$0xf]
        %v4043 = vld [vmem:[#allocation8 + $0x10] sm:$0xf]
        %v4044 = vld [vmem:[#allocation8 + $0x14] sm:$0xf]
        %v4045 = vld [vmem:[#allocation8 + $0x18] sm:$0xf]
        %v4046 = vld [vmem:[#allocation8 + $0x1c] sm:$0xf]
        %v4047 = vld [vmem:[#allocation8 + $0x20] sm:$0xf]
        %v4048 = vld [vmem:[#allocation8 + $0x24] sm:$0xf]
        %v4049 = vld [vmem:[#allocation8 + $0x28] sm:$0xf]
        %v4050 = vld [vmem:[#allocation8 + $0x2c] sm:$0xf]
        %v4051 = vld [vmem:[#allocation8 + $0x30] sm:$0xf]
        %v4052 = vld [vmem:[#allocation8 + $0x34] sm:$0xf]
        %v4053 = vld [vmem:[#allocation8 + $0x38] sm:$0xf]
        %v4054 = vld [vmem:[#allocation8 + $0x3c] sm:$0xf]
        %v4055 = vperm.slane %v479, 4
        %v4072 = vunpack.c.l.b16 %v4039
        %v4073 = vunpack.c.l.b16 %v4040
        %v4074 = vunpack.c.l.b16 %v4041
        %v4075 = vunpack.c.l.b16 %v4042
        %v4076 = vunpack.c.l.b16 %v4043
        %v4077 = vunpack.c.l.b16 %v4044
        %v4078 = vunpack.c.l.b16 %v4045
        %v4079 = vunpack.c.l.b16 %v4046
        %v4080 = vunpack.c.l.b16 %v4047
        %v4081 = vunpack.c.l.b16 %v4048
        %v4082 = vunpack.c.l.b16 %v4049
        %v4083 = vunpack.c.l.b16 %v4050
        %v4084 = vunpack.c.l.b16 %v4051
        %v4085 = vunpack.c.l.b16 %v4052
        %v4086 = vunpack.c.l.b16 %v4053
        %v4087 = vunpack.c.l.b16 %v4054
        %v4088 = vpack.c.b16 %v4073, %v4072
        %v4089 = vpack.c.b16 %v4075, %v4074
        %v4090 = vpack.c.b16 %v4077, %v4076
        %v4091 = vpack.c.b16 %v4079, %v4078
        %v4092 = vpack.c.b16 %v4081, %v4080
        %v4093 = vpack.c.b16 %v4083, %v4082
        %v4094 = vpack.c.b16 %v4085, %v4084
        %v4095 = vpack.c.b16 %v4087, %v4086
        %4104 = vmatpush.bf16.msra.mxu0 %v4095
        %4105 = vmatpush.bf16.msra.mxu0 %v4094
        %4106 = vmatpush.bf16.msra.mxu0 %v4093
        %4107 = vmatpush.bf16.msra.mxu0 %v4092
        %4108 = vmatpush.bf16.msra.mxu0 %v4091
        %4109 = vmatpush.bf16.msra.mxu0 %v4090
        %4110 = vmatpush.bf16.msra.mxu0 %v4089
        %4111 = vmatpush.bf16.msra.mxu0 %v4088
        %4112 = vmatmul.bf16.gmra.mxu0 %v4031
        %v4113 = vpop.f32.mrf.mxu0
        %v4114 = vadd.f32 %v4055, %v4113
        %v4115 = vpop.f32.mrf.mxu0
        %v4116 = vadd.f32 %v4055, %v4115
        %4117 = vmatmul.bf16.gmra.mxu0 %v4032
        %v4118 = vpop.f32.mrf.mxu0
        %v4119 = vadd.f32 %v4055, %v4118
        %v4120 = vpop.f32.mrf.mxu0
        %v4121 = vadd.f32 %v4055, %v4120
        %4122 = vmatmul.bf16.gmra.mxu0 %v4033
        %v4123 = vpop.f32.mrf.mxu0
        %v4124 = vadd.f32 %v4055, %v4123
        %v4125 = vpop.f32.mrf.mxu0
        %v4126 = vadd.f32 %v4055, %v4125
        %4127 = vmatmul.bf16.gmra.mxu0 %v4034
        %v4128 = vpop.f32.mrf.mxu0
        %v4129 = vadd.f32 %v4055, %v4128
        %v4130 = vpop.f32.mrf.mxu0
        %v4131 = vadd.f32 %v4055, %v4130
        %4132 = vmatmul.bf16.gmra.mxu0 %v4035
        %v4133 = vpop.f32.mrf.mxu0
        %v4134 = vadd.f32 %v4055, %v4133
        %v4135 = vpop.f32.mrf.mxu0
        %v4136 = vadd.f32 %v4055, %v4135
        %4137 = vmatmul.bf16.gmra.mxu0 %v4036
        %v4138 = vpop.f32.mrf.mxu0
        %v4139 = vadd.f32 %v4055, %v4138
        %v4140 = vpop.f32.mrf.mxu0
        %v4141 = vadd.f32 %v4055, %v4140
        %4142 = vmatmul.bf16.gmra.mxu0 %v4037
        %v4143 = vpop.f32.mrf.mxu0
        %v4144 = vadd.f32 %v4055, %v4143
        %v4145 = vpop.f32.mrf.mxu0
        %v4146 = vadd.f32 %v4055, %v4145
        %4147 = vmatmul.bf16.gmra.mxu0 %v4038
        %v4148 = vpop.f32.mrf.mxu0
        %v4149 = vadd.f32 %v4055, %v4148
        %v4150 = vpop.f32.mrf.mxu0
        %v4151 = vadd.f32 %v4055, %v4150
        %4152 = vdwg.mxu0
        %v4153 = vadd.f32 %v480, %v4114
        %v4154 = vadd.f32 %v481, %v4116
        %v4155 = vadd.f32 %v482, %v4119
        %v4156 = vadd.f32 %v483, %v4121
        %v4157 = vadd.f32 %v484, %v4124
        %v4158 = vadd.f32 %v485, %v4126
        %v4159 = vadd.f32 %v486, %v4129
        %v4160 = vadd.f32 %v487, %v4131
        %v4161 = vadd.f32 %v488, %v4134
        %v4162 = vadd.f32 %v489, %v4136
        %v4163 = vadd.f32 %v490, %v4139
        %v4164 = vadd.f32 %v491, %v4141
        %v4165 = vadd.f32 %v492, %v4144
        %v4166 = vadd.f32 %v493, %v4146
        %v4167 = vadd.f32 %v494, %v4149
        %v4168 = vadd.f32 %v495, %v4151
        %4169 = vadd.xlane.f32.xlu0 %v4153
        %v4170 = vpop.xlane.xlu0 %4169
        %4171 = vadd.xlane.f32.xlu0 %v4154
        %v4172 = vpop.xlane.xlu0 %4171
        %4173 = vadd.xlane.f32.xlu0 %v4155
        %v4174 = vpop.xlane.xlu0 %4173
        %4175 = vadd.xlane.f32.xlu0 %v4156
        %v4176 = vpop.xlane.xlu0 %4175
        %4177 = vadd.xlane.f32.xlu0 %v4157
        %v4178 = vpop.xlane.xlu0 %4177
        %4179 = vadd.xlane.f32.xlu0 %v4158
        %v4180 = vpop.xlane.xlu0 %4179
        %4181 = vadd.xlane.f32.xlu0 %v4159
        %v4182 = vpop.xlane.xlu0 %4181
        %4183 = vadd.xlane.f32.xlu0 %v4160
        %v4184 = vpop.xlane.xlu0 %4183
        %4185 = vadd.xlane.f32.xlu0 %v4161
        %v4186 = vpop.xlane.xlu0 %4185
        %4187 = vadd.xlane.f32.xlu0 %v4162
        %v4188 = vpop.xlane.xlu0 %4187
        %4189 = vadd.xlane.f32.xlu0 %v4163
        %v4190 = vpop.xlane.xlu0 %4189
        %4191 = vadd.xlane.f32.xlu0 %v4164
        %v4192 = vpop.xlane.xlu0 %4191
        %4193 = vadd.xlane.f32.xlu0 %v4165
        %v4194 = vpop.xlane.xlu0 %4193
        %4195 = vadd.xlane.f32.xlu0 %v4166
        %v4196 = vpop.xlane.xlu0 %4195
        %4197 = vadd.xlane.f32.xlu0 %v4167
        %v4198 = vpop.xlane.xlu0 %4197
        %4199 = vadd.xlane.f32.xlu0 %v4168
        %v4200 = vpop.xlane.xlu0 %4199
        %v4201 = vmul.f32 %v4170, %v534
        %v4202 = vmul.f32 %v4172, %v534
        %v4203 = vmul.f32 %v4174, %v534
        %v4204 = vmul.f32 %v4176, %v534
        %v4205 = vmul.f32 %v4178, %v534
        %v4206 = vmul.f32 %v4180, %v534
        %v4207 = vmul.f32 %v4182, %v534
        %v4208 = vmul.f32 %v4184, %v534
        %v4209 = vmul.f32 %v4186, %v534
        %v4210 = vmul.f32 %v4188, %v534
        %v4211 = vmul.f32 %v4190, %v534
        %v4212 = vmul.f32 %v4192, %v534
        %v4213 = vmul.f32 %v4194, %v534
        %v4214 = vmul.f32 %v4196, %v534
        %v4215 = vmul.f32 %v4198, %v534
        %v4216 = vmul.f32 %v4200, %v534
        %v4217 = vsub.f32 %v4153, %v4201
        %v4218 = vsub.f32 %v4154, %v4202
        %v4219 = vsub.f32 %v4155, %v4203
        %v4220 = vsub.f32 %v4156, %v4204
        %v4221 = vsub.f32 %v4157, %v4205
        %v4222 = vsub.f32 %v4158, %v4206
        %v4223 = vsub.f32 %v4159, %v4207
        %v4224 = vsub.f32 %v4160, %v4208
        %v4225 = vsub.f32 %v4161, %v4209
        %v4226 = vsub.f32 %v4162, %v4210
        %v4227 = vsub.f32 %v4163, %v4211
        %v4228 = vsub.f32 %v4164, %v4212
        %v4229 = vsub.f32 %v4165, %v4213
        %v4230 = vsub.f32 %v4166, %v4214
        %v4231 = vsub.f32 %v4167, %v4215
        %v4232 = vsub.f32 %v4168, %v4216
        %v4233 = vmul.f32 %v4217, %v4217
        %v4234 = vmul.f32 %v4218, %v4218
        %v4235 = vmul.f32 %v4219, %v4219
        %v4236 = vmul.f32 %v4220, %v4220
        %v4237 = vmul.f32 %v4221, %v4221
        %v4238 = vmul.f32 %v4222, %v4222
        %v4239 = vmul.f32 %v4223, %v4223
        %v4240 = vmul.f32 %v4224, %v4224
        %v4241 = vmul.f32 %v4225, %v4225
        %v4242 = vmul.f32 %v4226, %v4226
        %v4243 = vmul.f32 %v4227, %v4227
        %v4244 = vmul.f32 %v4228, %v4228
        %v4245 = vmul.f32 %v4229, %v4229
        %v4246 = vmul.f32 %v4230, %v4230
        %v4247 = vmul.f32 %v4231, %v4231
        %v4248 = vmul.f32 %v4232, %v4232
        %4249 = vadd.xlane.f32.xlu0 %v4233
        %v4250 = vpop.xlane.xlu0 %4249
        %4251 = vadd.xlane.f32.xlu0 %v4234
        %v4252 = vpop.xlane.xlu0 %4251
        %4253 = vadd.xlane.f32.xlu0 %v4235
        %v4254 = vpop.xlane.xlu0 %4253
        %4255 = vadd.xlane.f32.xlu0 %v4236
        %v4256 = vpop.xlane.xlu0 %4255
        %4257 = vadd.xlane.f32.xlu0 %v4237
        %v4258 = vpop.xlane.xlu0 %4257
        %4259 = vadd.xlane.f32.xlu0 %v4238
        %v4260 = vpop.xlane.xlu0 %4259
        %4261 = vadd.xlane.f32.xlu0 %v4239
        %v4262 = vpop.xlane.xlu0 %4261
        %4263 = vadd.xlane.f32.xlu0 %v4240
        %v4264 = vpop.xlane.xlu0 %4263
        %4265 = vadd.xlane.f32.xlu0 %v4241
        %v4266 = vpop.xlane.xlu0 %4265
        %4267 = vadd.xlane.f32.xlu0 %v4242
        %v4268 = vpop.xlane.xlu0 %4267
        %4269 = vadd.xlane.f32.xlu0 %v4243
        %v4270 = vpop.xlane.xlu0 %4269
        %4271 = vadd.xlane.f32.xlu0 %v4244
        %v4272 = vpop.xlane.xlu0 %4271
        %4273 = vadd.xlane.f32.xlu0 %v4245
        %v4274 = vpop.xlane.xlu0 %4273
        %4275 = vadd.xlane.f32.xlu0 %v4246
        %v4276 = vpop.xlane.xlu0 %4275
        %4277 = vadd.xlane.f32.xlu0 %v4247
        %v4278 = vpop.xlane.xlu0 %4277
        %4279 = vadd.xlane.f32.xlu0 %v4248
        %v4280 = vpop.xlane.xlu0 %4279
        %v4281 = vmul.f32 %v4250, %v534
        %v4282 = vmul.f32 %v4252, %v534
        %v4283 = vmul.f32 %v4254, %v534
        %v4284 = vmul.f32 %v4256, %v534
        %v4285 = vmul.f32 %v4258, %v534
        %v4286 = vmul.f32 %v4260, %v534
        %v4287 = vmul.f32 %v4262, %v534
        %v4288 = vmul.f32 %v4264, %v534
        %v4289 = vmul.f32 %v4266, %v534
        %v4290 = vmul.f32 %v4268, %v534
        %v4291 = vmul.f32 %v4270, %v534
        %v4292 = vmul.f32 %v4272, %v534
        %v4293 = vmul.f32 %v4274, %v534
        %v4294 = vmul.f32 %v4276, %v534
        %v4295 = vmul.f32 %v4278, %v534
        %v4296 = vmul.f32 %v4280, %v534
        %v4297 = vadd.f32 %v4281, 1e-05
        %v4298 = vadd.f32 %v4282, 1e-05
        %v4299 = vadd.f32 %v4283, 1e-05
        %v4300 = vadd.f32 %v4284, 1e-05
        %v4301 = vadd.f32 %v4285, 1e-05
        %v4302 = vadd.f32 %v4286, 1e-05
        %v4303 = vadd.f32 %v4287, 1e-05
        %v4304 = vadd.f32 %v4288, 1e-05
        %v4305 = vadd.f32 %v4289, 1e-05
        %v4306 = vadd.f32 %v4290, 1e-05
        %v4307 = vadd.f32 %v4291, 1e-05
        %v4308 = vadd.f32 %v4292, 1e-05
        %v4309 = vadd.f32 %v4293, 1e-05
        %v4310 = vadd.f32 %v4294, 1e-05
        %v4311 = vadd.f32 %v4295, 1e-05
        %v4312 = vadd.f32 %v4296, 1e-05
        %v4313 = vrsqrt.pop %v4297
        %v4314 = vmul.f32 %v4313, %v4297
        %v4315 = vmul.f32 %v4314, %v4313
        %v4316 = vmul.f32 0.5, %v4315
        %v4317 = vsub.f32 1.5, %v4316
        %v4318 = vmul.f32 %v4313, %v4317
        %vm4319 = vweird.f32 %v4297
        %vm4320 = vweird.f32 %v4313
        %vm4321 = vmor %vm4319, %vm4320
        %v4322 = vsel %vm4321, %v4313, %v4318
        %v4323 = vrsqrt.pop %v4298
        %v4324 = vmul.f32 %v4323, %v4298
        %v4325 = vmul.f32 %v4324, %v4323
        %v4326 = vmul.f32 0.5, %v4325
        %v4327 = vsub.f32 1.5, %v4326
        %v4328 = vmul.f32 %v4323, %v4327
        %vm4329 = vweird.f32 %v4298
        %vm4330 = vweird.f32 %v4323
        %vm4331 = vmor %vm4329, %vm4330
        %v4332 = vsel %vm4331, %v4323, %v4328
        %v4333 = vrsqrt.pop %v4299
        %v4334 = vmul.f32 %v4333, %v4299
        %v4335 = vmul.f32 %v4334, %v4333
        %v4336 = vmul.f32 0.5, %v4335
        %v4337 = vsub.f32 1.5, %v4336
        %v4338 = vmul.f32 %v4333, %v4337
        %vm4339 = vweird.f32 %v4299
        %vm4340 = vweird.f32 %v4333
        %vm4341 = vmor %vm4339, %vm4340
        %v4342 = vsel %vm4341, %v4333, %v4338
        %v4343 = vrsqrt.pop %v4300
        %v4344 = vmul.f32 %v4343, %v4300
        %v4345 = vmul.f32 %v4344, %v4343
        %v4346 = vmul.f32 0.5, %v4345
        %v4347 = vsub.f32 1.5, %v4346
        %v4348 = vmul.f32 %v4343, %v4347
        %vm4349 = vweird.f32 %v4300
        %vm4350 = vweird.f32 %v4343
        %vm4351 = vmor %vm4349, %vm4350
        %v4352 = vsel %vm4351, %v4343, %v4348
        %v4353 = vrsqrt.pop %v4301
        %v4354 = vmul.f32 %v4353, %v4301
        %v4355 = vmul.f32 %v4354, %v4353
        %v4356 = vmul.f32 0.5, %v4355
        %v4357 = vsub.f32 1.5, %v4356
        %v4358 = vmul.f32 %v4353, %v4357
        %vm4359 = vweird.f32 %v4301
        %vm4360 = vweird.f32 %v4353
        %vm4361 = vmor %vm4359, %vm4360
        %v4362 = vsel %vm4361, %v4353, %v4358
        %v4363 = vrsqrt.pop %v4302
        %v4364 = vmul.f32 %v4363, %v4302
        %v4365 = vmul.f32 %v4364, %v4363
        %v4366 = vmul.f32 0.5, %v4365
        %v4367 = vsub.f32 1.5, %v4366
        %v4368 = vmul.f32 %v4363, %v4367
        %vm4369 = vweird.f32 %v4302
        %vm4370 = vweird.f32 %v4363
        %vm4371 = vmor %vm4369, %vm4370
        %v4372 = vsel %vm4371, %v4363, %v4368
        %v4373 = vrsqrt.pop %v4303
        %v4374 = vmul.f32 %v4373, %v4303
        %v4375 = vmul.f32 %v4374, %v4373
        %v4376 = vmul.f32 0.5, %v4375
        %v4377 = vsub.f32 1.5, %v4376
        %v4378 = vmul.f32 %v4373, %v4377
        %vm4379 = vweird.f32 %v4303
        %vm4380 = vweird.f32 %v4373
        %vm4381 = vmor %vm4379, %vm4380
        %v4382 = vsel %vm4381, %v4373, %v4378
        %v4383 = vrsqrt.pop %v4304
        %v4384 = vmul.f32 %v4383, %v4304
        %v4385 = vmul.f32 %v4384, %v4383
        %v4386 = vmul.f32 0.5, %v4385
        %v4387 = vsub.f32 1.5, %v4386
        %v4388 = vmul.f32 %v4383, %v4387
        %vm4389 = vweird.f32 %v4304
        %vm4390 = vweird.f32 %v4383
        %vm4391 = vmor %vm4389, %vm4390
        %v4392 = vsel %vm4391, %v4383, %v4388
        %v4393 = vrsqrt.pop %v4305
        %v4394 = vmul.f32 %v4393, %v4305
        %v4395 = vmul.f32 %v4394, %v4393
        %v4396 = vmul.f32 0.5, %v4395
        %v4397 = vsub.f32 1.5, %v4396
        %v4398 = vmul.f32 %v4393, %v4397
        %vm4399 = vweird.f32 %v4305
        %vm4400 = vweird.f32 %v4393
        %vm4401 = vmor %vm4399, %vm4400
        %v4402 = vsel %vm4401, %v4393, %v4398
        %v4403 = vrsqrt.pop %v4306
        %v4404 = vmul.f32 %v4403, %v4306
        %v4405 = vmul.f32 %v4404, %v4403
        %v4406 = vmul.f32 0.5, %v4405
        %v4407 = vsub.f32 1.5, %v4406
        %v4408 = vmul.f32 %v4403, %v4407
        %vm4409 = vweird.f32 %v4306
        %vm4410 = vweird.f32 %v4403
        %vm4411 = vmor %vm4409, %vm4410
        %v4412 = vsel %vm4411, %v4403, %v4408
        %v4413 = vrsqrt.pop %v4307
        %v4414 = vmul.f32 %v4413, %v4307
        %v4415 = vmul.f32 %v4414, %v4413
        %v4416 = vmul.f32 0.5, %v4415
        %v4417 = vsub.f32 1.5, %v4416
        %v4418 = vmul.f32 %v4413, %v4417
        %vm4419 = vweird.f32 %v4307
        %vm4420 = vweird.f32 %v4413
        %vm4421 = vmor %vm4419, %vm4420
        %v4422 = vsel %vm4421, %v4413, %v4418
        %v4423 = vrsqrt.pop %v4308
        %v4424 = vmul.f32 %v4423, %v4308
        %v4425 = vmul.f32 %v4424, %v4423
        %v4426 = vmul.f32 0.5, %v4425
        %v4427 = vsub.f32 1.5, %v4426
        %v4428 = vmul.f32 %v4423, %v4427
        %vm4429 = vweird.f32 %v4308
        %vm4430 = vweird.f32 %v4423
        %vm4431 = vmor %vm4429, %vm4430
        %v4432 = vsel %vm4431, %v4423, %v4428
        %v4433 = vrsqrt.pop %v4309
        %v4434 = vmul.f32 %v4433, %v4309
        %v4435 = vmul.f32 %v4434, %v4433
        %v4436 = vmul.f32 0.5, %v4435
        %v4437 = vsub.f32 1.5, %v4436
        %v4438 = vmul.f32 %v4433, %v4437
        %vm4439 = vweird.f32 %v4309
        %vm4440 = vweird.f32 %v4433
        %vm4441 = vmor %vm4439, %vm4440
        %v4442 = vsel %vm4441, %v4433, %v4438
        %v4443 = vrsqrt.pop %v4310
        %v4444 = vmul.f32 %v4443, %v4310
        %v4445 = vmul.f32 %v4444, %v4443
        %v4446 = vmul.f32 0.5, %v4445
        %v4447 = vsub.f32 1.5, %v4446
        %v4448 = vmul.f32 %v4443, %v4447
        %vm4449 = vweird.f32 %v4310
        %vm4450 = vweird.f32 %v4443
        %vm4451 = vmor %vm4449, %vm4450
        %v4452 = vsel %vm4451, %v4443, %v4448
        %v4453 = vrsqrt.pop %v4311
        %v4454 = vmul.f32 %v4453, %v4311
        %v4455 = vmul.f32 %v4454, %v4453
        %v4456 = vmul.f32 0.5, %v4455
        %v4457 = vsub.f32 1.5, %v4456
        %v4458 = vmul.f32 %v4453, %v4457
        %vm4459 = vweird.f32 %v4311
        %vm4460 = vweird.f32 %v4453
        %vm4461 = vmor %vm4459, %vm4460
        %v4462 = vsel %vm4461, %v4453, %v4458
        %v4463 = vrsqrt.pop %v4312
        %v4464 = vmul.f32 %v4463, %v4312
        %v4465 = vmul.f32 %v4464, %v4463
        %v4466 = vmul.f32 0.5, %v4465
        %v4467 = vsub.f32 1.5, %v4466
        %v4468 = vmul.f32 %v4463, %v4467
        %vm4469 = vweird.f32 %v4312
        %vm4470 = vweird.f32 %v4463
        %vm4471 = vmor %vm4469, %vm4470
        %v4472 = vsel %vm4471, %v4463, %v4468
        %v4473 = vmul.f32 %v4217, %v4322
        %v4474 = vmul.f32 %v4218, %v4332
        %v4475 = vmul.f32 %v4219, %v4342
        %v4476 = vmul.f32 %v4220, %v4352
        %v4477 = vmul.f32 %v4221, %v4362
        %v4478 = vmul.f32 %v4222, %v4372
        %v4479 = vmul.f32 %v4223, %v4382
        %v4480 = vmul.f32 %v4224, %v4392
        %v4481 = vmul.f32 %v4225, %v4402
        %v4482 = vmul.f32 %v4226, %v4412
        %v4483 = vmul.f32 %v4227, %v4422
        %v4484 = vmul.f32 %v4228, %v4432
        %v4485 = vmul.f32 %v4229, %v4442
        %v4486 = vmul.f32 %v4230, %v4452
        %v4487 = vmul.f32 %v4231, %v4462
        %v4488 = vmul.f32 %v4232, %v4472
        %v4489 = vperm.slane %v479, 2
        %v4490 = vmul.f32 %v4473, %v4489
        %v4491 = vmul.f32 %v4474, %v4489
        %v4492 = vmul.f32 %v4475, %v4489
        %v4493 = vmul.f32 %v4476, %v4489
        %v4494 = vmul.f32 %v4477, %v4489
        %v4495 = vmul.f32 %v4478, %v4489
        %v4496 = vmul.f32 %v4479, %v4489
        %v4497 = vmul.f32 %v4480, %v4489
        %v4498 = vmul.f32 %v4481, %v4489
        %v4499 = vmul.f32 %v4482, %v4489
        %v4500 = vmul.f32 %v4483, %v4489
        %v4501 = vmul.f32 %v4484, %v4489
        %v4502 = vmul.f32 %v4485, %v4489
        %v4503 = vmul.f32 %v4486, %v4489
        %v4504 = vmul.f32 %v4487, %v4489
        %v4505 = vmul.f32 %v4488, %v4489
        %v4506 = vperm.slane %v479, 3
        %v4507 = vadd.f32 %v4490, %v4506
        %v4508 = vadd.f32 %v4491, %v4506
        %v4509 = vadd.f32 %v4492, %v4506
        %v4510 = vadd.f32 %v4493, %v4506
        %v4511 = vadd.f32 %v4494, %v4506
        %v4512 = vadd.f32 %v4495, %v4506
        %v4513 = vadd.f32 %v4496, %v4506
        %v4514 = vadd.f32 %v4497, %v4506
        %v4515 = vadd.f32 %v4498, %v4506
        %v4516 = vadd.f32 %v4499, %v4506
        %v4517 = vadd.f32 %v4500, %v4506
        %v4518 = vadd.f32 %v4501, %v4506
        %v4519 = vadd.f32 %v4502, %v4506
        %v4520 = vadd.f32 %v4503, %v4506
        %v4521 = vadd.f32 %v4504, %v4506
        %v4522 = vadd.f32 %v4505, %v4506
        %v4523 = vpack.c.bf16 %v4508, %v4507
        %v4524 = vpack.c.bf16 %v4510, %v4509
        %v4525 = vpack.c.bf16 %v4512, %v4511
        %v4526 = vpack.c.bf16 %v4514, %v4513
        %v4527 = vpack.c.bf16 %v4516, %v4515
        %v4528 = vpack.c.bf16 %v4518, %v4517
        %v4529 = vpack.c.bf16 %v4520, %v4519
        %v4530 = vpack.c.bf16 %v4522, %v4521
        %v4531 = vld [vmem:[#allocation10] sm:$0xff]
        %v4532 = vld [vmem:[#allocation10 + $0x8] sm:$0xff]
        %v4533 = vld [vmem:[#allocation10 + $0x10] sm:$0xff]
        %v4534 = vld [vmem:[#allocation10 + $0x18] sm:$0xff]
        %v4535 = vld [vmem:[#allocation10 + $0x20] sm:$0xff]
        %v4536 = vld [vmem:[#allocation10 + $0x28] sm:$0xff]
        %v4537 = vld [vmem:[#allocation10 + $0x30] sm:$0xff]
        %v4538 = vld [vmem:[#allocation10 + $0x38] sm:$0xff]
        %v4539 = vld [vmem:[#allocation10 + $0x40] sm:$0xff]
        %v4540 = vld [vmem:[#allocation10 + $0x48] sm:$0xff]
        %v4541 = vld [vmem:[#allocation10 + $0x50] sm:$0xff]
        %v4542 = vld [vmem:[#allocation10 + $0x58] sm:$0xff]
        %v4543 = vld [vmem:[#allocation10 + $0x60] sm:$0xff]
        %v4544 = vld [vmem:[#allocation10 + $0x68] sm:$0xff]
        %v4545 = vld [vmem:[#allocation10 + $0x70] sm:$0xff]
        %v4546 = vld [vmem:[#allocation10 + $0x78] sm:$0xff]
        %v4547 = vld [vmem:[%s7] sm:$0x3]
        %v4549 = vperm.slane %v4547, 0
        %v4550 = vperm.slane %v4547, 1
        %v4569 = vunpack.c.l.b16 %v4531
        %v4570 = vunpack.c.h.b16 %v4531
        %v4571 = vunpack.c.l.b16 %v4532
        %v4572 = vunpack.c.h.b16 %v4532
        %v4573 = vunpack.c.l.b16 %v4533
        %v4574 = vunpack.c.h.b16 %v4533
        %v4575 = vunpack.c.l.b16 %v4534
        %v4576 = vunpack.c.h.b16 %v4534
        %v4577 = vunpack.c.l.b16 %v4535
        %v4578 = vunpack.c.h.b16 %v4535
        %v4579 = vunpack.c.l.b16 %v4536
        %v4580 = vunpack.c.h.b16 %v4536
        %v4581 = vunpack.c.l.b16 %v4537
        %v4582 = vunpack.c.h.b16 %v4537
        %v4583 = vunpack.c.l.b16 %v4538
        %v4584 = vunpack.c.h.b16 %v4538
        %v4585 = vunpack.c.l.b16 %v4539
        %v4586 = vunpack.c.h.b16 %v4539
        %v4587 = vunpack.c.l.b16 %v4540
        %v4588 = vunpack.c.h.b16 %v4540
        %v4589 = vunpack.c.l.b16 %v4541
        %v4590 = vunpack.c.h.b16 %v4541
        %v4591 = vunpack.c.l.b16 %v4542
        %v4592 = vunpack.c.h.b16 %v4542
        %v4593 = vunpack.c.l.b16 %v4543
        %v4594 = vunpack.c.h.b16 %v4543
        %v4595 = vunpack.c.l.b16 %v4544
        %v4596 = vunpack.c.h.b16 %v4544
        %v4597 = vunpack.c.l.b16 %v4545
        %v4598 = vunpack.c.h.b16 %v4545
        %v4599 = vunpack.c.l.b16 %v4546
        %v4600 = vunpack.c.h.b16 %v4546
        %v4601 = vpack.c.b16 %v4571, %v4569
        %v4602 = vpack.c.b16 %v4572, %v4570
        %v4603 = vpack.c.b16 %v4575, %v4573
        %v4604 = vpack.c.b16 %v4576, %v4574
        %v4605 = vpack.c.b16 %v4579, %v4577
        %v4606 = vpack.c.b16 %v4580, %v4578
        %v4607 = vpack.c.b16 %v4583, %v4581
        %v4608 = vpack.c.b16 %v4584, %v4582
        %v4609 = vpack.c.b16 %v4587, %v4585
        %v4610 = vpack.c.b16 %v4588, %v4586
        %v4611 = vpack.c.b16 %v4591, %v4589
        %v4612 = vpack.c.b16 %v4592, %v4590
        %v4613 = vpack.c.b16 %v4595, %v4593
        %v4614 = vpack.c.b16 %v4596, %v4594
        %v4615 = vpack.c.b16 %v4599, %v4597
        %v4616 = vpack.c.b16 %v4600, %v4598
        %4633 = vmatpush.bf16.msra.mxu0 %v4615
        %4634 = vmatpush.bf16.msra.mxu0 %v4613
        %4635 = vmatpush.bf16.msra.mxu0 %v4611
        %4636 = vmatpush.bf16.msra.mxu0 %v4609
        %4637 = vmatpush.bf16.msra.mxu0 %v4607
        %4638 = vmatpush.bf16.msra.mxu0 %v4605
        %4639 = vmatpush.bf16.msra.mxu0 %v4603
        %4640 = vmatpush.bf16.msra.mxu0 %v4601
        %4641 = vmatmul.bf16.gmra.mxu0 %v4523
        %v4642 = vpop.f32.mrf.mxu0
        %v4643 = vadd.f32 %v4549, %v4642
        %v4644 = vpop.f32.mrf.mxu0
        %v4645 = vadd.f32 %v4549, %v4644
        %4646 = vmatmul.bf16.gmra.mxu0 %v4524
        %v4647 = vpop.f32.mrf.mxu0
        %v4648 = vadd.f32 %v4549, %v4647
        %v4649 = vpop.f32.mrf.mxu0
        %v4650 = vadd.f32 %v4549, %v4649
        %4651 = vmatmul.bf16.gmra.mxu0 %v4525
        %v4652 = vpop.f32.mrf.mxu0
        %v4653 = vadd.f32 %v4549, %v4652
        %v4654 = vpop.f32.mrf.mxu0
        %v4655 = vadd.f32 %v4549, %v4654
        %4656 = vmatmul.bf16.gmra.mxu0 %v4526
        %v4657 = vpop.f32.mrf.mxu0
        %v4658 = vadd.f32 %v4549, %v4657
        %v4659 = vpop.f32.mrf.mxu0
        %v4660 = vadd.f32 %v4549, %v4659
        %4661 = vmatmul.bf16.gmra.mxu0 %v4527
        %v4662 = vpop.f32.mrf.mxu0
        %v4663 = vadd.f32 %v4549, %v4662
        %v4664 = vpop.f32.mrf.mxu0
        %v4665 = vadd.f32 %v4549, %v4664
        %4666 = vmatmul.bf16.gmra.mxu0 %v4528
        %v4667 = vpop.f32.mrf.mxu0
        %v4668 = vadd.f32 %v4549, %v4667
        %v4669 = vpop.f32.mrf.mxu0
        %v4670 = vadd.f32 %v4549, %v4669
        %4671 = vmatmul.bf16.gmra.mxu0 %v4529
        %v4672 = vpop.f32.mrf.mxu0
        %v4673 = vadd.f32 %v4549, %v4672
        %v4674 = vpop.f32.mrf.mxu0
        %v4675 = vadd.f32 %v4549, %v4674
        %4676 = vmatmul.bf16.gmra.mxu0 %v4530
        %v4677 = vpop.f32.mrf.mxu0
        %v4678 = vadd.f32 %v4549, %v4677
        %v4679 = vpop.f32.mrf.mxu0
        %v4680 = vadd.f32 %v4549, %v4679
        %4681 = vdwg.mxu0
        %4682 = vmatpush.bf16.msra.mxu0 %v4616
        %4683 = vmatpush.bf16.msra.mxu0 %v4614
        %4684 = vmatpush.bf16.msra.mxu0 %v4612
        %4685 = vmatpush.bf16.msra.mxu0 %v4610
        %4686 = vmatpush.bf16.msra.mxu0 %v4608
        %4687 = vmatpush.bf16.msra.mxu0 %v4606
        %4688 = vmatpush.bf16.msra.mxu0 %v4604
        %4689 = vmatpush.bf16.msra.mxu0 %v4602
        %4690 = vmatmul.bf16.gmra.mxu0 %v4523
        %v4691 = vpop.f32.mrf.mxu0
        %v4692 = vadd.f32 %v4550, %v4691
        %v4693 = vpop.f32.mrf.mxu0
        %v4694 = vadd.f32 %v4550, %v4693
        %4695 = vmatmul.bf16.gmra.mxu0 %v4524
        %v4696 = vpop.f32.mrf.mxu0
        %v4697 = vadd.f32 %v4550, %v4696
        %v4698 = vpop.f32.mrf.mxu0
        %v4699 = vadd.f32 %v4550, %v4698
        %4700 = vmatmul.bf16.gmra.mxu0 %v4525
        %v4701 = vpop.f32.mrf.mxu0
        %v4702 = vadd.f32 %v4550, %v4701
        %v4703 = vpop.f32.mrf.mxu0
        %v4704 = vadd.f32 %v4550, %v4703
        %4705 = vmatmul.bf16.gmra.mxu0 %v4526
        %v4706 = vpop.f32.mrf.mxu0
        %v4707 = vadd.f32 %v4550, %v4706
        %v4708 = vpop.f32.mrf.mxu0
        %v4709 = vadd.f32 %v4550, %v4708
        %4710 = vmatmul.bf16.gmra.mxu0 %v4527
        %v4711 = vpop.f32.mrf.mxu0
        %v4712 = vadd.f32 %v4550, %v4711
        %v4713 = vpop.f32.mrf.mxu0
        %v4714 = vadd.f32 %v4550, %v4713
        %4715 = vmatmul.bf16.gmra.mxu0 %v4528
        %v4716 = vpop.f32.mrf.mxu0
        %v4717 = vadd.f32 %v4550, %v4716
        %v4718 = vpop.f32.mrf.mxu0
        %v4719 = vadd.f32 %v4550, %v4718
        %4720 = vmatmul.bf16.gmra.mxu0 %v4529
        %v4721 = vpop.f32.mrf.mxu0
        %v4722 = vadd.f32 %v4550, %v4721
        %v4723 = vpop.f32.mrf.mxu0
        %v4724 = vadd.f32 %v4550, %v4723
        %4725 = vmatmul.bf16.gmra.mxu0 %v4530
        %v4726 = vpop.f32.mrf.mxu0
        %v4727 = vadd.f32 %v4550, %v4726
        %v4728 = vpop.f32.mrf.mxu0
        %v4729 = vadd.f32 %v4550, %v4728
        %4730 = vdwg.mxu0
        %v4731 = vmax.f32 %v4643, 0.0
        %v4732 = vmax.f32 %v4692, 0.0
        %v4733 = vmax.f32 %v4645, 0.0
        %v4734 = vmax.f32 %v4694, 0.0
        %v4735 = vmax.f32 %v4648, 0.0
        %v4736 = vmax.f32 %v4697, 0.0
        %v4737 = vmax.f32 %v4650, 0.0
        %v4738 = vmax.f32 %v4699, 0.0
        %v4739 = vmax.f32 %v4653, 0.0
        %v4740 = vmax.f32 %v4702, 0.0
        %v4741 = vmax.f32 %v4655, 0.0
        %v4742 = vmax.f32 %v4704, 0.0
        %v4743 = vmax.f32 %v4658, 0.0
        %v4744 = vmax.f32 %v4707, 0.0
        %v4745 = vmax.f32 %v4660, 0.0
        %v4746 = vmax.f32 %v4709, 0.0
        %v4747 = vmax.f32 %v4663, 0.0
        %v4748 = vmax.f32 %v4712, 0.0
        %v4749 = vmax.f32 %v4665, 0.0
        %v4750 = vmax.f32 %v4714, 0.0
        %v4751 = vmax.f32 %v4668, 0.0
        %v4752 = vmax.f32 %v4717, 0.0
        %v4753 = vmax.f32 %v4670, 0.0
        %v4754 = vmax.f32 %v4719, 0.0
        %v4755 = vmax.f32 %v4673, 0.0
        %v4756 = vmax.f32 %v4722, 0.0
        %v4757 = vmax.f32 %v4675, 0.0
        %v4758 = vmax.f32 %v4724, 0.0
        %v4759 = vmax.f32 %v4678, 0.0
        %v4760 = vmax.f32 %v4727, 0.0
        %v4761 = vmax.f32 %v4680, 0.0
        %v4762 = vmax.f32 %v4729, 0.0
        %v4763 = vpack.c.bf16 %v4733, %v4731
        %v4764 = vpack.c.bf16 %v4734, %v4732
        %v4765 = vpack.c.bf16 %v4737, %v4735
        %v4766 = vpack.c.bf16 %v4738, %v4736
        %v4767 = vpack.c.bf16 %v4741, %v4739
        %v4768 = vpack.c.bf16 %v4742, %v4740
        %v4769 = vpack.c.bf16 %v4745, %v4743
        %v4770 = vpack.c.bf16 %v4746, %v4744
        %v4771 = vpack.c.bf16 %v4749, %v4747
        %v4772 = vpack.c.bf16 %v4750, %v4748
        %v4773 = vpack.c.bf16 %v4753, %v4751
        %v4774 = vpack.c.bf16 %v4754, %v4752
        %v4775 = vpack.c.bf16 %v4757, %v4755
        %v4776 = vpack.c.bf16 %v4758, %v4756
        %v4777 = vpack.c.bf16 %v4761, %v4759
        %v4778 = vpack.c.bf16 %v4762, %v4760
        %v4779 = vld [vmem:[#allocation11] sm:$0xf]
        %v4780 = vld [vmem:[#allocation11 + $0x4] sm:$0xf]
        %v4781 = vld [vmem:[#allocation11 + $0x8] sm:$0xf]
        %v4782 = vld [vmem:[#allocation11 + $0xc] sm:$0xf]
        %v4783 = vld [vmem:[#allocation11 + $0x10] sm:$0xf]
        %v4784 = vld [vmem:[#allocation11 + $0x14] sm:$0xf]
        %v4785 = vld [vmem:[#allocation11 + $0x18] sm:$0xf]
        %v4786 = vld [vmem:[#allocation11 + $0x1c] sm:$0xf]
        %v4787 = vld [vmem:[#allocation11 + $0x20] sm:$0xf]
        %v4788 = vld [vmem:[#allocation11 + $0x24] sm:$0xf]
        %v4789 = vld [vmem:[#allocation11 + $0x28] sm:$0xf]
        %v4790 = vld [vmem:[#allocation11 + $0x2c] sm:$0xf]
        %v4791 = vld [vmem:[#allocation11 + $0x30] sm:$0xf]
        %v4792 = vld [vmem:[#allocation11 + $0x34] sm:$0xf]
        %v4793 = vld [vmem:[#allocation11 + $0x38] sm:$0xf]
        %v4794 = vld [vmem:[#allocation11 + $0x3c] sm:$0xf]
        %v4795 = vld [vmem:[#allocation11 + $0x40] sm:$0xf]
        %v4796 = vld [vmem:[#allocation11 + $0x44] sm:$0xf]
        %v4797 = vld [vmem:[#allocation11 + $0x48] sm:$0xf]
        %v4798 = vld [vmem:[#allocation11 + $0x4c] sm:$0xf]
        %v4799 = vld [vmem:[#allocation11 + $0x50] sm:$0xf]
        %v4800 = vld [vmem:[#allocation11 + $0x54] sm:$0xf]
        %v4801 = vld [vmem:[#allocation11 + $0x58] sm:$0xf]
        %v4802 = vld [vmem:[#allocation11 + $0x5c] sm:$0xf]
        %v4803 = vld [vmem:[#allocation11 + $0x60] sm:$0xf]
        %v4804 = vld [vmem:[#allocation11 + $0x64] sm:$0xf]
        %v4805 = vld [vmem:[#allocation11 + $0x68] sm:$0xf]
        %v4806 = vld [vmem:[#allocation11 + $0x6c] sm:$0xf]
        %v4807 = vld [vmem:[#allocation11 + $0x70] sm:$0xf]
        %v4808 = vld [vmem:[#allocation11 + $0x74] sm:$0xf]
        %v4809 = vld [vmem:[#allocation11 + $0x78] sm:$0xf]
        %v4810 = vld [vmem:[#allocation11 + $0x7c] sm:$0xf]
        %v4811 = vperm.slane %v479, 5
        %v4844 = vunpack.c.l.b16 %v4779
        %v4845 = vunpack.c.l.b16 %v4780
        %v4846 = vunpack.c.l.b16 %v4781
        %v4847 = vunpack.c.l.b16 %v4782
        %v4848 = vunpack.c.l.b16 %v4783
        %v4849 = vunpack.c.l.b16 %v4784
        %v4850 = vunpack.c.l.b16 %v4785
        %v4851 = vunpack.c.l.b16 %v4786
        %v4852 = vunpack.c.l.b16 %v4787
        %v4853 = vunpack.c.l.b16 %v4788
        %v4854 = vunpack.c.l.b16 %v4789
        %v4855 = vunpack.c.l.b16 %v4790
        %v4856 = vunpack.c.l.b16 %v4791
        %v4857 = vunpack.c.l.b16 %v4792
        %v4858 = vunpack.c.l.b16 %v4793
        %v4859 = vunpack.c.l.b16 %v4794
        %v4860 = vunpack.c.l.b16 %v4795
        %v4861 = vunpack.c.l.b16 %v4796
        %v4862 = vunpack.c.l.b16 %v4797
        %v4863 = vunpack.c.l.b16 %v4798
        %v4864 = vunpack.c.l.b16 %v4799
        %v4865 = vunpack.c.l.b16 %v4800
        %v4866 = vunpack.c.l.b16 %v4801
        %v4867 = vunpack.c.l.b16 %v4802
        %v4868 = vunpack.c.l.b16 %v4803
        %v4869 = vunpack.c.l.b16 %v4804
        %v4870 = vunpack.c.l.b16 %v4805
        %v4871 = vunpack.c.l.b16 %v4806
        %v4872 = vunpack.c.l.b16 %v4807
        %v4873 = vunpack.c.l.b16 %v4808
        %v4874 = vunpack.c.l.b16 %v4809
        %v4875 = vunpack.c.l.b16 %v4810
        %v4876 = vpack.c.b16 %v4845, %v4844
        %v4877 = vpack.c.b16 %v4847, %v4846
        %v4878 = vpack.c.b16 %v4849, %v4848
        %v4879 = vpack.c.b16 %v4851, %v4850
        %v4880 = vpack.c.b16 %v4853, %v4852
        %v4881 = vpack.c.b16 %v4855, %v4854
        %v4882 = vpack.c.b16 %v4857, %v4856
        %v4883 = vpack.c.b16 %v4859, %v4858
        %v4884 = vpack.c.b16 %v4861, %v4860
        %v4885 = vpack.c.b16 %v4863, %v4862
        %v4886 = vpack.c.b16 %v4865, %v4864
        %v4887 = vpack.c.b16 %v4867, %v4866
        %v4888 = vpack.c.b16 %v4869, %v4868
        %v4889 = vpack.c.b16 %v4871, %v4870
        %v4890 = vpack.c.b16 %v4873, %v4872
        %v4891 = vpack.c.b16 %v4875, %v4874
        %4908 = vmatpush.bf16.msra.mxu0 %v4883
        %4909 = vmatpush.bf16.msra.mxu0 %v4882
        %4910 = vmatpush.bf16.msra.mxu0 %v4881
        %4911 = vmatpush.bf16.msra.mxu0 %v4880
        %4912 = vmatpush.bf16.msra.mxu0 %v4879
        %4913 = vmatpush.bf16.msra.mxu0 %v4878
        %4914 = vmatpush.bf16.msra.mxu0 %v4877
        %4915 = vmatpush.bf16.msra.mxu0 %v4876
        %4916 = vmatmul.bf16.gmra.mxu0 %v4763
        %v4917 = vpop.f32.mrf.mxu0
        %v4918 = vadd.f32 %v4811, %v4917
        %v4919 = vpop.f32.mrf.mxu0
        %v4920 = vadd.f32 %v4811, %v4919
        %4921 = vmatmul.bf16.gmra.mxu0 %v4765
        %v4922 = vpop.f32.mrf.mxu0
        %v4923 = vadd.f32 %v4811, %v4922
        %v4924 = vpop.f32.mrf.mxu0
        %v4925 = vadd.f32 %v4811, %v4924
        %4926 = vmatmul.bf16.gmra.mxu0 %v4767
        %v4927 = vpop.f32.mrf.mxu0
        %v4928 = vadd.f32 %v4811, %v4927
        %v4929 = vpop.f32.mrf.mxu0
        %v4930 = vadd.f32 %v4811, %v4929
        %4931 = vmatmul.bf16.gmra.mxu0 %v4769
        %v4932 = vpop.f32.mrf.mxu0
        %v4933 = vadd.f32 %v4811, %v4932
        %v4934 = vpop.f32.mrf.mxu0
        %v4935 = vadd.f32 %v4811, %v4934
        %4936 = vmatmul.bf16.gmra.mxu0 %v4771
        %v4937 = vpop.f32.mrf.mxu0
        %v4938 = vadd.f32 %v4811, %v4937
        %v4939 = vpop.f32.mrf.mxu0
        %v4940 = vadd.f32 %v4811, %v4939
        %4941 = vmatmul.bf16.gmra.mxu0 %v4773
        %v4942 = vpop.f32.mrf.mxu0
        %v4943 = vadd.f32 %v4811, %v4942
        %v4944 = vpop.f32.mrf.mxu0
        %v4945 = vadd.f32 %v4811, %v4944
        %4946 = vmatmul.bf16.gmra.mxu0 %v4775
        %v4947 = vpop.f32.mrf.mxu0
        %v4948 = vadd.f32 %v4811, %v4947
        %v4949 = vpop.f32.mrf.mxu0
        %v4950 = vadd.f32 %v4811, %v4949
        %4951 = vmatmul.bf16.gmra.mxu0 %v4777
        %v4952 = vpop.f32.mrf.mxu0
        %v4953 = vadd.f32 %v4811, %v4952
        %v4954 = vpop.f32.mrf.mxu0
        %v4955 = vadd.f32 %v4811, %v4954
        %4956 = vdwg.mxu0
        %4957 = vmatpush.bf16.msra.mxu0 %v4891
        %4958 = vmatpush.bf16.msra.mxu0 %v4890
        %4959 = vmatpush.bf16.msra.mxu0 %v4889
        %4960 = vmatpush.bf16.msra.mxu0 %v4888
        %4961 = vmatpush.bf16.msra.mxu0 %v4887
        %4962 = vmatpush.bf16.msra.mxu0 %v4886
        %4963 = vmatpush.bf16.msra.mxu0 %v4885
        %4964 = vmatpush.bf16.msra.mxu0 %v4884
        %4965 = vmatmul.bf16.gmra.mxu0 %v4764
        %v4966 = vpop.f32.mrf.mxu0
        %v4967 = vadd.f32 %v4918, %v4966
        %v4968 = vpop.f32.mrf.mxu0
        %v4969 = vadd.f32 %v4920, %v4968
        %4970 = vmatmul.bf16.gmra.mxu0 %v4766
        %v4971 = vpop.f32.mrf.mxu0
        %v4972 = vadd.f32 %v4923, %v4971
        %v4973 = vpop.f32.mrf.mxu0
        %v4974 = vadd.f32 %v4925, %v4973
        %4975 = vmatmul.bf16.gmra.mxu0 %v4768
        %v4976 = vpop.f32.mrf.mxu0
        %v4977 = vadd.f32 %v4928, %v4976
        %v4978 = vpop.f32.mrf.mxu0
        %v4979 = vadd.f32 %v4930, %v4978
        %4980 = vmatmul.bf16.gmra.mxu0 %v4770
        %v4981 = vpop.f32.mrf.mxu0
        %v4982 = vadd.f32 %v4933, %v4981
        %v4983 = vpop.f32.mrf.mxu0
        %v4984 = vadd.f32 %v4935, %v4983
        %4985 = vmatmul.bf16.gmra.mxu0 %v4772
        %v4986 = vpop.f32.mrf.mxu0
        %v4987 = vadd.f32 %v4938, %v4986
        %v4988 = vpop.f32.mrf.mxu0
        %v4989 = vadd.f32 %v4940, %v4988
        %4990 = vmatmul.bf16.gmra.mxu0 %v4774
        %v4991 = vpop.f32.mrf.mxu0
        %v4992 = vadd.f32 %v4943, %v4991
        %v4993 = vpop.f32.mrf.mxu0
        %v4994 = vadd.f32 %v4945, %v4993
        %4995 = vmatmul.bf16.gmra.mxu0 %v4776
        %v4996 = vpop.f32.mrf.mxu0
        %v4997 = vadd.f32 %v4948, %v4996
        %v4998 = vpop.f32.mrf.mxu0
        %v4999 = vadd.f32 %v4950, %v4998
        %5000 = vmatmul.bf16.gmra.mxu0 %v4778
        %v5001 = vpop.f32.mrf.mxu0
        %v5002 = vadd.f32 %v4953, %v5001
        %v5003 = vpop.f32.mrf.mxu0
        %v5004 = vadd.f32 %v4955, %v5003
        %5005 = vdwg.mxu0
        %v5006 = vadd.f32 %v4153, %v4967
        %v5007 = vadd.f32 %v4154, %v4969
        %v5008 = vadd.f32 %v4155, %v4972
        %v5009 = vadd.f32 %v4156, %v4974
        %v5010 = vadd.f32 %v4157, %v4977
        %v5011 = vadd.f32 %v4158, %v4979
        %v5012 = vadd.f32 %v4159, %v4982
        %v5013 = vadd.f32 %v4160, %v4984
        %v5014 = vadd.f32 %v4161, %v4987
        %v5015 = vadd.f32 %v4162, %v4989
        %v5016 = vadd.f32 %v4163, %v4992
        %v5017 = vadd.f32 %v4164, %v4994
        %v5018 = vadd.f32 %v4165, %v4997
        %v5019 = vadd.f32 %v4166, %v4999
        %v5020 = vadd.f32 %v4167, %v5002
        %v5021 = vadd.f32 %v4168, %v5004
        %5022 = vst [vmem:[%s469] sm:$0xff] %v5006
        %5023 = vst [vmem:[%s469 + $0x8] sm:$0xff] %v5007
        %5024 = vst [vmem:[%s469 + $0x10] sm:$0xff] %v5008
        %5025 = vst [vmem:[%s469 + $0x18] sm:$0xff] %v5009
        %5026 = vst [vmem:[%s469 + $0x20] sm:$0xff] %v5010
        %5027 = vst [vmem:[%s469 + $0x28] sm:$0xff] %v5011
        %5028 = vst [vmem:[%s469 + $0x30] sm:$0xff] %v5012
        %5029 = vst [vmem:[%s469 + $0x38] sm:$0xff] %v5013
        %5030 = vst [vmem:[%s469 + $0x40] sm:$0xff] %v5014
        %5031 = vst [vmem:[%s469 + $0x48] sm:$0xff] %v5015
        %5032 = vst [vmem:[%s469 + $0x50] sm:$0xff] %v5016
        %5033 = vst [vmem:[%s469 + $0x58] sm:$0xff] %v5017
        %5034 = vst [vmem:[%s469 + $0x60] sm:$0xff] %v5018
        %5035 = vst [vmem:[%s469 + $0x68] sm:$0xff] %v5019
        %5036 = vst [vmem:[%s469 + $0x70] sm:$0xff] %v5020
        %5037 = vst [vmem:[%s469 + $0x78] sm:$0xff] %v5021
        %s5038 = sand.u32 %s228, 1
        %s5039 = scalar_lea.sflag [#allocation4], %s5038
        %s5040 = sand.u32 %s228, 1
        %s5041 = smul.addr %s5040, 128
        %s5042 = scalar_lea.vmem [#allocation14], %s5041
        %s5043 = sand.u32 %s256, 1
        %s5044 = scalar_lea.sflag [#allocation16], %s5043
        %s5045 = sand.u32 %s256, 1
        %s5046 = smul.addr %s5045, 128
        %s5047 = scalar_lea.vmem [#allocation15], %s5046
        // Predicated region
        $region81: #{tpu_custom_call.1} parent=51 // pred_check
          %p5048 = pneg %p238
        $region82: #{tpu_custom_call.1} parent=51 // pred_check_branch
          %5050 = sbr.rel (%p5048) target = $region84
        $region83: #{tpu_custom_call.1} parent=51 // pred_region
          %s5051 = smul.u32 16, %s38
          %5053 = vsyncadd %s5039, 0
          %s5054 = smul.addr %s37, 16
          %s5055 = sadd.s32 %s5051, %s5054
          %s5056 = smul.addr %s5055, 8
          %s5057 = scalar_lea.hbm %s8, %s5056
          %s5058 = sshll.u32 %s5042, 4
          %s5059 = int_to_ptr.vmem [resolvable:$true] %s5058
          %s5060 = sshll.u32 %s5057, 4
          %s5061 = int_to_ptr.hbm [resolvable:$true] %s5060
          %5066 = dma.vmem_to_hbm [thread:$0]  %s5059, 2048, %s5061, %s5039, 128, 128, 8
        $region84: #{tpu_custom_call.1} parent=51 // pred_fallthru
          _
        // Predicated region
        $region85: #{tpu_custom_call.1} parent=51 // pred_check
          %p5067 = pneg %p266
        $region86: #{tpu_custom_call.1} parent=51 // pred_check_branch
          %5069 = sbr.rel (%p5067) target = $region88
        $region87: #{tpu_custom_call.1} parent=51 // pred_region
          %s5070 = smul.u32 16, %s38
          %5072 = vsyncadd %s5044, 0
          %s5073 = smul.addr %s37, 16
          %s5074 = sadd.s32 %s5070, %s5073
          %s5075 = smul.addr %s5074, 8
          %s5076 = scalar_lea.hbm %s9, %s5075
          %s5077 = sshll.u32 %s5047, 4
          %s5078 = int_to_ptr.vmem [resolvable:$true] %s5077
          %s5079 = sshll.u32 %s5076, 4
          %s5080 = int_to_ptr.hbm [resolvable:$true] %s5079
          %5085 = dma.vmem_to_hbm [thread:$0]  %s5078, 2048, %s5080, %s5044, 128, 128, 8
        $region88: #{tpu_custom_call.1} parent=51 // pred_fallthru
          _
      $region52: #{tpu_custom_call.1} parent=5 // pred_fallthru
        _
      %p5086 = scmp.le.s32.totalorder 2, %s28
      // Predicated region
      $region89: #{tpu_custom_call.1} parent=5 // pred_check
        %p5087 = pneg %p5086
      $region90: #{tpu_custom_call.1} parent=5 // pred_check_branch
        %5089 = sbr.rel (%p5087) target = $region92
      $region91: #{tpu_custom_call.1} parent=5 // pred_region
        %s5090 = ssub.s32 %s28, 2
        // Predicated region
        $region93: #{tpu_custom_call.1} parent=91 // pred_check
          %p5091 = pneg %p244
        $region94: #{tpu_custom_call.1} parent=91 // pred_check_branch
          %5093 = sbr.rel (%p5091) target = $region96
        $region95: #{tpu_custom_call.1} parent=91 // pred_region
          %s5094 = sand.u32 %s229, 1
          %s5095 = scalar_lea.sflag [#allocation4], %s5094
          %s5096 = sand.u32 %s229, 1
          %s5097 = smul.addr %s5096, 128
          %s5098 = scalar_lea.vmem [#allocation14], %s5097
          %5100 = dma.done %s5095, 2048
        $region96: #{tpu_custom_call.1} parent=91 // pred_fallthru
          _
        // Predicated region
        $region97: #{tpu_custom_call.1} parent=91 // pred_check
          %p5101 = pneg %p272
        $region98: #{tpu_custom_call.1} parent=91 // pred_check_branch
          %5103 = sbr.rel (%p5101) target = $region100
        $region99: #{tpu_custom_call.1} parent=91 // pred_region
          %s5104 = sand.u32 %s257, 1
          %s5105 = scalar_lea.sflag [#allocation16], %s5104
          %s5106 = sand.u32 %s257, 1
          %s5107 = smul.addr %s5106, 128
          %s5108 = scalar_lea.vmem [#allocation15], %s5107
          %5110 = dma.done %s5105, 2048
        $region100: #{tpu_custom_call.1} parent=91 // pred_fallthru
          _
      $region92: #{tpu_custom_call.1} parent=5 // pred_fallthru
        _
    $region6: #{tpu_custom_call.1} parent=1 // loop_footer
      %s32 = sadd.s32 1, %s28
    $region7: #{tpu_custom_call.1} parent=1 // loop_footer_branch
      %27 = sbr.rel target = $region3
    $region8: #{tpu_custom_call.1} parent=1 // loop_exit
      _
    %5111 = vsyncpa [#allocation3], 1
    %s5112 = scalar_lea.sflag [#allocation3], 1
    %5113 = vsyncpa %s5112, 1
    %5114 = vsyncpa [#allocation6], 1
    %5115 = vsyncpa [#allocation9], 1
    %5116 = vsyncpa [#allocation12], 1
    %5117 = vsyncpa [#allocation4], 1
    %s5118 = scalar_lea.sflag [#allocation4], 1
    %5119 = vsyncpa %s5118, 1
    %5120 = vsyncpa [#allocation16], 1
    %s5121 = scalar_lea.sflag [#allocation16], 1
    %5122 = vsyncpa %s5121, 1

</llo_original>
